<compile_context>
chip_gen: v7x
topology: tpu7x:2x2x1
jax: 0.10.0
libtpu: 0.0.40
codegen_flags: <defaults>
</compile_context>

<pallas_src>
import numpy as np
import jax
import jax.numpy as jnp
from jax import lax
from jax.experimental import pallas as pl
from jax.experimental.pallas import tpu as pltpu


_TAPS = tuple((dy, dx) for dy in (-1, 0, 1) for dx in (-1, 0, 1))


# ----------------------------- fused Pallas kernel ---------------------------

def _make_kernel(H, W):
    H2, W2 = H // 2, W // 2
    H3, W3 = H // 4, W // 4
    HP, WP = H // 8, W // 8
    R1, R2, R3, R4 = H * W, H2 * W2, H3 * W3, HP * WP
    f32, bf16 = jnp.float32, jnp.bfloat16

    def dot(a, b):
        return jnp.dot(a, b, preferred_element_type=f32)

    def kernel(patches_ref, w1c_ref, b1c_ref,
               mask2_ref, w2c_ref, b2c_ref,
               mask3_ref, w3c_ref, b3c_ref,
               wa1_ref, ba1_ref, wa2_ref, ba2_ref,
               w1f_ref, b1f_ref, w2f_ref, b2f_ref,
               out_ref,
               cbuf1, hbuf1, pad2, slab2,
               cbuf2, hbuf2, pad3, slab3,
               cbuf3, hbuf3, p3buf,
               logit_buf, glse_buf, xatt_buf, flat_buf):

        def pool(y, cbuf, hbuf, dst_ref, dst_base, hh, ww):
            # 2x2 / stride-2 max pool of y (hh*ww, C) in raster order; writes the
            # (hh//2 * ww//2, C) result into dst_ref starting at row dst_base.
            cbuf[...] = y
            wo, ho = ww // 2, hh // 2
            # W-direction: adjacent row pairs -> two strided sublane reads + VPU max.
            hbuf[...] = jnp.maximum(cbuf[pl.ds(0, hh * wo, stride=2)],
                                    cbuf[pl.ds(1, hh * wo, stride=2)])
            # H-direction: pair consecutive even/odd rows of the half-pooled image.
            for i in range(ho):
                top = hbuf[pl.ds((2 * i) * wo, wo)]
                bot = hbuf[pl.ds((2 * i + 1) * wo, wo)]
                dst_ref[pl.ds(dst_base + i * wo, wo)] = jnp.maximum(top, bot)

        def conv3x3(pad_ref, mask_ref, slab_ref, w_ref, b_ref, hh, ww, cin):
            # 3x3 "same" conv: 9 shifted reads from the zero-padded activation
            # scratch, masked at the W edges, packed into one (R, 9*cin) im2col
            # slab, then a single fused-K bf16 MXU matmul (K = 9*cin).
            r = hh * ww
            base = ww + 1
            for t, (dy, dx) in enumerate(_TAPS):
                tap = pad_ref[pl.ds(base + dy * ww + dx, r)] * mask_ref[t]
                slab_ref[:, pl.ds(t * cin, cin)] = tap
            y = dot(slab_ref[...].astype(bf16), w_ref[...])
            return jnp.maximum(y + b_ref[...], 0.0)

        # ---- stage 1: conv1 (Cin=1) from wrapper-built im2col + relu + pool ------
        conv1 = jnp.maximum(dot(patches_ref[0], w1c_ref[...]) + b1c_ref[...], 0.0)
        # zero conv2's padding border, then drop pooled1 straight into its interior
        pad2[pl.ds(0, W2 + 1)] = jnp.zeros((W2 + 1, 32), f32)
        pad2[pl.ds(W2 + 1 + R2, W2 + 1)] = jnp.zeros((W2 + 1, 32), f32)
        pool(conv1, cbuf1, hbuf1, pad2, W2 + 1, H, W)

        # ---- stage 2 --------------------------------------------------------------
        conv2 = conv3x3(pad2, mask2_ref, slab2, w2c_ref, b2c_ref, H2, W2, 32)
        pad3[pl.ds(0, W3 + 1)] = jnp.zeros((W3 + 1, 64), f32)
        pad3[pl.ds(W3 + 1 + R3, W3 + 1)] = jnp.zeros((W3 + 1, 64), f32)
        pool(conv2, cbuf2, hbuf2, pad3, W3 + 1, H2, W2)

        # ---- stage 3 --------------------------------------------------------------
        conv3 = conv3x3(pad3, mask3_ref, slab3, w3c_ref, b3c_ref, H3, W3, 64)
        pool(conv3, cbuf3, hbuf3, p3buf, 0, H3, W3)

        # ---- attention: 1x1 conv -> relu -> 1x1 conv -> softmax over W ------------
        p3 = p3buf[...]                                                   # (R4, 128)
        a1 = jnp.maximum(dot(p3.astype(bf16), wa1_ref[...]) + ba1_ref[...], 0.0)
        logits = jnp.sum(a1 * wa2_ref[...], axis=1, keepdims=True) + ba2_ref[...]
        logit_buf[...] = logits                                           # (R4, 1)

        # per-(image, h) group log-sum-exp over the W axis via stride-WP reads
        gmax = logit_buf[pl.ds(0, HP, stride=WP)]
        for dx in range(1, WP):
            gmax = jnp.maximum(gmax, logit_buf[pl.ds(dx, HP, stride=WP)])
        gsum = jnp.zeros((HP, 1), f32)
        for dx in range(WP):
            gsum = gsum + jnp.exp(logit_buf[pl.ds(dx, HP, stride=WP)] - gmax)
        glse_buf[...] = gmax + jnp.log(gsum)                              # (HP, 1)

        # x * softmax(attn): exp(logit - group_lse), broadcast per group
        for hh in range(HP):
            att = jnp.exp(logit_buf[pl.ds(hh * WP, WP)] - glse_buf[pl.ds(hh, 1)])
            xatt_buf[pl.ds(hh * WP, WP)] = p3buf[pl.ds(hh * WP, WP)] * att

        # ---- fc head: flatten (torch (C,H,W) order folded into w1f), fc1->relu,
        # ----          fc2, sigmoid ------------------------------------------------
        for rr in range(R4):
            flat_buf[:, pl.ds(rr * 128, 128)] = xatt_buf[pl.ds(rr, 1)]
        h1 = jnp.maximum(dot(flat_buf[...].astype(bf16), w1f_ref[...]) + b1f_ref[...],
                         0.0)
        # TODO(synk): nn.Dropout(0.3) is the identity at inference; a training mode
        # would draw the mask with pltpu.prng_seed / pltpu.prng_random_bits.
        z = dot(h1.astype(bf16), w2f_ref[...]) + b2f_ref[...]
        out_ref[0] = (1.0 / (1.0 + jnp.exp(-z))).astype(out_ref.dtype)    # exact sigmoid

    return kernel


# ------------------------- tiny precomputed constants ------------------------

def _np_tap_masks(h, w):
    """(9, h*w, 1) 0/1 keep-masks for the 9 taps of a 3x3 'same' conv."""
    out = np.zeros((9, h * w, 1), np.float32)
    for t, (dy, dx) in enumerate(_TAPS):
        for i in range(h):
            for j in range(w):
                if 0 <= i + dy < h and 0 <= j + dx < w:
                    out[t, i * w + j, 0] = 1.0
    return out


def _im2col_3x3_1ch(x_nhw):
    """(N, H, W) single-channel input -> (N, H*W, 9) im2col patches (zero pad=1)."""
    n, h, w = x_nhw.shape
    xp = jnp.pad(x_nhw, ((0, 0), (1, 1), (1, 1)))
    cols = [xp[:, dy:dy + h, dx:dx + w].reshape(n, h * w, 1)
            for dy in range(3) for dx in range(3)]
    return jnp.concatenate(cols, axis=2)


# ----------------------------------- wrapper ---------------------------------

def attention_cnn_forward(x_nchw, params):
    """Full forward pass for x_nchw: (N, 1, H, W), H and W divisible by 8."""
    n, cin, h, w = x_nchw.shape
    assert cin == 1 and h % 8 == 0 and w % 8 == 0
    h2, w2 = h // 2, w // 2
    h3, w3 = h // 4, w // 4
    hp, wp = h // 8, w // 8
    r1, r2, r3, r4 = h * w, h2 * w2, h3 * w3, hp * wp
    hidden = params["w1"].shape[1]
    num_classes = params["w2"].shape[1]
    f32, bf16 = jnp.float32, jnp.bfloat16

    # input-side glue: im2col of the single-channel input (K=9); bf16 for HBM/MXU
    patches = _im2col_3x3_1ch(x_nchw[:, 0].astype(f32)).astype(bf16)     # (N, H*W, 9)

    # tiny per-stage (9, R, 1) boundary keep-masks (replace the old O(R^2) shifts)
    mask2 = jnp.asarray(_np_tap_masks(h2, w2))
    mask3 = jnp.asarray(_np_tap_masks(h3, w3))

    row = lambda v: v.reshape(1, -1).astype(f32)
    w1c = params["w_c1"].reshape(9, -1).astype(bf16)                      # (9, 32)
    w2c = params["w_c2"].reshape(9 * 32, 64).astype(bf16)                 # (288, 64)
    w3c = params["w_c3"].reshape(9 * 64, 128).astype(bf16)                # (576, 128)
    wa1 = params["w_a1"].astype(bf16)                                     # (128, 64)
    wa2 = params["w_a2"].reshape(1, -1).astype(f32)                       # (1, 64)
    # torch (C,H,W) flatten order folded into fc1 weight -> rows in (r, c) order
    w1f = (params["w1"].reshape(128, r4, hidden).transpose(1, 0, 2)
           .reshape(r4 * 128, hidden).astype(bf16))
    w2f = params["w2"].astype(bf16)

    args = (patches, w1c, row(params["b_c1"]),
            mask2, w2c, row(params["b_c2"]),
            mask3, w3c, row(params["b_c3"]),
            wa1, row(params["b_a1"]), wa2, row(params["b_a2"]),
            w1f, row(params["b1"]), w2f, row(params["b2"]))

    def whole(a):
        nd = a.ndim
        return pl.BlockSpec(a.shape, lambda b, _n=nd: (0,) * _n)

    in_specs = [pl.BlockSpec((1, r1, 9), lambda b: (b, 0, 0))]
    in_specs += [whole(a) for a in args[1:]]

    scratch = [
        pltpu.VMEM((r1, 32), f32),                 # conv1 output staging (pool reads)
        pltpu.VMEM((r1 // 2, 32), f32),            # stage-1 half-pooled staging
        pltpu.VMEM((r2 + 2 * w2 + 2, 32), f32),    # pooled1 + conv2 zero-pad border
        pltpu.VMEM((r2, 9 * 32), f32),             # conv2 im2col slab (fused K=288)
        pltpu.VMEM((r2, 64), f32),
        pltpu.VMEM((r2 // 2, 64), f32),
        pltpu.VMEM((r3 + 2 * w3 + 2, 64), f32),    # pooled2 + conv3 zero-pad border
        pltpu.VMEM((r3, 9 * 64), f32),             # conv3 im2col slab (fused K=576)
        pltpu.VMEM((r3, 128), f32),
        pltpu.VMEM((r3 // 2, 128), f32),
        pltpu.VMEM((r4, 128), f32),                # pooled3
        pltpu.VMEM((r4, 1), f32),                  # attention logits
        pltpu.VMEM((hp, 1), f32),                  # per-(h) group log-sum-exp
        pltpu.VMEM((r4, 128), f32),                # x * attention
        pltpu.VMEM((1, r4 * 128), f32),            # flattened fc1 input
    ]

    kernel = _make_kernel(h, w)
    out3 = pl.pallas_call(
        kernel,
        out_shape=jax.ShapeDtypeStruct((n, 1, num_classes), jnp.float32),
        grid=(n,),
        in_specs=in_specs,
        out_specs=pl.BlockSpec((1, 1, num_classes), lambda b: (b, 0, 0)),
        scratch_shapes=scratch,
        compiler_params=pltpu.CompilerParams(
            dimension_semantics=("parallel",)),
    )(*args)
    return out3[:, 0, :]


# ------------------------- deterministic parameters --------------------------

def init_params(key, input_hw=(16, 16), num_classes=12):
    h, w = input_hw

    def uinit(k, shape, fan_in):
        bound = 1.0 / (float(fan_in) ** 0.5)
        return jax.random.uniform(k, shape, jnp.float32, -bound, bound)

    ks = jax.random.split(key, 14)
    flat = (h // 8) * (w // 8) * 128
    return {
        "w_c1": uinit(ks[0], (3, 3, 1, 32), 9 * 1),
        "b_c1": uinit(ks[1], (32,), 9 * 1),
        "w_c2": uinit(ks[2], (3, 3, 32, 64), 9 * 32),
        "b_c2": uinit(ks[3], (64,), 9 * 32),
        "w_c3": uinit(ks[4], (3, 3, 64, 128), 9 * 64),
        "b_c3": uinit(ks[5], (128,), 9 * 64),
        "w_a1": uinit(ks[6], (128, 64), 128),
        "b_a1": uinit(ks[7], (64,), 128),
        "w_a2": uinit(ks[8], (64, 1), 64),
        "b_a2": uinit(ks[9], (1,), 64),
        "w1": uinit(ks[10], (flat, 256), flat),
        "b1": uinit(ks[11], (256,), flat),
        "w2": uinit(ks[12], (256, num_classes), 256),
        "b2": uinit(ks[13], (num_classes,), 256),
    }


# ----------------------------- pure-JAX reference ----------------------------

def ref_forward(x_nchw, params):
    x = jnp.transpose(x_nchw, (0, 2, 3, 1))                     # NHWC

    def conv(x, w, b):
        y = lax.conv_general_dilated(x, w, window_strides=(1, 1), padding="SAME",
                                     dimension_numbers=("NHWC", "HWIO", "NHWC"))
        return y + b

    def pool(x):
        return lax.reduce_window(x, -jnp.inf, lax.max,
                                 (1, 2, 2, 1), (1, 2, 2, 1), "VALID")

    x = pool(jnp.maximum(conv(x, params["w_c1"], params["b_c1"]), 0.0))
    x = pool(jnp.maximum(conv(x, params["w_c2"], params["b_c2"]), 0.0))
    x = pool(jnp.maximum(conv(x, params["w_c3"], params["b_c3"]), 0.0))

    a = jnp.maximum(jnp.einsum("nhwc,cd->nhwd", x, params["w_a1"]) + params["b_a1"], 0.0)
    e = jnp.einsum("nhwd,de->nhwe", a, params["w_a2"]) + params["b_a2"]   # (N,H,W,1)
    att = jax.nn.softmax(e, axis=2)                                        # over W
    x = x * att

    n = x.shape[0]
    x = jnp.transpose(x, (0, 3, 1, 2)).reshape(n, -1)           # torch (C,H,W) flatten
    h = jnp.maximum(x @ params["w1"] + params["b1"], 0.0)
    z = h @ params["w2"] + params["b2"]
    return jax.nn.sigmoid(z)


# ----------------------------------- main -------------------------------------

if __name__ == "__main__":
    key = jax.random.PRNGKey(0)
    kx, kp = jax.random.split(key)

    # small shapes consistent with the module: batch=2, in_channels=1, 16x16 spatial
    x = jax.random.normal(kx, (2, 1, 16, 16), jnp.float32)       # NCHW like PyTorch
    params = init_params(kp, input_hw=(16, 16), num_classes=12)

    fwd = jax.jit(lambda xx: attention_cnn_forward(xx, params))
    out = jax.block_until_ready(fwd(x))

    assert out.shape == (2, 12), out.shape
    ref = ref_forward(x, params)
    assert bool(jnp.allclose(out, ref, atol=2e-2, rtol=2e-2)), (
        "mismatch vs pure-JAX reference: "
        f"max abs diff = {float(jnp.max(jnp.abs(out - ref)))}")

    print("KERNEL_OK")
</pallas_src>

<mosaic_0001>
module attributes {stable_mosaic.version = 11 : i64} {
  func.func @kernel(%arg0: i32, %arg1: memref<1x256x9xbf16, #tpu.memory_space<vmem>>, %arg2: memref<9x32xbf16, #tpu.memory_space<vmem>>, %arg3: memref<1x32xf32, #tpu.memory_space<vmem>>, %arg4: memref<9x64x1xf32, #tpu.memory_space<vmem>>, %arg5: memref<288x64xbf16, #tpu.memory_space<vmem>>, %arg6: memref<1x64xf32, #tpu.memory_space<vmem>>, %arg7: memref<9x16x1xf32, #tpu.memory_space<vmem>>, %arg8: memref<576x128xbf16, #tpu.memory_space<vmem>>, %arg9: memref<1x128xf32, #tpu.memory_space<vmem>>, %arg10: memref<128x64xbf16, #tpu.memory_space<vmem>>, %arg11: memref<1x64xf32, #tpu.memory_space<vmem>>, %arg12: memref<1x64xf32, #tpu.memory_space<vmem>>, %arg13: memref<1x1xf32, #tpu.memory_space<vmem>>, %arg14: memref<512x256xbf16, #tpu.memory_space<vmem>>, %arg15: memref<1x256xf32, #tpu.memory_space<vmem>>, %arg16: memref<256x12xbf16, #tpu.memory_space<vmem>>, %arg17: memref<1x12xf32, #tpu.memory_space<vmem>>, %arg18: memref<1x1x12xf32, #tpu.memory_space<vmem>>, %arg19: memref<256x32xf32, #tpu.memory_space<vmem>>, %arg20: memref<128x32xf32, #tpu.memory_space<vmem>>, %arg21: memref<82x32xf32, #tpu.memory_space<vmem>>, %arg22: memref<64x288xf32, #tpu.memory_space<vmem>>, %arg23: memref<64x64xf32, #tpu.memory_space<vmem>>, %arg24: memref<32x64xf32, #tpu.memory_space<vmem>>, %arg25: memref<26x64xf32, #tpu.memory_space<vmem>>, %arg26: memref<16x576xf32, #tpu.memory_space<vmem>>, %arg27: memref<16x128xf32, #tpu.memory_space<vmem>>, %arg28: memref<8x128xf32, #tpu.memory_space<vmem>>, %arg29: memref<4x128xf32, #tpu.memory_space<vmem>>, %arg30: memref<4x1xf32, #tpu.memory_space<vmem>>, %arg31: memref<2x1xf32, #tpu.memory_space<vmem>>, %arg32: memref<4x128xf32, #tpu.memory_space<vmem>>, %arg33: memref<1x512xf32, #tpu.memory_space<vmem>>) attributes {dimension_semantics = [#tpu.dimension_semantics<parallel>], iteration_bounds = array<i64: 2>, scalar_prefetch = 0 : i64, scratch_operands = 15 : i64, tpu.core_type = #tpu.core_type<tc>, window_params = [{transform_indices = @transform_0, window_bounds = array<i64: 1, 256, 9>}, {pipeline_mode = #tpu.pipeline_mode<synchronous>, transform_indices = @transform_1, window_bounds = array<i64: 9, 32>}, {pipeline_mode = #tpu.pipeline_mode<synchronous>, transform_indices = @transform_2, window_bounds = array<i64: 1, 32>}, {pipeline_mode = #tpu.pipeline_mode<synchronous>, transform_indices = @transform_3, window_bounds = array<i64: 9, 64, 1>}, {pipeline_mode = #tpu.pipeline_mode<synchronous>, transform_indices = @transform_4, window_bounds = array<i64: 288, 64>}, {pipeline_mode = #tpu.pipeline_mode<synchronous>, transform_indices = @transform_5, window_bounds = array<i64: 1, 64>}, {pipeline_mode = #tpu.pipeline_mode<synchronous>, transform_indices = @transform_6, window_bounds = array<i64: 9, 16, 1>}, {pipeline_mode = #tpu.pipeline_mode<synchronous>, transform_indices = @transform_7, window_bounds = array<i64: 576, 128>}, {pipeline_mode = #tpu.pipeline_mode<synchronous>, transform_indices = @transform_8, window_bounds = array<i64: 1, 128>}, {pipeline_mode = #tpu.pipeline_mode<synchronous>, transform_indices = @transform_9, window_bounds = array<i64: 128, 64>}, {pipeline_mode = #tpu.pipeline_mode<synchronous>, transform_indices = @transform_10, window_bounds = array<i64: 1, 64>}, {pipeline_mode = #tpu.pipeline_mode<synchronous>, transform_indices = @transform_11, window_bounds = array<i64: 1, 64>}, {pipeline_mode = #tpu.pipeline_mode<synchronous>, transform_indices = @transform_12, window_bounds = array<i64: 1, 1>}, {pipeline_mode = #tpu.pipeline_mode<synchronous>, transform_indices = @transform_13, window_bounds = array<i64: 512, 256>}, {pipeline_mode = #tpu.pipeline_mode<synchronous>, transform_indices = @transform_14, window_bounds = array<i64: 1, 256>}, {pipeline_mode = #tpu.pipeline_mode<synchronous>, transform_indices = @transform_15, window_bounds = array<i64: 256, 12>}, {pipeline_mode = #tpu.pipeline_mode<synchronous>, transform_indices = @transform_16, window_bounds = array<i64: 1, 12>}, {transform_indices = @transform_17, window_bounds = array<i64: 1, 1, 12>}]} {
    %c0 = arith.constant 0 : index
    %c0_0 = arith.constant 0 : index
    %c0_1 = arith.constant 0 : index
    %0 = vector.load %arg1[%c0, %c0_0, %c0_1] : memref<1x256x9xbf16, #tpu.memory_space<vmem>>, vector<1x256x9xbf16>
    %1 = vector.shape_cast %0 : vector<1x256x9xbf16> to vector<256x9xbf16>
    %c0_2 = arith.constant 0 : index
    %c0_3 = arith.constant 0 : index
    %2 = vector.load %arg2[%c0_2, %c0_3] : memref<9x32xbf16, #tpu.memory_space<vmem>>, vector<9x32xbf16>
    %cst = arith.constant dense<0.000000e+00> : vector<256x32xf32>
    %3 = tpu.matmul %1, %2, %cst {dimension_numbers = #tpu.dot_dimension_numbers<[1], [0], [0], [1], [0, 0, 1, 1], [], []>} : vector<256x9xbf16>, vector<9x32xbf16>, vector<256x32xf32> -> vector<256x32xf32>
    %c0_4 = arith.constant 0 : index
    %c0_5 = arith.constant 0 : index
    %4 = vector.load %arg3[%c0_4, %c0_5] : memref<1x32xf32, #tpu.memory_space<vmem>>, vector<1x32xf32>
    %5 = vector.broadcast %4 : vector<1x32xf32> to vector<256x32xf32>
    %6 = arith.addf %3, %5 : vector<256x32xf32>
    %cst_6 = arith.constant 0.000000e+00 : f32
    %7 = vector.broadcast %cst_6 : f32 to vector<256x32xf32>
    %8 = arith.maximumf %6, %7 : vector<256x32xf32>
    %cst_7 = arith.constant 0.000000e+00 : f32
    %9 = vector.broadcast %cst_7 : f32 to vector<9x32xf32>
    %c0_8 = arith.constant 0 : index
    %c0_9 = arith.constant 0 : index
    %10 = vector.load %arg21[%c0_8, %c0_9] : memref<82x32xf32, #tpu.memory_space<vmem>>, vector<9x32xf32>
    tpu.vector_store %arg21[%c0_8, %c0_9], %9 {strides = array<i32>} : memref<82x32xf32, #tpu.memory_space<vmem>>, vector<9x32xf32>,
    %cst_10 = arith.constant 0.000000e+00 : f32
    %11 = vector.broadcast %cst_10 : f32 to vector<9x32xf32>
    %c73 = arith.constant 73 : index
    %c0_11 = arith.constant 0 : index
    %12 = vector.load %arg21[%c73, %c0_11] : memref<82x32xf32, #tpu.memory_space<vmem>>, vector<9x32xf32>
    tpu.vector_store %arg21[%c73, %c0_11], %11 {strides = array<i32>} : memref<82x32xf32, #tpu.memory_space<vmem>>, vector<9x32xf32>,
    %c0_12 = arith.constant 0 : index
    %c0_13 = arith.constant 0 : index
    %13 = vector.load %arg19[%c0_12, %c0_13] : memref<256x32xf32, #tpu.memory_space<vmem>>, vector<256x32xf32>
    tpu.vector_store %arg19[%c0_12, %c0_13], %8 {strides = array<i32>} : memref<256x32xf32, #tpu.memory_space<vmem>>, vector<256x32xf32>,
    %c0_14 = arith.constant 0 : index
    %c0_15 = arith.constant 0 : index
    %14 = tpu.strided_load %arg19[%c0_14, %c0_15] {strides = array<i32: 2, 1>} : memref<256x32xf32, #tpu.memory_space<vmem>>, vector<128x32xf32>
    %c1 = arith.constant 1 : index
    %c0_16 = arith.constant 0 : index
    %15 = tpu.strided_load %arg19[%c1, %c0_16] {strides = array<i32: 2, 1>} : memref<256x32xf32, #tpu.memory_space<vmem>>, vector<128x32xf32>
    %16 = arith.maximumf %14, %15 : vector<128x32xf32>
    %c0_17 = arith.constant 0 : index
    %c0_18 = arith.constant 0 : index
    %17 = vector.load %arg20[%c0_17, %c0_18] : memref<128x32xf32, #tpu.memory_space<vmem>>, vector<128x32xf32>
    tpu.vector_store %arg20[%c0_17, %c0_18], %16 {strides = array<i32>} : memref<128x32xf32, #tpu.memory_space<vmem>>, vector<128x32xf32>,
    %c0_19 = arith.constant 0 : index
    %c0_20 = arith.constant 0 : index
    %18 = vector.load %arg20[%c0_19, %c0_20] : memref<128x32xf32, #tpu.memory_space<vmem>>, vector<8x32xf32>
    %c8 = arith.constant 8 : index
    %c0_21 = arith.constant 0 : index
    %19 = vector.load %arg20[%c8, %c0_21] : memref<128x32xf32, #tpu.memory_space<vmem>>, vector<8x32xf32>
    %20 = arith.maximumf %18, %19 : vector<8x32xf32>
    %c9 = arith.constant 9 : index
    %c0_22 = arith.constant 0 : index
    %21 = vector.load %arg21[%c9, %c0_22] : memref<82x32xf32, #tpu.memory_space<vmem>>, vector<8x32xf32>
    tpu.vector_store %arg21[%c9, %c0_22], %20 {strides = array<i32>} : memref<82x32xf32, #tpu.memory_space<vmem>>, vector<8x32xf32>,
    %c16 = arith.constant 16 : index
    %c0_23 = arith.constant 0 : index
    %22 = vector.load %arg20[%c16, %c0_23] : memref<128x32xf32, #tpu.memory_space<vmem>>, vector<8x32xf32>
    %c24 = arith.constant 24 : index
    %c0_24 = arith.constant 0 : index
    %23 = vector.load %arg20[%c24, %c0_24] : memref<128x32xf32, #tpu.memory_space<vmem>>, vector<8x32xf32>
    %24 = arith.maximumf %22, %23 : vector<8x32xf32>
    %c17 = arith.constant 17 : index
    %c0_25 = arith.constant 0 : index
    %25 = vector.load %arg21[%c17, %c0_25] : memref<82x32xf32, #tpu.memory_space<vmem>>, vector<8x32xf32>
    tpu.vector_store %arg21[%c17, %c0_25], %24 {strides = array<i32>} : memref<82x32xf32, #tpu.memory_space<vmem>>, vector<8x32xf32>,
    %c32 = arith.constant 32 : index
    %c0_26 = arith.constant 0 : index
    %26 = vector.load %arg20[%c32, %c0_26] : memref<128x32xf32, #tpu.memory_space<vmem>>, vector<8x32xf32>
    %c40 = arith.constant 40 : index
    %c0_27 = arith.constant 0 : index
    %27 = vector.load %arg20[%c40, %c0_27] : memref<128x32xf32, #tpu.memory_space<vmem>>, vector<8x32xf32>
    %28 = arith.maximumf %26, %27 : vector<8x32xf32>
    %c25 = arith.constant 25 : index
    %c0_28 = arith.constant 0 : index
    %29 = vector.load %arg21[%c25, %c0_28] : memref<82x32xf32, #tpu.memory_space<vmem>>, vector<8x32xf32>
    tpu.vector_store %arg21[%c25, %c0_28], %28 {strides = array<i32>} : memref<82x32xf32, #tpu.memory_space<vmem>>, vector<8x32xf32>,
    %c48 = arith.constant 48 : index
    %c0_29 = arith.constant 0 : index
    %30 = vector.load %arg20[%c48, %c0_29] : memref<128x32xf32, #tpu.memory_space<vmem>>, vector<8x32xf32>
    %c56 = arith.constant 56 : index
    %c0_30 = arith.constant 0 : index
    %31 = vector.load %arg20[%c56, %c0_30] : memref<128x32xf32, #tpu.memory_space<vmem>>, vector<8x32xf32>
    %32 = arith.maximumf %30, %31 : vector<8x32xf32>
    %c33 = arith.constant 33 : index
    %c0_31 = arith.constant 0 : index
    %33 = vector.load %arg21[%c33, %c0_31] : memref<82x32xf32, #tpu.memory_space<vmem>>, vector<8x32xf32>
    tpu.vector_store %arg21[%c33, %c0_31], %32 {strides = array<i32>} : memref<82x32xf32, #tpu.memory_space<vmem>>, vector<8x32xf32>,
    %c64 = arith.constant 64 : index
    %c0_32 = arith.constant 0 : index
    %34 = vector.load %arg20[%c64, %c0_32] : memref<128x32xf32, #tpu.memory_space<vmem>>, vector<8x32xf32>
    %c72 = arith.constant 72 : index
    %c0_33 = arith.constant 0 : index
    %35 = vector.load %arg20[%c72, %c0_33] : memref<128x32xf32, #tpu.memory_space<vmem>>, vector<8x32xf32>
    %36 = arith.maximumf %34, %35 : vector<8x32xf32>
    %c41 = arith.constant 41 : index
    %c0_34 = arith.constant 0 : index
    %37 = vector.load %arg21[%c41, %c0_34] : memref<82x32xf32, #tpu.memory_space<vmem>>, vector<8x32xf32>
    tpu.vector_store %arg21[%c41, %c0_34], %36 {strides = array<i32>} : memref<82x32xf32, #tpu.memory_space<vmem>>, vector<8x32xf32>,
    %c80 = arith.constant 80 : index
    %c0_35 = arith.constant 0 : index
    %38 = vector.load %arg20[%c80, %c0_35] : memref<128x32xf32, #tpu.memory_space<vmem>>, vector<8x32xf32>
    %c88 = arith.constant 88 : index
    %c0_36 = arith.constant 0 : index
    %39 = vector.load %arg20[%c88, %c0_36] : memref<128x32xf32, #tpu.memory_space<vmem>>, vector<8x32xf32>
    %40 = arith.maximumf %38, %39 : vector<8x32xf32>
    %c49 = arith.constant 49 : index
    %c0_37 = arith.constant 0 : index
    %41 = vector.load %arg21[%c49, %c0_37] : memref<82x32xf32, #tpu.memory_space<vmem>>, vector<8x32xf32>
    tpu.vector_store %arg21[%c49, %c0_37], %40 {strides = array<i32>} : memref<82x32xf32, #tpu.memory_space<vmem>>, vector<8x32xf32>,
    %c96 = arith.constant 96 : index
    %c0_38 = arith.constant 0 : index
    %42 = vector.load %arg20[%c96, %c0_38] : memref<128x32xf32, #tpu.memory_space<vmem>>, vector<8x32xf32>
    %c104 = arith.constant 104 : index
    %c0_39 = arith.constant 0 : index
    %43 = vector.load %arg20[%c104, %c0_39] : memref<128x32xf32, #tpu.memory_space<vmem>>, vector<8x32xf32>
    %44 = arith.maximumf %42, %43 : vector<8x32xf32>
    %c57 = arith.constant 57 : index
    %c0_40 = arith.constant 0 : index
    %45 = vector.load %arg21[%c57, %c0_40] : memref<82x32xf32, #tpu.memory_space<vmem>>, vector<8x32xf32>
    tpu.vector_store %arg21[%c57, %c0_40], %44 {strides = array<i32>} : memref<82x32xf32, #tpu.memory_space<vmem>>, vector<8x32xf32>,
    %c112 = arith.constant 112 : index
    %c0_41 = arith.constant 0 : index
    %46 = vector.load %arg20[%c112, %c0_41] : memref<128x32xf32, #tpu.memory_space<vmem>>, vector<8x32xf32>
    %c120 = arith.constant 120 : index
    %c0_42 = arith.constant 0 : index
    %47 = vector.load %arg20[%c120, %c0_42] : memref<128x32xf32, #tpu.memory_space<vmem>>, vector<8x32xf32>
    %48 = arith.maximumf %46, %47 : vector<8x32xf32>
    %c65 = arith.constant 65 : index
    %c0_43 = arith.constant 0 : index
    %49 = vector.load %arg21[%c65, %c0_43] : memref<82x32xf32, #tpu.memory_space<vmem>>, vector<8x32xf32>
    tpu.vector_store %arg21[%c65, %c0_43], %48 {strides = array<i32>} : memref<82x32xf32, #tpu.memory_space<vmem>>, vector<8x32xf32>,
    %c0_44 = arith.constant 0 : index
    %c0_45 = arith.constant 0 : index
    %50 = vector.load %arg21[%c0_44, %c0_45] : memref<82x32xf32, #tpu.memory_space<vmem>>, vector<64x32xf32>
    %c0_46 = arith.constant 0 : index
    %c0_47 = arith.constant 0 : index
    %c0_48 = arith.constant 0 : index
    %51 = vector.load %arg4[%c0_46, %c0_47, %c0_48] : memref<9x64x1xf32, #tpu.memory_space<vmem>>, vector<1x64x1xf32>
    %52 = vector.shape_cast %51 : vector<1x64x1xf32> to vector<64x1xf32>
    %53 = vector.broadcast %52 : vector<64x1xf32> to vector<64x32xf32>
    %54 = arith.mulf %50, %53 : vector<64x32xf32>
    %c0_49 = arith.constant 0 : index
    %c0_50 = arith.constant 0 : index
    %55 = vector.load %arg22[%c0_49, %c0_50] : memref<64x288xf32, #tpu.memory_space<vmem>>, vector<64x32xf32>
    tpu.vector_store %arg22[%c0_49, %c0_50], %54 {strides = array<i32>} : memref<64x288xf32, #tpu.memory_space<vmem>>, vector<64x32xf32>,
    %c1_51 = arith.constant 1 : index
    %c0_52 = arith.constant 0 : index
    %56 = vector.load %arg21[%c1_51, %c0_52] : memref<82x32xf32, #tpu.memory_space<vmem>>, vector<64x32xf32>
    %c1_53 = arith.constant 1 : index
    %c0_54 = arith.constant 0 : index
    %c0_55 = arith.constant 0 : index
    %57 = vector.load %arg4[%c1_53, %c0_54, %c0_55] : memref<9x64x1xf32, #tpu.memory_space<vmem>>, vector<1x64x1xf32>
    %58 = vector.shape_cast %57 : vector<1x64x1xf32> to vector<64x1xf32>
    %59 = vector.broadcast %58 : vector<64x1xf32> to vector<64x32xf32>
    %60 = arith.mulf %56, %59 : vector<64x32xf32>
    %c0_56 = arith.constant 0 : index
    %c32_57 = arith.constant 32 : index
    %61 = vector.load %arg22[%c0_56, %c32_57] : memref<64x288xf32, #tpu.memory_space<vmem>>, vector<64x32xf32>
    tpu.vector_store %arg22[%c0_56, %c32_57], %60 {strides = array<i32>} : memref<64x288xf32, #tpu.memory_space<vmem>>, vector<64x32xf32>,
    %c2 = arith.constant 2 : index
    %c0_58 = arith.constant 0 : index
    %62 = vector.load %arg21[%c2, %c0_58] : memref<82x32xf32, #tpu.memory_space<vmem>>, vector<64x32xf32>
    %c2_59 = arith.constant 2 : index
    %c0_60 = arith.constant 0 : index
    %c0_61 = arith.constant 0 : index
    %63 = vector.load %arg4[%c2_59, %c0_60, %c0_61] : memref<9x64x1xf32, #tpu.memory_space<vmem>>, vector<1x64x1xf32>
    %64 = vector.shape_cast %63 : vector<1x64x1xf32> to vector<64x1xf32>
    %65 = vector.broadcast %64 : vector<64x1xf32> to vector<64x32xf32>
    %66 = arith.mulf %62, %65 : vector<64x32xf32>
    %c0_62 = arith.constant 0 : index
    %c64_63 = arith.constant 64 : index
    %67 = vector.load %arg22[%c0_62, %c64_63] : memref<64x288xf32, #tpu.memory_space<vmem>>, vector<64x32xf32>
    tpu.vector_store %arg22[%c0_62, %c64_63], %66 {strides = array<i32>} : memref<64x288xf32, #tpu.memory_space<vmem>>, vector<64x32xf32>,
    %c8_64 = arith.constant 8 : index
    %c0_65 = arith.constant 0 : index
    %68 = vector.load %arg21[%c8_64, %c0_65] : memref<82x32xf32, #tpu.memory_space<vmem>>, vector<64x32xf32>
    %c3 = arith.constant 3 : index
    %c0_66 = arith.constant 0 : index
    %c0_67 = arith.constant 0 : index
    %69 = vector.load %arg4[%c3, %c0_66, %c0_67] : memref<9x64x1xf32, #tpu.memory_space<vmem>>, vector<1x64x1xf32>
    %70 = vector.shape_cast %69 : vector<1x64x1xf32> to vector<64x1xf32>
    %71 = vector.broadcast %70 : vector<64x1xf32> to vector<64x32xf32>
    %72 = arith.mulf %68, %71 : vector<64x32xf32>
    %c0_68 = arith.constant 0 : index
    %c96_69 = arith.constant 96 : index
    %73 = vector.load %arg22[%c0_68, %c96_69] : memref<64x288xf32, #tpu.memory_space<vmem>>, vector<64x32xf32>
    tpu.vector_store %arg22[%c0_68, %c96_69], %72 {strides = array<i32>} : memref<64x288xf32, #tpu.memory_space<vmem>>, vector<64x32xf32>,
    %c9_70 = arith.constant 9 : index
    %c0_71 = arith.constant 0 : index
    %74 = vector.load %arg21[%c9_70, %c0_71] : memref<82x32xf32, #tpu.memory_space<vmem>>, vector<64x32xf32>
    %c4 = arith.constant 4 : index
    %c0_72 = arith.constant 0 : index
    %c0_73 = arith.constant 0 : index
    %75 = vector.load %arg4[%c4, %c0_72, %c0_73] : memref<9x64x1xf32, #tpu.memory_space<vmem>>, vector<1x64x1xf32>
    %76 = vector.shape_cast %75 : vector<1x64x1xf32> to vector<64x1xf32>
    %77 = vector.broadcast %76 : vector<64x1xf32> to vector<64x32xf32>
    %78 = arith.mulf %74, %77 : vector<64x32xf32>
    %c0_74 = arith.constant 0 : index
    %c128 = arith.constant 128 : index
    %79 = vector.load %arg22[%c0_74, %c128] : memref<64x288xf32, #tpu.memory_space<vmem>>, vector<64x32xf32>
    tpu.vector_store %arg22[%c0_74, %c128], %78 {strides = array<i32>} : memref<64x288xf32, #tpu.memory_space<vmem>>, vector<64x32xf32>,
    %c10 = arith.constant 10 : index
    %c0_75 = arith.constant 0 : index
    %80 = vector.load %arg21[%c10, %c0_75] : memref<82x32xf32, #tpu.memory_space<vmem>>, vector<64x32xf32>
    %c5 = arith.constant 5 : index
    %c0_76 = arith.constant 0 : index
    %c0_77 = arith.constant 0 : index
    %81 = vector.load %arg4[%c5, %c0_76, %c0_77] : memref<9x64x1xf32, #tpu.memory_space<vmem>>, vector<1x64x1xf32>
    %82 = vector.shape_cast %81 : vector<1x64x1xf32> to vector<64x1xf32>
    %83 = vector.broadcast %82 : vector<64x1xf32> to vector<64x32xf32>
    %84 = arith.mulf %80, %83 : vector<64x32xf32>
    %c0_78 = arith.constant 0 : index
    %c160 = arith.constant 160 : index
    %85 = vector.load %arg22[%c0_78, %c160] : memref<64x288xf32, #tpu.memory_space<vmem>>, vector<64x32xf32>
    tpu.vector_store %arg22[%c0_78, %c160], %84 {strides = array<i32>} : memref<64x288xf32, #tpu.memory_space<vmem>>, vector<64x32xf32>,
    %c16_79 = arith.constant 16 : index
    %c0_80 = arith.constant 0 : index
    %86 = vector.load %arg21[%c16_79, %c0_80] : memref<82x32xf32, #tpu.memory_space<vmem>>, vector<64x32xf32>
    %c6 = arith.constant 6 : index
    %c0_81 = arith.constant 0 : index
    %c0_82 = arith.constant 0 : index
    %87 = vector.load %arg4[%c6, %c0_81, %c0_82] : memref<9x64x1xf32, #tpu.memory_space<vmem>>, vector<1x64x1xf32>
    %88 = vector.shape_cast %87 : vector<1x64x1xf32> to vector<64x1xf32>
    %89 = vector.broadcast %88 : vector<64x1xf32> to vector<64x32xf32>
    %90 = arith.mulf %86, %89 : vector<64x32xf32>
    %c0_83 = arith.constant 0 : index
    %c192 = arith.constant 192 : index
    %91 = vector.load %arg22[%c0_83, %c192] : memref<64x288xf32, #tpu.memory_space<vmem>>, vector<64x32xf32>
    tpu.vector_store %arg22[%c0_83, %c192], %90 {strides = array<i32>} : memref<64x288xf32, #tpu.memory_space<vmem>>, vector<64x32xf32>,
    %c17_84 = arith.constant 17 : index
    %c0_85 = arith.constant 0 : index
    %92 = vector.load %arg21[%c17_84, %c0_85] : memref<82x32xf32, #tpu.memory_space<vmem>>, vector<64x32xf32>
    %c7 = arith.constant 7 : index
    %c0_86 = arith.constant 0 : index
    %c0_87 = arith.constant 0 : index
    %93 = vector.load %arg4[%c7, %c0_86, %c0_87] : memref<9x64x1xf32, #tpu.memory_space<vmem>>, vector<1x64x1xf32>
    %94 = vector.shape_cast %93 : vector<1x64x1xf32> to vector<64x1xf32>
    %95 = vector.broadcast %94 : vector<64x1xf32> to vector<64x32xf32>
    %96 = arith.mulf %92, %95 : vector<64x32xf32>
    %c0_88 = arith.constant 0 : index
    %c224 = arith.constant 224 : index
    %97 = vector.load %arg22[%c0_88, %c224] : memref<64x288xf32, #tpu.memory_space<vmem>>, vector<64x32xf32>
    tpu.vector_store %arg22[%c0_88, %c224], %96 {strides = array<i32>} : memref<64x288xf32, #tpu.memory_space<vmem>>, vector<64x32xf32>,
    %c18 = arith.constant 18 : index
    %c0_89 = arith.constant 0 : index
    %98 = vector.load %arg21[%c18, %c0_89] : memref<82x32xf32, #tpu.memory_space<vmem>>, vector<64x32xf32>
    %c8_90 = arith.constant 8 : index
    %c0_91 = arith.constant 0 : index
    %c0_92 = arith.constant 0 : index
    %99 = vector.load %arg4[%c8_90, %c0_91, %c0_92] : memref<9x64x1xf32, #tpu.memory_space<vmem>>, vector<1x64x1xf32>
    %100 = vector.shape_cast %99 : vector<1x64x1xf32> to vector<64x1xf32>
    %101 = vector.broadcast %100 : vector<64x1xf32> to vector<64x32xf32>
    %102 = arith.mulf %98, %101 : vector<64x32xf32>
    %c0_93 = arith.constant 0 : index
    %c256 = arith.constant 256 : index
    %103 = vector.load %arg22[%c0_93, %c256] : memref<64x288xf32, #tpu.memory_space<vmem>>, vector<64x32xf32>
    tpu.vector_store %arg22[%c0_93, %c256], %102 {strides = array<i32>} : memref<64x288xf32, #tpu.memory_space<vmem>>, vector<64x32xf32>,
    %c0_94 = arith.constant 0 : index
    %c0_95 = arith.constant 0 : index
    %104 = vector.load %arg22[%c0_94, %c0_95] : memref<64x288xf32, #tpu.memory_space<vmem>>, vector<64x288xf32>
    %105 = arith.truncf %104 : vector<64x288xf32> to vector<64x288xbf16>
    %c0_96 = arith.constant 0 : index
    %c0_97 = arith.constant 0 : index
    %106 = vector.load %arg5[%c0_96, %c0_97] : memref<288x64xbf16, #tpu.memory_space<vmem>>, vector<288x64xbf16>
    %cst_98 = arith.constant dense<0.000000e+00> : vector<64x64xf32>
    %107 = tpu.matmul %105, %106, %cst_98 {dimension_numbers = #tpu.dot_dimension_numbers<[1], [0], [0], [1], [0, 0, 1, 1], [], []>} : vector<64x288xbf16>, vector<288x64xbf16>, vector<64x64xf32> -> vector<64x64xf32>
    %c0_99 = arith.constant 0 : index
    %c0_100 = arith.constant 0 : index
    %108 = vector.load %arg6[%c0_99, %c0_100] : memref<1x64xf32, #tpu.memory_space<vmem>>, vector<1x64xf32>
    %109 = vector.broadcast %108 : vector<1x64xf32> to vector<64x64xf32>
    %110 = arith.addf %107, %109 : vector<64x64xf32>
    %cst_101 = arith.constant 0.000000e+00 : f32
    %111 = vector.broadcast %cst_101 : f32 to vector<64x64xf32>
    %112 = arith.maximumf %110, %111 : vector<64x64xf32>
    %cst_102 = arith.constant 0.000000e+00 : f32
    %113 = vector.broadcast %cst_102 : f32 to vector<5x64xf32>
    %c0_103 = arith.constant 0 : index
    %c0_104 = arith.constant 0 : index
    %114 = vector.load %arg25[%c0_103, %c0_104] : memref<26x64xf32, #tpu.memory_space<vmem>>, vector<5x64xf32>
    tpu.vector_store %arg25[%c0_103, %c0_104], %113 {strides = array<i32>} : memref<26x64xf32, #tpu.memory_space<vmem>>, vector<5x64xf32>,
    %cst_105 = arith.constant 0.000000e+00 : f32
    %115 = vector.broadcast %cst_105 : f32 to vector<5x64xf32>
    %c21 = arith.constant 21 : index
    %c0_106 = arith.constant 0 : index
    %116 = vector.load %arg25[%c21, %c0_106] : memref<26x64xf32, #tpu.memory_space<vmem>>, vector<5x64xf32>
    tpu.vector_store %arg25[%c21, %c0_106], %115 {strides = array<i32>} : memref<26x64xf32, #tpu.memory_space<vmem>>, vector<5x64xf32>,
    %c0_107 = arith.constant 0 : index
    %c0_108 = arith.constant 0 : index
    %117 = vector.load %arg23[%c0_107, %c0_108] : memref<64x64xf32, #tpu.memory_space<vmem>>, vector<64x64xf32>
    tpu.vector_store %arg23[%c0_107, %c0_108], %112 {strides = array<i32>} : memref<64x64xf32, #tpu.memory_space<vmem>>, vector<64x64xf32>,
    %c0_109 = arith.constant 0 : index
    %c0_110 = arith.constant 0 : index
    %118 = tpu.strided_load %arg23[%c0_109, %c0_110] {strides = array<i32: 2, 1>} : memref<64x64xf32, #tpu.memory_space<vmem>>, vector<32x64xf32>
    %c1_111 = arith.constant 1 : index
    %c0_112 = arith.constant 0 : index
    %119 = tpu.strided_load %arg23[%c1_111, %c0_112] {strides = array<i32: 2, 1>} : memref<64x64xf32, #tpu.memory_space<vmem>>, vector<32x64xf32>
    %120 = arith.maximumf %118, %119 : vector<32x64xf32>
    %c0_113 = arith.constant 0 : index
    %c0_114 = arith.constant 0 : index
    %121 = vector.load %arg24[%c0_113, %c0_114] : memref<32x64xf32, #tpu.memory_space<vmem>>, vector<32x64xf32>
    tpu.vector_store %arg24[%c0_113, %c0_114], %120 {strides = array<i32>} : memref<32x64xf32, #tpu.memory_space<vmem>>, vector<32x64xf32>,
    %c0_115 = arith.constant 0 : index
    %c0_116 = arith.constant 0 : index
    %122 = vector.load %arg24[%c0_115, %c0_116] : memref<32x64xf32, #tpu.memory_space<vmem>>, vector<4x64xf32>
    %c4_117 = arith.constant 4 : index
    %c0_118 = arith.constant 0 : index
    %123 = vector.load %arg24[%c4_117, %c0_118] : memref<32x64xf32, #tpu.memory_space<vmem>>, vector<4x64xf32>
    %124 = arith.maximumf %122, %123 : vector<4x64xf32>
    %c5_119 = arith.constant 5 : index
    %c0_120 = arith.constant 0 : index
    %125 = vector.load %arg25[%c5_119, %c0_120] : memref<26x64xf32, #tpu.memory_space<vmem>>, vector<4x64xf32>
    tpu.vector_store %arg25[%c5_119, %c0_120], %124 {strides = array<i32>} : memref<26x64xf32, #tpu.memory_space<vmem>>, vector<4x64xf32>,
    %c8_121 = arith.constant 8 : index
    %c0_122 = arith.constant 0 : index
    %126 = vector.load %arg24[%c8_121, %c0_122] : memref<32x64xf32, #tpu.memory_space<vmem>>, vector<4x64xf32>
    %c12 = arith.constant 12 : index
    %c0_123 = arith.constant 0 : index
    %127 = vector.load %arg24[%c12, %c0_123] : memref<32x64xf32, #tpu.memory_space<vmem>>, vector<4x64xf32>
    %128 = arith.maximumf %126, %127 : vector<4x64xf32>
    %c9_124 = arith.constant 9 : index
    %c0_125 = arith.constant 0 : index
    %129 = vector.load %arg25[%c9_124, %c0_125] : memref<26x64xf32, #tpu.memory_space<vmem>>, vector<4x64xf32>
    tpu.vector_store %arg25[%c9_124, %c0_125], %128 {strides = array<i32>} : memref<26x64xf32, #tpu.memory_space<vmem>>, vector<4x64xf32>,
    %c16_126 = arith.constant 16 : index
    %c0_127 = arith.constant 0 : index
    %130 = vector.load %arg24[%c16_126, %c0_127] : memref<32x64xf32, #tpu.memory_space<vmem>>, vector<4x64xf32>
    %c20 = arith.constant 20 : index
    %c0_128 = arith.constant 0 : index
    %131 = vector.load %arg24[%c20, %c0_128] : memref<32x64xf32, #tpu.memory_space<vmem>>, vector<4x64xf32>
    %132 = arith.maximumf %130, %131 : vector<4x64xf32>
    %c13 = arith.constant 13 : index
    %c0_129 = arith.constant 0 : index
    %133 = vector.load %arg25[%c13, %c0_129] : memref<26x64xf32, #tpu.memory_space<vmem>>, vector<4x64xf32>
    tpu.vector_store %arg25[%c13, %c0_129], %132 {strides = array<i32>} : memref<26x64xf32, #tpu.memory_space<vmem>>, vector<4x64xf32>,
    %c24_130 = arith.constant 24 : index
    %c0_131 = arith.constant 0 : index
    %134 = vector.load %arg24[%c24_130, %c0_131] : memref<32x64xf32, #tpu.memory_space<vmem>>, vector<4x64xf32>
    %c28 = arith.constant 28 : index
    %c0_132 = arith.constant 0 : index
    %135 = vector.load %arg24[%c28, %c0_132] : memref<32x64xf32, #tpu.memory_space<vmem>>, vector<4x64xf32>
    %136 = arith.maximumf %134, %135 : vector<4x64xf32>
    %c17_133 = arith.constant 17 : index
    %c0_134 = arith.constant 0 : index
    %137 = vector.load %arg25[%c17_133, %c0_134] : memref<26x64xf32, #tpu.memory_space<vmem>>, vector<4x64xf32>
    tpu.vector_store %arg25[%c17_133, %c0_134], %136 {strides = array<i32>} : memref<26x64xf32, #tpu.memory_space<vmem>>, vector<4x64xf32>,
    %c0_135 = arith.constant 0 : index
    %c0_136 = arith.constant 0 : index
    %138 = vector.load %arg25[%c0_135, %c0_136] : memref<26x64xf32, #tpu.memory_space<vmem>>, vector<16x64xf32>
    %c0_137 = arith.constant 0 : index
    %c0_138 = arith.constant 0 : index
    %c0_139 = arith.constant 0 : index
    %139 = vector.load %arg7[%c0_137, %c0_138, %c0_139] : memref<9x16x1xf32, #tpu.memory_space<vmem>>, vector<1x16x1xf32>
    %140 = vector.shape_cast %139 : vector<1x16x1xf32> to vector<16x1xf32>
    %141 = vector.broadcast %140 : vector<16x1xf32> to vector<16x64xf32>
    %142 = arith.mulf %138, %141 : vector<16x64xf32>
    %c0_140 = arith.constant 0 : index
    %c0_141 = arith.constant 0 : index
    %143 = vector.load %arg26[%c0_140, %c0_141] : memref<16x576xf32, #tpu.memory_space<vmem>>, vector<16x64xf32>
    tpu.vector_store %arg26[%c0_140, %c0_141], %142 {strides = array<i32>} : memref<16x576xf32, #tpu.memory_space<vmem>>, vector<16x64xf32>,
    %c1_142 = arith.constant 1 : index
    %c0_143 = arith.constant 0 : index
    %144 = vector.load %arg25[%c1_142, %c0_143] : memref<26x64xf32, #tpu.memory_space<vmem>>, vector<16x64xf32>
    %c1_144 = arith.constant 1 : index
    %c0_145 = arith.constant 0 : index
    %c0_146 = arith.constant 0 : index
    %145 = vector.load %arg7[%c1_144, %c0_145, %c0_146] : memref<9x16x1xf32, #tpu.memory_space<vmem>>, vector<1x16x1xf32>
    %146 = vector.shape_cast %145 : vector<1x16x1xf32> to vector<16x1xf32>
    %147 = vector.broadcast %146 : vector<16x1xf32> to vector<16x64xf32>
    %148 = arith.mulf %144, %147 : vector<16x64xf32>
    %c0_147 = arith.constant 0 : index
    %c64_148 = arith.constant 64 : index
    %149 = vector.load %arg26[%c0_147, %c64_148] : memref<16x576xf32, #tpu.memory_space<vmem>>, vector<16x64xf32>
    tpu.vector_store %arg26[%c0_147, %c64_148], %148 {strides = array<i32>} : memref<16x576xf32, #tpu.memory_space<vmem>>, vector<16x64xf32>,
    %c2_149 = arith.constant 2 : index
    %c0_150 = arith.constant 0 : index
    %150 = vector.load %arg25[%c2_149, %c0_150] : memref<26x64xf32, #tpu.memory_space<vmem>>, vector<16x64xf32>
    %c2_151 = arith.constant 2 : index
    %c0_152 = arith.constant 0 : index
    %c0_153 = arith.constant 0 : index
    %151 = vector.load %arg7[%c2_151, %c0_152, %c0_153] : memref<9x16x1xf32, #tpu.memory_space<vmem>>, vector<1x16x1xf32>
    %152 = vector.shape_cast %151 : vector<1x16x1xf32> to vector<16x1xf32>
    %153 = vector.broadcast %152 : vector<16x1xf32> to vector<16x64xf32>
    %154 = arith.mulf %150, %153 : vector<16x64xf32>
    %c0_154 = arith.constant 0 : index
    %c128_155 = arith.constant 128 : index
    %155 = vector.load %arg26[%c0_154, %c128_155] : memref<16x576xf32, #tpu.memory_space<vmem>>, vector<16x64xf32>
    tpu.vector_store %arg26[%c0_154, %c128_155], %154 {strides = array<i32>} : memref<16x576xf32, #tpu.memory_space<vmem>>, vector<16x64xf32>,
    %c4_156 = arith.constant 4 : index
    %c0_157 = arith.constant 0 : index
    %156 = vector.load %arg25[%c4_156, %c0_157] : memref<26x64xf32, #tpu.memory_space<vmem>>, vector<16x64xf32>
    %c3_158 = arith.constant 3 : index
    %c0_159 = arith.constant 0 : index
    %c0_160 = arith.constant 0 : index
    %157 = vector.load %arg7[%c3_158, %c0_159, %c0_160] : memref<9x16x1xf32, #tpu.memory_space<vmem>>, vector<1x16x1xf32>
    %158 = vector.shape_cast %157 : vector<1x16x1xf32> to vector<16x1xf32>
    %159 = vector.broadcast %158 : vector<16x1xf32> to vector<16x64xf32>
    %160 = arith.mulf %156, %159 : vector<16x64xf32>
    %c0_161 = arith.constant 0 : index
    %c192_162 = arith.constant 192 : index
    %161 = vector.load %arg26[%c0_161, %c192_162] : memref<16x576xf32, #tpu.memory_space<vmem>>, vector<16x64xf32>
    tpu.vector_store %arg26[%c0_161, %c192_162], %160 {strides = array<i32>} : memref<16x576xf32, #tpu.memory_space<vmem>>, vector<16x64xf32>,
    %c5_163 = arith.constant 5 : index
    %c0_164 = arith.constant 0 : index
    %162 = vector.load %arg25[%c5_163, %c0_164] : memref<26x64xf32, #tpu.memory_space<vmem>>, vector<16x64xf32>
    %c4_165 = arith.constant 4 : index
    %c0_166 = arith.constant 0 : index
    %c0_167 = arith.constant 0 : index
    %163 = vector.load %arg7[%c4_165, %c0_166, %c0_167] : memref<9x16x1xf32, #tpu.memory_space<vmem>>, vector<1x16x1xf32>
    %164 = vector.shape_cast %163 : vector<1x16x1xf32> to vector<16x1xf32>
    %165 = vector.broadcast %164 : vector<16x1xf32> to vector<16x64xf32>
    %166 = arith.mulf %162, %165 : vector<16x64xf32>
    %c0_168 = arith.constant 0 : index
    %c256_169 = arith.constant 256 : index
    %167 = vector.load %arg26[%c0_168, %c256_169] : memref<16x576xf32, #tpu.memory_space<vmem>>, vector<16x64xf32>
    tpu.vector_store %arg26[%c0_168, %c256_169], %166 {strides = array<i32>} : memref<16x576xf32, #tpu.memory_space<vmem>>, vector<16x64xf32>,
    %c6_170 = arith.constant 6 : index
    %c0_171 = arith.constant 0 : index
    %168 = vector.load %arg25[%c6_170, %c0_171] : memref<26x64xf32, #tpu.memory_space<vmem>>, vector<16x64xf32>
    %c5_172 = arith.constant 5 : index
    %c0_173 = arith.constant 0 : index
    %c0_174 = arith.constant 0 : index
    %169 = vector.load %arg7[%c5_172, %c0_173, %c0_174] : memref<9x16x1xf32, #tpu.memory_space<vmem>>, vector<1x16x1xf32>
    %170 = vector.shape_cast %169 : vector<1x16x1xf32> to vector<16x1xf32>
    %171 = vector.broadcast %170 : vector<16x1xf32> to vector<16x64xf32>
    %172 = arith.mulf %168, %171 : vector<16x64xf32>
    %c0_175 = arith.constant 0 : index
    %c320 = arith.constant 320 : index
    %173 = vector.load %arg26[%c0_175, %c320] : memref<16x576xf32, #tpu.memory_space<vmem>>, vector<16x64xf32>
    tpu.vector_store %arg26[%c0_175, %c320], %172 {strides = array<i32>} : memref<16x576xf32, #tpu.memory_space<vmem>>, vector<16x64xf32>,
    %c8_176 = arith.constant 8 : index
    %c0_177 = arith.constant 0 : index
    %174 = vector.load %arg25[%c8_176, %c0_177] : memref<26x64xf32, #tpu.memory_space<vmem>>, vector<16x64xf32>
    %c6_178 = arith.constant 6 : index
    %c0_179 = arith.constant 0 : index
    %c0_180 = arith.constant 0 : index
    %175 = vector.load %arg7[%c6_178, %c0_179, %c0_180] : memref<9x16x1xf32, #tpu.memory_space<vmem>>, vector<1x16x1xf32>
    %176 = vector.shape_cast %175 : vector<1x16x1xf32> to vector<16x1xf32>
    %177 = vector.broadcast %176 : vector<16x1xf32> to vector<16x64xf32>
    %178 = arith.mulf %174, %177 : vector<16x64xf32>
    %c0_181 = arith.constant 0 : index
    %c384 = arith.constant 384 : index
    %179 = vector.load %arg26[%c0_181, %c384] : memref<16x576xf32, #tpu.memory_space<vmem>>, vector<16x64xf32>
    tpu.vector_store %arg26[%c0_181, %c384], %178 {strides = array<i32>} : memref<16x576xf32, #tpu.memory_space<vmem>>, vector<16x64xf32>,
    %c9_182 = arith.constant 9 : index
    %c0_183 = arith.constant 0 : index
    %180 = vector.load %arg25[%c9_182, %c0_183] : memref<26x64xf32, #tpu.memory_space<vmem>>, vector<16x64xf32>
    %c7_184 = arith.constant 7 : index
    %c0_185 = arith.constant 0 : index
    %c0_186 = arith.constant 0 : index
    %181 = vector.load %arg7[%c7_184, %c0_185, %c0_186] : memref<9x16x1xf32, #tpu.memory_space<vmem>>, vector<1x16x1xf32>
    %182 = vector.shape_cast %181 : vector<1x16x1xf32> to vector<16x1xf32>
    %183 = vector.broadcast %182 : vector<16x1xf32> to vector<16x64xf32>
    %184 = arith.mulf %180, %183 : vector<16x64xf32>
    %c0_187 = arith.constant 0 : index
    %c448 = arith.constant 448 : index
    %185 = vector.load %arg26[%c0_187, %c448] : memref<16x576xf32, #tpu.memory_space<vmem>>, vector<16x64xf32>
    tpu.vector_store %arg26[%c0_187, %c448], %184 {strides = array<i32>} : memref<16x576xf32, #tpu.memory_space<vmem>>, vector<16x64xf32>,
    %c10_188 = arith.constant 10 : index
    %c0_189 = arith.constant 0 : index
    %186 = vector.load %arg25[%c10_188, %c0_189] : memref<26x64xf32, #tpu.memory_space<vmem>>, vector<16x64xf32>
    %c8_190 = arith.constant 8 : index
    %c0_191 = arith.constant 0 : index
    %c0_192 = arith.constant 0 : index
    %187 = vector.load %arg7[%c8_190, %c0_191, %c0_192] : memref<9x16x1xf32, #tpu.memory_space<vmem>>, vector<1x16x1xf32>
    %188 = vector.shape_cast %187 : vector<1x16x1xf32> to vector<16x1xf32>
    %189 = vector.broadcast %188 : vector<16x1xf32> to vector<16x64xf32>
    %190 = arith.mulf %186, %189 : vector<16x64xf32>
    %c0_193 = arith.constant 0 : index
    %c512 = arith.constant 512 : index
    %191 = vector.load %arg26[%c0_193, %c512] : memref<16x576xf32, #tpu.memory_space<vmem>>, vector<16x64xf32>
    tpu.vector_store %arg26[%c0_193, %c512], %190 {strides = array<i32>} : memref<16x576xf32, #tpu.memory_space<vmem>>, vector<16x64xf32>,
    %c0_194 = arith.constant 0 : index
    %c0_195 = arith.constant 0 : index
    %192 = vector.load %arg26[%c0_194, %c0_195] : memref<16x576xf32, #tpu.memory_space<vmem>>, vector<16x576xf32>
    %193 = arith.truncf %192 : vector<16x576xf32> to vector<16x576xbf16>
    %c0_196 = arith.constant 0 : index
    %c0_197 = arith.constant 0 : index
    %194 = vector.load %arg8[%c0_196, %c0_197] : memref<576x128xbf16, #tpu.memory_space<vmem>>, vector<576x128xbf16>
    %cst_198 = arith.constant dense<0.000000e+00> : vector<16x128xf32>
    %195 = tpu.matmul %193, %194, %cst_198 {dimension_numbers = #tpu.dot_dimension_numbers<[1], [0], [0], [1], [0, 0, 1, 1], [], []>} : vector<16x576xbf16>, vector<576x128xbf16>, vector<16x128xf32> -> vector<16x128xf32>
    %c0_199 = arith.constant 0 : index
    %c0_200 = arith.constant 0 : index
    %196 = vector.load %arg9[%c0_199, %c0_200] : memref<1x128xf32, #tpu.memory_space<vmem>>, vector<1x128xf32>
    %197 = vector.broadcast %196 : vector<1x128xf32> to vector<16x128xf32>
    %198 = arith.addf %195, %197 : vector<16x128xf32>
    %cst_201 = arith.constant 0.000000e+00 : f32
    %199 = vector.broadcast %cst_201 : f32 to vector<16x128xf32>
    %200 = arith.maximumf %198, %199 : vector<16x128xf32>
    %c0_202 = arith.constant 0 : index
    %c0_203 = arith.constant 0 : index
    %201 = vector.load %arg27[%c0_202, %c0_203] : memref<16x128xf32, #tpu.memory_space<vmem>>, vector<16x128xf32>
    tpu.vector_store %arg27[%c0_202, %c0_203], %200 {strides = array<i32>} : memref<16x128xf32, #tpu.memory_space<vmem>>, vector<16x128xf32>,
    %c0_204 = arith.constant 0 : index
    %c0_205 = arith.constant 0 : index
    %202 = tpu.strided_load %arg27[%c0_204, %c0_205] {strides = array<i32: 2, 1>} : memref<16x128xf32, #tpu.memory_space<vmem>>, vector<8x128xf32>
    %c1_206 = arith.constant 1 : index
    %c0_207 = arith.constant 0 : index
    %203 = tpu.strided_load %arg27[%c1_206, %c0_207] {strides = array<i32: 2, 1>} : memref<16x128xf32, #tpu.memory_space<vmem>>, vector<8x128xf32>
    %204 = arith.maximumf %202, %203 : vector<8x128xf32>
    %c0_208 = arith.constant 0 : index
    %c0_209 = arith.constant 0 : index
    %205 = vector.load %arg28[%c0_208, %c0_209] : memref<8x128xf32, #tpu.memory_space<vmem>>, vector<8x128xf32>
    tpu.vector_store %arg28[%c0_208, %c0_209], %204 {strides = array<i32>} : memref<8x128xf32, #tpu.memory_space<vmem>>, vector<8x128xf32>,
    %c0_210 = arith.constant 0 : index
    %c0_211 = arith.constant 0 : index
    %206 = vector.load %arg28[%c0_210, %c0_211] : memref<8x128xf32, #tpu.memory_space<vmem>>, vector<2x128xf32>
    %c2_212 = arith.constant 2 : index
    %c0_213 = arith.constant 0 : index
    %207 = vector.load %arg28[%c2_212, %c0_213] : memref<8x128xf32, #tpu.memory_space<vmem>>, vector<2x128xf32>
    %208 = arith.maximumf %206, %207 : vector<2x128xf32>
    %c0_214 = arith.constant 0 : index
    %c0_215 = arith.constant 0 : index
    %209 = vector.load %arg29[%c0_214, %c0_215] : memref<4x128xf32, #tpu.memory_space<vmem>>, vector<2x128xf32>
    tpu.vector_store %arg29[%c0_214, %c0_215], %208 {strides = array<i32>} : memref<4x128xf32, #tpu.memory_space<vmem>>, vector<2x128xf32>,
    %c4_216 = arith.constant 4 : index
    %c0_217 = arith.constant 0 : index
    %210 = vector.load %arg28[%c4_216, %c0_217] : memref<8x128xf32, #tpu.memory_space<vmem>>, vector<2x128xf32>
    %c6_218 = arith.constant 6 : index
    %c0_219 = arith.constant 0 : index
    %211 = vector.load %arg28[%c6_218, %c0_219] : memref<8x128xf32, #tpu.memory_space<vmem>>, vector<2x128xf32>
    %212 = arith.maximumf %210, %211 : vector<2x128xf32>
    %c2_220 = arith.constant 2 : index
    %c0_221 = arith.constant 0 : index
    %213 = vector.load %arg29[%c2_220, %c0_221] : memref<4x128xf32, #tpu.memory_space<vmem>>, vector<2x128xf32>
    tpu.vector_store %arg29[%c2_220, %c0_221], %212 {strides = array<i32>} : memref<4x128xf32, #tpu.memory_space<vmem>>, vector<2x128xf32>,
    %c0_222 = arith.constant 0 : index
    %c0_223 = arith.constant 0 : index
    %214 = vector.load %arg29[%c0_222, %c0_223] : memref<4x128xf32, #tpu.memory_space<vmem>>, vector<4x128xf32>
    %215 = arith.truncf %214 : vector<4x128xf32> to vector<4x128xbf16>
    %c0_224 = arith.constant 0 : index
    %c0_225 = arith.constant 0 : index
    %216 = vector.load %arg10[%c0_224, %c0_225] : memref<128x64xbf16, #tpu.memory_space<vmem>>, vector<128x64xbf16>
    %cst_226 = arith.constant dense<0.000000e+00> : vector<4x64xf32>
    %217 = tpu.matmul %215, %216, %cst_226 {dimension_numbers = #tpu.dot_dimension_numbers<[1], [0], [0], [1], [0, 0, 1, 1], [], []>} : vector<4x128xbf16>, vector<128x64xbf16>, vector<4x64xf32> -> vector<4x64xf32>
    %c0_227 = arith.constant 0 : index
    %c0_228 = arith.constant 0 : index
    %218 = vector.load %arg11[%c0_227, %c0_228] : memref<1x64xf32, #tpu.memory_space<vmem>>, vector<1x64xf32>
    %219 = vector.broadcast %218 : vector<1x64xf32> to vector<4x64xf32>
    %220 = arith.addf %217, %219 : vector<4x64xf32>
    %cst_229 = arith.constant 0.000000e+00 : f32
    %221 = vector.broadcast %cst_229 : f32 to vector<4x64xf32>
    %222 = arith.maximumf %220, %221 : vector<4x64xf32>
    %c0_230 = arith.constant 0 : index
    %c0_231 = arith.constant 0 : index
    %223 = vector.load %arg12[%c0_230, %c0_231] : memref<1x64xf32, #tpu.memory_space<vmem>>, vector<1x64xf32>
    %224 = vector.broadcast %223 : vector<1x64xf32> to vector<4x64xf32>
    %225 = arith.mulf %222, %224 : vector<4x64xf32>
    %cst_232 = arith.constant dense<0.000000e+00> : vector<4xf32>
    %226 = vector.multi_reduction <add>, %225, %cst_232 [1] : vector<4x64xf32> to vector<4xf32>
    %227 = vector.shape_cast %226 : vector<4xf32> to vector<4x1xf32>
    %c0_233 = arith.constant 0 : index
    %c0_234 = arith.constant 0 : index
    %228 = vector.load %arg13[%c0_233, %c0_234] : memref<1x1xf32, #tpu.memory_space<vmem>>, vector<1x1xf32>
    %229 = vector.broadcast %228 : vector<1x1xf32> to vector<4x1xf32>
    %230 = arith.addf %227, %229 : vector<4x1xf32>
    %c0_235 = arith.constant 0 : index
    %c0_236 = arith.constant 0 : index
    %231 = vector.load %arg30[%c0_235, %c0_236] : memref<4x1xf32, #tpu.memory_space<vmem>>, vector<4x1xf32>
    tpu.vector_store %arg30[%c0_235, %c0_236], %230 {strides = array<i32>} : memref<4x1xf32, #tpu.memory_space<vmem>>, vector<4x1xf32>,
    %c0_237 = arith.constant 0 : index
    %c0_238 = arith.constant 0 : index
    %232 = tpu.strided_load %arg30[%c0_237, %c0_238] {strides = array<i32: 2, 1>} : memref<4x1xf32, #tpu.memory_space<vmem>>, vector<2x1xf32>
    %c1_239 = arith.constant 1 : index
    %c0_240 = arith.constant 0 : index
    %233 = tpu.strided_load %arg30[%c1_239, %c0_240] {strides = array<i32: 2, 1>} : memref<4x1xf32, #tpu.memory_space<vmem>>, vector<2x1xf32>
    %234 = arith.maximumf %232, %233 : vector<2x1xf32>
    %cst_241 = arith.constant 0.000000e+00 : f32
    %235 = vector.broadcast %cst_241 : f32 to vector<2x1xf32>
    %c0_242 = arith.constant 0 : index
    %c0_243 = arith.constant 0 : index
    %236 = tpu.strided_load %arg30[%c0_242, %c0_243] {strides = array<i32: 2, 1>} : memref<4x1xf32, #tpu.memory_space<vmem>>, vector<2x1xf32>
    %237 = arith.subf %236, %234 : vector<2x1xf32>
    %238 = math.exp %237 : vector<2x1xf32>
    %239 = arith.addf %235, %238 : vector<2x1xf32>
    %c1_244 = arith.constant 1 : index
    %c0_245 = arith.constant 0 : index
    %240 = tpu.strided_load %arg30[%c1_244, %c0_245] {strides = array<i32: 2, 1>} : memref<4x1xf32, #tpu.memory_space<vmem>>, vector<2x1xf32>
    %241 = arith.subf %240, %234 : vector<2x1xf32>
    %242 = math.exp %241 : vector<2x1xf32>
    %243 = arith.addf %239, %242 : vector<2x1xf32>
    %244 = math.log %243 : vector<2x1xf32>
    %245 = arith.addf %234, %244 : vector<2x1xf32>
    %c0_246 = arith.constant 0 : index
    %c0_247 = arith.constant 0 : index
    %246 = vector.load %arg31[%c0_246, %c0_247] : memref<2x1xf32, #tpu.memory_space<vmem>>, vector<2x1xf32>
    tpu.vector_store %arg31[%c0_246, %c0_247], %245 {strides = array<i32>} : memref<2x1xf32, #tpu.memory_space<vmem>>, vector<2x1xf32>,
    %c0_248 = arith.constant 0 : index
    %c0_249 = arith.constant 0 : index
    %247 = vector.load %arg30[%c0_248, %c0_249] : memref<4x1xf32, #tpu.memory_space<vmem>>, vector<2x1xf32>
    %c0_250 = arith.constant 0 : index
    %c0_251 = arith.constant 0 : index
    %248 = vector.load %arg31[%c0_250, %c0_251] : memref<2x1xf32, #tpu.memory_space<vmem>>, vector<1x1xf32>
    %249 = vector.broadcast %248 : vector<1x1xf32> to vector<2x1xf32>
    %250 = arith.subf %247, %249 : vector<2x1xf32>
    %251 = math.exp %250 : vector<2x1xf32>
    %c0_252 = arith.constant 0 : index
    %c0_253 = arith.constant 0 : index
    %252 = vector.load %arg29[%c0_252, %c0_253] : memref<4x128xf32, #tpu.memory_space<vmem>>, vector<2x128xf32>
    %253 = vector.broadcast %251 : vector<2x1xf32> to vector<2x128xf32>
    %254 = arith.mulf %252, %253 : vector<2x128xf32>
    %c0_254 = arith.constant 0 : index
    %c0_255 = arith.constant 0 : index
    %255 = vector.load %arg32[%c0_254, %c0_255] : memref<4x128xf32, #tpu.memory_space<vmem>>, vector<2x128xf32>
    tpu.vector_store %arg32[%c0_254, %c0_255], %254 {strides = array<i32>} : memref<4x128xf32, #tpu.memory_space<vmem>>, vector<2x128xf32>,
    %c2_256 = arith.constant 2 : index
    %c0_257 = arith.constant 0 : index
    %256 = vector.load %arg30[%c2_256, %c0_257] : memref<4x1xf32, #tpu.memory_space<vmem>>, vector<2x1xf32>
    %c1_258 = arith.constant 1 : index
    %c0_259 = arith.constant 0 : index
    %257 = vector.load %arg31[%c1_258, %c0_259] : memref<2x1xf32, #tpu.memory_space<vmem>>, vector<1x1xf32>
    %258 = vector.broadcast %257 : vector<1x1xf32> to vector<2x1xf32>
    %259 = arith.subf %256, %258 : vector<2x1xf32>
    %260 = math.exp %259 : vector<2x1xf32>
    %c2_260 = arith.constant 2 : index
    %c0_261 = arith.constant 0 : index
    %261 = vector.load %arg29[%c2_260, %c0_261] : memref<4x128xf32, #tpu.memory_space<vmem>>, vector<2x128xf32>
    %262 = vector.broadcast %260 : vector<2x1xf32> to vector<2x128xf32>
    %263 = arith.mulf %261, %262 : vector<2x128xf32>
    %c2_262 = arith.constant 2 : index
    %c0_263 = arith.constant 0 : index
    %264 = vector.load %arg32[%c2_262, %c0_263] : memref<4x128xf32, #tpu.memory_space<vmem>>, vector<2x128xf32>
    tpu.vector_store %arg32[%c2_262, %c0_263], %263 {strides = array<i32>} : memref<4x128xf32, #tpu.memory_space<vmem>>, vector<2x128xf32>,
    %c0_264 = arith.constant 0 : index
    %c0_265 = arith.constant 0 : index
    %265 = vector.load %arg32[%c0_264, %c0_265] : memref<4x128xf32, #tpu.memory_space<vmem>>, vector<1x128xf32>
    %c0_266 = arith.constant 0 : index
    %c0_267 = arith.constant 0 : index
    %266 = vector.load %arg33[%c0_266, %c0_267] : memref<1x512xf32, #tpu.memory_space<vmem>>, vector<1x128xf32>
    tpu.vector_store %arg33[%c0_266, %c0_267], %265 {strides = array<i32>} : memref<1x512xf32, #tpu.memory_space<vmem>>, vector<1x128xf32>,
    %c1_268 = arith.constant 1 : index
    %c0_269 = arith.constant 0 : index
    %267 = vector.load %arg32[%c1_268, %c0_269] : memref<4x128xf32, #tpu.memory_space<vmem>>, vector<1x128xf32>
    %c0_270 = arith.constant 0 : index
    %c128_271 = arith.constant 128 : index
    %268 = vector.load %arg33[%c0_270, %c128_271] : memref<1x512xf32, #tpu.memory_space<vmem>>, vector<1x128xf32>
    tpu.vector_store %arg33[%c0_270, %c128_271], %267 {strides = array<i32>} : memref<1x512xf32, #tpu.memory_space<vmem>>, vector<1x128xf32>,
    %c2_272 = arith.constant 2 : index
    %c0_273 = arith.constant 0 : index
    %269 = vector.load %arg32[%c2_272, %c0_273] : memref<4x128xf32, #tpu.memory_space<vmem>>, vector<1x128xf32>
    %c0_274 = arith.constant 0 : index
    %c256_275 = arith.constant 256 : index
    %270 = vector.load %arg33[%c0_274, %c256_275] : memref<1x512xf32, #tpu.memory_space<vmem>>, vector<1x128xf32>
    tpu.vector_store %arg33[%c0_274, %c256_275], %269 {strides = array<i32>} : memref<1x512xf32, #tpu.memory_space<vmem>>, vector<1x128xf32>,
    %c3_276 = arith.constant 3 : index
    %c0_277 = arith.constant 0 : index
    %271 = vector.load %arg32[%c3_276, %c0_277] : memref<4x128xf32, #tpu.memory_space<vmem>>, vector<1x128xf32>
    %c0_278 = arith.constant 0 : index
    %c384_279 = arith.constant 384 : index
    %272 = vector.load %arg33[%c0_278, %c384_279] : memref<1x512xf32, #tpu.memory_space<vmem>>, vector<1x128xf32>
    tpu.vector_store %arg33[%c0_278, %c384_279], %271 {strides = array<i32>} : memref<1x512xf32, #tpu.memory_space<vmem>>, vector<1x128xf32>,
    %c0_280 = arith.constant 0 : index
    %c0_281 = arith.constant 0 : index
    %273 = vector.load %arg33[%c0_280, %c0_281] : memref<1x512xf32, #tpu.memory_space<vmem>>, vector<1x512xf32>
    %274 = arith.truncf %273 : vector<1x512xf32> to vector<1x512xbf16>
    %c0_282 = arith.constant 0 : index
    %c0_283 = arith.constant 0 : index
    %275 = vector.load %arg14[%c0_282, %c0_283] : memref<512x256xbf16, #tpu.memory_space<vmem>>, vector<512x256xbf16>
    %cst_284 = arith.constant dense<0.000000e+00> : vector<1x256xf32>
    %276 = tpu.matmul %274, %275, %cst_284 {dimension_numbers = #tpu.dot_dimension_numbers<[1], [0], [0], [1], [0, 0, 1, 1], [], []>} : vector<1x512xbf16>, vector<512x256xbf16>, vector<1x256xf32> -> vector<1x256xf32>
    %c0_285 = arith.constant 0 : index
    %c0_286 = arith.constant 0 : index
    %277 = vector.load %arg15[%c0_285, %c0_286] : memref<1x256xf32, #tpu.memory_space<vmem>>, vector<1x256xf32>
    %278 = arith.addf %276, %277 : vector<1x256xf32>
    %cst_287 = arith.constant 0.000000e+00 : f32
    %279 = vector.broadcast %cst_287 : f32 to vector<1x256xf32>
    %280 = arith.maximumf %278, %279 : vector<1x256xf32>
    %281 = arith.truncf %280 : vector<1x256xf32> to vector<1x256xbf16>
    %c0_288 = arith.constant 0 : index
    %c0_289 = arith.constant 0 : index
    %282 = vector.load %arg16[%c0_288, %c0_289] : memref<256x12xbf16, #tpu.memory_space<vmem>>, vector<256x12xbf16>
    %cst_290 = arith.constant dense<0.000000e+00> : vector<1x12xf32>
    %283 = tpu.matmul %281, %282, %cst_290 {dimension_numbers = #tpu.dot_dimension_numbers<[1], [0], [0], [1], [0, 0, 1, 1], [], []>} : vector<1x256xbf16>, vector<256x12xbf16>, vector<1x12xf32> -> vector<1x12xf32>
    %c0_291 = arith.constant 0 : index
    %c0_292 = arith.constant 0 : index
    %284 = vector.load %arg17[%c0_291, %c0_292] : memref<1x12xf32, #tpu.memory_space<vmem>>, vector<1x12xf32>
    %285 = arith.addf %283, %284 : vector<1x12xf32>
    %cst_293 = arith.constant 0.000000e+00 : f32
    %286 = vector.broadcast %cst_293 : f32 to vector<1x12xf32>
    %287 = arith.subf %286, %285 : vector<1x12xf32>
    %288 = math.exp %287 : vector<1x12xf32>
    %cst_294 = arith.constant 1.000000e+00 : f32
    %289 = vector.broadcast %cst_294 : f32 to vector<1x12xf32>
    %290 = arith.addf %289, %288 : vector<1x12xf32>
    %cst_295 = arith.constant 1.000000e+00 : f32
    %291 = vector.broadcast %cst_295 : f32 to vector<1x12xf32>
    %292 = arith.divf %291, %290 : vector<1x12xf32>
    %c0_296 = arith.constant 0 : index
    %c0_297 = arith.constant 0 : index
    %c0_298 = arith.constant 0 : index
    %293 = vector.load %arg18[%c0_296, %c0_297, %c0_298] : memref<1x1x12xf32, #tpu.memory_space<vmem>>, vector<1x1x12xf32>
    %294 = vector.shape_cast %293 : vector<1x1x12xf32> to vector<1x12xf32>
    %295 = vector.shape_cast %292 : vector<1x12xf32> to vector<1x1x12xf32>
    tpu.vector_store %arg18[%c0_296, %c0_297, %c0_298], %295 {strides = array<i32>} : memref<1x1x12xf32, #tpu.memory_space<vmem>>, vector<1x1x12xf32>,
    return
  }
  func.func @transform_0(%arg0: i32) -> (i32, i32, i32) {
    %c0_i32 = arith.constant 0 : i32
    %c0_i32_0 = arith.constant 0 : i32
    %c0_i32_1 = arith.constant 0 : i32
    return %arg0, %c0_i32, %c0_i32_0 : i32, i32, i32
  }
  func.func @transform_1(%arg0: i32) -> (i32, i32) {
    %c0_i32 = arith.constant 0 : i32
    %c0_i32_0 = arith.constant 0 : i32
    %c0_i32_1 = arith.constant 0 : i32
    return %c0_i32, %c0_i32_0 : i32, i32
  }
  func.func @transform_2(%arg0: i32) -> (i32, i32) {
    %c0_i32 = arith.constant 0 : i32
    %c0_i32_0 = arith.constant 0 : i32
    %c0_i32_1 = arith.constant 0 : i32
    return %c0_i32, %c0_i32_0 : i32, i32
  }
  func.func @transform_3(%arg0: i32) -> (i32, i32, i32) {
    %c0_i32 = arith.constant 0 : i32
    %c0_i32_0 = arith.constant 0 : i32
    %c0_i32_1 = arith.constant 0 : i32
    %c0_i32_2 = arith.constant 0 : i32
    return %c0_i32, %c0_i32_0, %c0_i32_1 : i32, i32, i32
  }
  func.func @transform_4(%arg0: i32) -> (i32, i32) {
    %c0_i32 = arith.constant 0 : i32
    %c0_i32_0 = arith.constant 0 : i32
    %c0_i32_1 = arith.constant 0 : i32
    return %c0_i32, %c0_i32_0 : i32, i32
  }
  func.func @transform_5(%arg0: i32) -> (i32, i32) {
    %c0_i32 = arith.constant 0 : i32
    %c0_i32_0 = arith.constant 0 : i32
    %c0_i32_1 = arith.constant 0 : i32
    return %c0_i32, %c0_i32_0 : i32, i32
  }
  func.func @transform_6(%arg0: i32) -> (i32, i32, i32) {
    %c0_i32 = arith.constant 0 : i32
    %c0_i32_0 = arith.constant 0 : i32
    %c0_i32_1 = arith.constant 0 : i32
    %c0_i32_2 = arith.constant 0 : i32
    return %c0_i32, %c0_i32_0, %c0_i32_1 : i32, i32, i32
  }
  func.func @transform_7(%arg0: i32) -> (i32, i32) {
    %c0_i32 = arith.constant 0 : i32
    %c0_i32_0 = arith.constant 0 : i32
    %c0_i32_1 = arith.constant 0 : i32
    return %c0_i32, %c0_i32_0 : i32, i32
  }
  func.func @transform_8(%arg0: i32) -> (i32, i32) {
    %c0_i32 = arith.constant 0 : i32
    %c0_i32_0 = arith.constant 0 : i32
    %c0_i32_1 = arith.constant 0 : i32
    return %c0_i32, %c0_i32_0 : i32, i32
  }
  func.func @transform_9(%arg0: i32) -> (i32, i32) {
    %c0_i32 = arith.constant 0 : i32
    %c0_i32_0 = arith.constant 0 : i32
    %c0_i32_1 = arith.constant 0 : i32
    return %c0_i32, %c0_i32_0 : i32, i32
  }
  func.func @transform_10(%arg0: i32) -> (i32, i32) {
    %c0_i32 = arith.constant 0 : i32
    %c0_i32_0 = arith.constant 0 : i32
    %c0_i32_1 = arith.constant 0 : i32
    return %c0_i32, %c0_i32_0 : i32, i32
  }
  func.func @transform_11(%arg0: i32) -> (i32, i32) {
    %c0_i32 = arith.constant 0 : i32
    %c0_i32_0 = arith.constant 0 : i32
    %c0_i32_1 = arith.constant 0 : i32
    return %c0_i32, %c0_i32_0 : i32, i32
  }
  func.func @transform_12(%arg0: i32) -> (i32, i32) {
    %c0_i32 = arith.constant 0 : i32
    %c0_i32_0 = arith.constant 0 : i32
    %c0_i32_1 = arith.constant 0 : i32
    return %c0_i32, %c0_i32_0 : i32, i32
  }
  func.func @transform_13(%arg0: i32) -> (i32, i32) {
    %c0_i32 = arith.constant 0 : i32
    %c0_i32_0 = arith.constant 0 : i32
    %c0_i32_1 = arith.constant 0 : i32
    return %c0_i32, %c0_i32_0 : i32, i32
  }
  func.func @transform_14(%arg0: i32) -> (i32, i32) {
    %c0_i32 = arith.constant 0 : i32
    %c0_i32_0 = arith.constant 0 : i32
    %c0_i32_1 = arith.constant 0 : i32
    return %c0_i32, %c0_i32_0 : i32, i32
  }
  func.func @transform_15(%arg0: i32) -> (i32, i32) {
    %c0_i32 = arith.constant 0 : i32
    %c0_i32_0 = arith.constant 0 : i32
    %c0_i32_1 = arith.constant 0 : i32
    return %c0_i32, %c0_i32_0 : i32, i32
  }
  func.func @transform_16(%arg0: i32) -> (i32, i32) {
    %c0_i32 = arith.constant 0 : i32
    %c0_i32_0 = arith.constant 0 : i32
    %c0_i32_1 = arith.constant 0 : i32
    return %c0_i32, %c0_i32_0 : i32, i32
  }
  func.func @transform_17(%arg0: i32) -> (i32, i32, i32) {
    %c0_i32 = arith.constant 0 : i32
    %c0_i32_0 = arith.constant 0 : i32
    %c0_i32_1 = arith.constant 0 : i32
    return %arg0, %c0_i32, %c0_i32_0 : i32, i32, i32
  }
}

</mosaic_0001>

<llo_original>
// kernel: _lambda_.1
$region0: #{_lambda_.1}
  #allocation0 [shape = 'u32[]', space=smem, size = 0x4, offset = 0x4, fixed_abs, tag = 'smem constant byte address 0x4 - core index']
  #allocation1 [shape = 'u32[144,128]{1,0:T(1,128)}', space=vmem, size = 0x12000, scoped, tag = 'internal scratch']
  #allocation2 [shape = 'f32[256,32]{1,0:T(8,128)}', space=vmem, size = 0x20000, scoped, tag = 'scratch operand']
  #allocation3 [shape = 'f32[128,32]{1,0:T(8,128)}', space=vmem, size = 0x10000, scoped, tag = 'scratch operand']
  #allocation4 [shape = 'f32[82,32]{1,0:T(8,128)}', space=vmem, size = 0xb000, scoped, tag = 'scratch operand']
  #allocation5 [shape = 'f32[64,288]{1,0:T(8,128)}', space=vmem, size = 0x18000, scoped, tag = 'scratch operand']
  #allocation6 [shape = 'f32[64,64]{1,0:T(8,128)}', space=vmem, size = 0x8000, scoped, tag = 'scratch operand']
  #allocation7 [shape = 'f32[32,64]{1,0:T(8,128)}', space=vmem, size = 0x4000, scoped, tag = 'scratch operand']
  #allocation8 [shape = 'f32[26,64]{1,0:T(8,128)}', space=vmem, size = 0x4000, scoped, tag = 'scratch operand']
  #allocation9 [shape = 'f32[16,576]{1,0:T(8,128)}', space=vmem, size = 0xa000, scoped, tag = 'scratch operand']
  #allocation10 [shape = 'f32[16,128]{1,0:T(8,128)}', space=vmem, size = 0x2000, scoped, tag = 'scratch operand']
  #allocation11 [shape = 'f32[8,128]{1,0:T(8,128)}', space=vmem, size = 0x1000, scoped, tag = 'scratch operand']
  #allocation12 [shape = 'f32[4,128]{1,0:T(4,128)}', space=vmem, size = 0x800, scoped, tag = 'scratch operand']
  #allocation13 [shape = 'f32[4,1]{1,0:T(4,128)}', space=vmem, size = 0x800, scoped, tag = 'scratch operand']
  #allocation14 [shape = 'f32[2,1]{1,0:T(2,128)}', space=vmem, size = 0x400, scoped, tag = 'scratch operand']
  #allocation15 [shape = 'f32[4,128]{1,0:T(4,128)}', space=vmem, size = 0x800, scoped, tag = 'scratch operand']
  #allocation16 [shape = 'f32[1,512]{1,0:T(1,128)}', space=vmem, size = 0x800, scoped, tag = 'scratch operand']
  #allocation17 [shape = 'f32[1,1]{1,0:T(1,128)S(1)}', space=vmem, size = 0x200, scoped, tag = 'scoped memory for _lambda_.1']
  %s0 = inlined_call_operand.vmem [shape: bf16[2,256,9], index: 0, kind: input, shape index: {}]
  %s1 = inlined_call_operand.vmem [shape: bf16[9,32], index: 1, kind: input, shape index: {}]
  %s2 = inlined_call_operand.vmem [shape: f32[1,32], index: 2, kind: input, shape index: {}]
  %s3 = inlined_call_operand.vmem [shape: f32[9,64,1], index: 3, kind: input, shape index: {}]
  %s4 = inlined_call_operand.vmem [shape: bf16[288,64], index: 4, kind: input, shape index: {}]
  %s5 = inlined_call_operand.vmem [shape: f32[1,64], index: 5, kind: input, shape index: {}]
  %s6 = inlined_call_operand.vmem [shape: f32[9,16,1], index: 6, kind: input, shape index: {}]
  %s7 = inlined_call_operand.vmem [shape: bf16[576,128], index: 7, kind: input, shape index: {}]
  %s8 = inlined_call_operand.vmem [shape: f32[1,128], index: 8, kind: input, shape index: {}]
  %s9 = inlined_call_operand.vmem [shape: bf16[128,64], index: 9, kind: input, shape index: {}]
  %s10 = inlined_call_operand.vmem [shape: f32[1,64], index: 10, kind: input, shape index: {}]
  %s11 = inlined_call_operand.vmem [shape: f32[1,64], index: 11, kind: input, shape index: {}]
  %s12 = inlined_call_operand.<no memory space> [shape: f32[1,1], index: 12, kind: input, shape index: {}]
  %s13 = inlined_call_operand.vmem [shape: bf16[512,256], index: 13, kind: input, shape index: {}]
  %s14 = inlined_call_operand.vmem [shape: f32[1,256], index: 14, kind: input, shape index: {}]
  %s15 = inlined_call_operand.vmem [shape: bf16[256,12], index: 15, kind: input, shape index: {}]
  %s16 = inlined_call_operand.vmem [shape: f32[1,12], index: 16, kind: input, shape index: {}]
  %s17 = inlined_call_operand.hbm [shape: f32[2,1,12], index: 17, kind: output, shape index: {}]
  %s18 = sld [smem:[#allocation0]]
  $region101: #{_lambda_.1} parent=0
    _
  %s20 = ssub.s32 1, %s18
  %s21 = scalar_select 0, %s20, %s18
  %v22 = vstv %s12
  %23 = vst [vmem:[#allocation17] sm:$0x1] %v22
  $region1: #{_lambda_.1} parent=0
    #allocation18 [shape = 'u8[1024]{0}', space=vmem, size = 0x400, scoped, tag = 'output window, operand 0']
    #allocation19 [shape = 's32[2]{0}', space=sflag, size = 0x8, scoped, tag = 'scoped memory for _lambda_.1']
    %24 = vsyncpa [#allocation19], 0
    %s25 = scalar_lea.sflag [#allocation19], 1
    %26 = vsyncpa %s25, 0
    loop: start=0, step=1, limit=4
    $region2: #{_lambda_.1} parent=1 // loop_pre_header
      _
    $region3: #{_lambda_.1} parent=1 // loop_header
      %s28 = sphi 0, %s32
      %p29 = scmp.ge.s32.totalorder %s28, 4
      %s38 = sphi 0, %s40
      %s41 = sphi 0, %s38
      %s42 = sphi 0, %s41
      %s58 = sphi 0, %s42
      %s62 = sphi 0, %s62
      %s64 = sphi 0, %s62
      %s65 = sphi 0, %s64
      %s79 = sphi 0, %s65
      %s83 = sphi 0, %s83
      %s85 = sphi 0, %s83
      %s86 = sphi 0, %s85
      %s100 = sphi 0, %s86
      %s104 = sphi 0, %s104
      %s106 = sphi 0, %s104
      %s107 = sphi 0, %s106
      %s121 = sphi 0, %s107
      %s125 = sphi 0, %s125
      %s127 = sphi 0, %s125
      %s128 = sphi 0, %s127
      %s142 = sphi 0, %s128
      %s146 = sphi 0, %s146
      %s148 = sphi 0, %s146
      %s149 = sphi 0, %s148
      %s163 = sphi 0, %s149
      %s167 = sphi 0, %s167
      %s169 = sphi 0, %s167
      %s170 = sphi 0, %s169
      %s184 = sphi 0, %s170
      %s188 = sphi 0, %s188
      %s190 = sphi 0, %s188
      %s191 = sphi 0, %s190
      %s205 = sphi 0, %s191
      %s209 = sphi 0, %s209
      %s211 = sphi 0, %s209
      %s212 = sphi 0, %s211
      %s226 = sphi 0, %s212
      %s230 = sphi 0, %s230
      %s232 = sphi 0, %s230
      %s233 = sphi 0, %s232
      %s247 = sphi 0, %s233
      %s251 = sphi 0, %s251
      %s253 = sphi 0, %s251
      %s254 = sphi 0, %s253
      %s268 = sphi 0, %s254
      %s272 = sphi 0, %s272
      %s274 = sphi 0, %s272
      %s275 = sphi 0, %s274
      %s289 = sphi 0, %s275
      %s293 = sphi 0, %s293
      %s295 = sphi 0, %s293
      %s296 = sphi 0, %s295
      %s310 = sphi 0, %s296
      %s314 = sphi 0, %s314
      %s316 = sphi 0, %s314
      %s317 = sphi 0, %s316
      %s331 = sphi 0, %s317
      %s335 = sphi 0, %s335
      %s337 = sphi 0, %s335
      %s338 = sphi 0, %s337
      %s352 = sphi 0, %s338
      %s356 = sphi 0, %s356
      %s358 = sphi 0, %s356
      %s359 = sphi 0, %s358
      %s373 = sphi 0, %s359
      %s377 = sphi 0, %s377
      %s379 = sphi 0, %s377
      %s380 = sphi 0, %s379
      %s394 = sphi 0, %s380
      %s400 = sphi 0, %s402
      %s403 = sphi 0, %s400
      %s404 = sphi 0, %s403
      %s420 = sphi 0, %s404
    $region4: #{_lambda_.1} parent=1 // loop_header_branch
      %31 = sbr.rel (%p29) target = $region8
    $region5: #{_lambda_.1} parent=1 // loop_body
      %s33 = ssub.s32 %s28, 1
      %s34 = ssub.s32 %s28, 2
      %s35 = sadd.s32 %s28, 1
      %s36 = ssub.s32 %s28, %s35
      %p37 = scmp.eq.s32.totalorder %s36, 0
      %s39 = sadd.s32 %s38, 1
      %s40 = scalar_select %p37, %s38, %s39
      %p43 = pneg %p37
      %p44 = scmp.eq.s32.totalorder %s28, 1
      %p45 = por %p43, %p44
      %p46 = scmp.ne.s32.totalorder %s38, %s41
      %p47 = scmp.eq.s32.totalorder %s28, 0
      %p48 = por %p46, %p47
      %p49 = scmp.ne.s32.totalorder %s38, %s41
      %p50 = scmp.eq.s32.totalorder %s33, 1
      %p51 = por %p49, %p50
      %p52 = scmp.ne.s32.totalorder %s41, %s42
      %p53 = scmp.eq.s32.totalorder %s33, 0
      %p54 = por %p52, %p53
      %p55 = scmp.ne.s32.totalorder %s41, %s42
      %p56 = scmp.eq.s32.totalorder %s34, 1
      %p57 = por %p55, %p56
      %p59 = scmp.ne.s32.totalorder %s42, %s58
      %p60 = scmp.eq.s32.totalorder %s34, 0
      %p61 = por %p59, %p60
      %s63 = sadd.s32 %s62, 1
      %p66 = scmp.eq.s32.totalorder %s28, 1
      %p67 = scmp.ne.s32.totalorder %s62, %s64
      %p68 = scmp.eq.s32.totalorder %s28, 0
      %p69 = por %p67, %p68
      %p70 = scmp.ne.s32.totalorder %s62, %s64
      %p71 = scmp.eq.s32.totalorder %s33, 1
      %p72 = por %p70, %p71
      %p73 = scmp.ne.s32.totalorder %s64, %s65
      %p74 = scmp.eq.s32.totalorder %s33, 0
      %p75 = por %p73, %p74
      %p76 = scmp.ne.s32.totalorder %s64, %s65
      %p77 = scmp.eq.s32.totalorder %s34, 1
      %p78 = por %p76, %p77
      %p80 = scmp.ne.s32.totalorder %s65, %s79
      %p81 = scmp.eq.s32.totalorder %s34, 0
      %p82 = por %p80, %p81
      %s84 = sadd.s32 %s83, 1
      %p87 = scmp.eq.s32.totalorder %s28, 1
      %p88 = scmp.ne.s32.totalorder %s83, %s85
      %p89 = scmp.eq.s32.totalorder %s28, 0
      %p90 = por %p88, %p89
      %p91 = scmp.ne.s32.totalorder %s83, %s85
      %p92 = scmp.eq.s32.totalorder %s33, 1
      %p93 = por %p91, %p92
      %p94 = scmp.ne.s32.totalorder %s85, %s86
      %p95 = scmp.eq.s32.totalorder %s33, 0
      %p96 = por %p94, %p95
      %p97 = scmp.ne.s32.totalorder %s85, %s86
      %p98 = scmp.eq.s32.totalorder %s34, 1
      %p99 = por %p97, %p98
      %p101 = scmp.ne.s32.totalorder %s86, %s100
      %p102 = scmp.eq.s32.totalorder %s34, 0
      %p103 = por %p101, %p102
      %s105 = sadd.s32 %s104, 1
      %p108 = scmp.eq.s32.totalorder %s28, 1
      %p109 = scmp.ne.s32.totalorder %s104, %s106
      %p110 = scmp.eq.s32.totalorder %s28, 0
      %p111 = por %p109, %p110
      %p112 = scmp.ne.s32.totalorder %s104, %s106
      %p113 = scmp.eq.s32.totalorder %s33, 1
      %p114 = por %p112, %p113
      %p115 = scmp.ne.s32.totalorder %s106, %s107
      %p116 = scmp.eq.s32.totalorder %s33, 0
      %p117 = por %p115, %p116
      %p118 = scmp.ne.s32.totalorder %s106, %s107
      %p119 = scmp.eq.s32.totalorder %s34, 1
      %p120 = por %p118, %p119
      %p122 = scmp.ne.s32.totalorder %s107, %s121
      %p123 = scmp.eq.s32.totalorder %s34, 0
      %p124 = por %p122, %p123
      %s126 = sadd.s32 %s125, 1
      %p129 = scmp.eq.s32.totalorder %s28, 1
      %p130 = scmp.ne.s32.totalorder %s125, %s127
      %p131 = scmp.eq.s32.totalorder %s28, 0
      %p132 = por %p130, %p131
      %p133 = scmp.ne.s32.totalorder %s125, %s127
      %p134 = scmp.eq.s32.totalorder %s33, 1
      %p135 = por %p133, %p134
      %p136 = scmp.ne.s32.totalorder %s127, %s128
      %p137 = scmp.eq.s32.totalorder %s33, 0
      %p138 = por %p136, %p137
      %p139 = scmp.ne.s32.totalorder %s127, %s128
      %p140 = scmp.eq.s32.totalorder %s34, 1
      %p141 = por %p139, %p140
      %p143 = scmp.ne.s32.totalorder %s128, %s142
      %p144 = scmp.eq.s32.totalorder %s34, 0
      %p145 = por %p143, %p144
      %s147 = sadd.s32 %s146, 1
      %p150 = scmp.eq.s32.totalorder %s28, 1
      %p151 = scmp.ne.s32.totalorder %s146, %s148
      %p152 = scmp.eq.s32.totalorder %s28, 0
      %p153 = por %p151, %p152
      %p154 = scmp.ne.s32.totalorder %s146, %s148
      %p155 = scmp.eq.s32.totalorder %s33, 1
      %p156 = por %p154, %p155
      %p157 = scmp.ne.s32.totalorder %s148, %s149
      %p158 = scmp.eq.s32.totalorder %s33, 0
      %p159 = por %p157, %p158
      %p160 = scmp.ne.s32.totalorder %s148, %s149
      %p161 = scmp.eq.s32.totalorder %s34, 1
      %p162 = por %p160, %p161
      %p164 = scmp.ne.s32.totalorder %s149, %s163
      %p165 = scmp.eq.s32.totalorder %s34, 0
      %p166 = por %p164, %p165
      %s168 = sadd.s32 %s167, 1
      %p171 = scmp.eq.s32.totalorder %s28, 1
      %p172 = scmp.ne.s32.totalorder %s167, %s169
      %p173 = scmp.eq.s32.totalorder %s28, 0
      %p174 = por %p172, %p173
      %p175 = scmp.ne.s32.totalorder %s167, %s169
      %p176 = scmp.eq.s32.totalorder %s33, 1
      %p177 = por %p175, %p176
      %p178 = scmp.ne.s32.totalorder %s169, %s170
      %p179 = scmp.eq.s32.totalorder %s33, 0
      %p180 = por %p178, %p179
      %p181 = scmp.ne.s32.totalorder %s169, %s170
      %p182 = scmp.eq.s32.totalorder %s34, 1
      %p183 = por %p181, %p182
      %p185 = scmp.ne.s32.totalorder %s170, %s184
      %p186 = scmp.eq.s32.totalorder %s34, 0
      %p187 = por %p185, %p186
      %s189 = sadd.s32 %s188, 1
      %p192 = scmp.eq.s32.totalorder %s28, 1
      %p193 = scmp.ne.s32.totalorder %s188, %s190
      %p194 = scmp.eq.s32.totalorder %s28, 0
      %p195 = por %p193, %p194
      %p196 = scmp.ne.s32.totalorder %s188, %s190
      %p197 = scmp.eq.s32.totalorder %s33, 1
      %p198 = por %p196, %p197
      %p199 = scmp.ne.s32.totalorder %s190, %s191
      %p200 = scmp.eq.s32.totalorder %s33, 0
      %p201 = por %p199, %p200
      %p202 = scmp.ne.s32.totalorder %s190, %s191
      %p203 = scmp.eq.s32.totalorder %s34, 1
      %p204 = por %p202, %p203
      %p206 = scmp.ne.s32.totalorder %s191, %s205
      %p207 = scmp.eq.s32.totalorder %s34, 0
      %p208 = por %p206, %p207
      %s210 = sadd.s32 %s209, 1
      %p213 = scmp.eq.s32.totalorder %s28, 1
      %p214 = scmp.ne.s32.totalorder %s209, %s211
      %p215 = scmp.eq.s32.totalorder %s28, 0
      %p216 = por %p214, %p215
      %p217 = scmp.ne.s32.totalorder %s209, %s211
      %p218 = scmp.eq.s32.totalorder %s33, 1
      %p219 = por %p217, %p218
      %p220 = scmp.ne.s32.totalorder %s211, %s212
      %p221 = scmp.eq.s32.totalorder %s33, 0
      %p222 = por %p220, %p221
      %p223 = scmp.ne.s32.totalorder %s211, %s212
      %p224 = scmp.eq.s32.totalorder %s34, 1
      %p225 = por %p223, %p224
      %p227 = scmp.ne.s32.totalorder %s212, %s226
      %p228 = scmp.eq.s32.totalorder %s34, 0
      %p229 = por %p227, %p228
      %s231 = sadd.s32 %s230, 1
      %p234 = scmp.eq.s32.totalorder %s28, 1
      %p235 = scmp.ne.s32.totalorder %s230, %s232
      %p236 = scmp.eq.s32.totalorder %s28, 0
      %p237 = por %p235, %p236
      %p238 = scmp.ne.s32.totalorder %s230, %s232
      %p239 = scmp.eq.s32.totalorder %s33, 1
      %p240 = por %p238, %p239
      %p241 = scmp.ne.s32.totalorder %s232, %s233
      %p242 = scmp.eq.s32.totalorder %s33, 0
      %p243 = por %p241, %p242
      %p244 = scmp.ne.s32.totalorder %s232, %s233
      %p245 = scmp.eq.s32.totalorder %s34, 1
      %p246 = por %p244, %p245
      %p248 = scmp.ne.s32.totalorder %s233, %s247
      %p249 = scmp.eq.s32.totalorder %s34, 0
      %p250 = por %p248, %p249
      %s252 = sadd.s32 %s251, 1
      %p255 = scmp.eq.s32.totalorder %s28, 1
      %p256 = scmp.ne.s32.totalorder %s251, %s253
      %p257 = scmp.eq.s32.totalorder %s28, 0
      %p258 = por %p256, %p257
      %p259 = scmp.ne.s32.totalorder %s251, %s253
      %p260 = scmp.eq.s32.totalorder %s33, 1
      %p261 = por %p259, %p260
      %p262 = scmp.ne.s32.totalorder %s253, %s254
      %p263 = scmp.eq.s32.totalorder %s33, 0
      %p264 = por %p262, %p263
      %p265 = scmp.ne.s32.totalorder %s253, %s254
      %p266 = scmp.eq.s32.totalorder %s34, 1
      %p267 = por %p265, %p266
      %p269 = scmp.ne.s32.totalorder %s254, %s268
      %p270 = scmp.eq.s32.totalorder %s34, 0
      %p271 = por %p269, %p270
      %s273 = sadd.s32 %s272, 1
      %p276 = scmp.eq.s32.totalorder %s28, 1
      %p277 = scmp.ne.s32.totalorder %s272, %s274
      %p278 = scmp.eq.s32.totalorder %s28, 0
      %p279 = por %p277, %p278
      %p280 = scmp.ne.s32.totalorder %s272, %s274
      %p281 = scmp.eq.s32.totalorder %s33, 1
      %p282 = por %p280, %p281
      %p283 = scmp.ne.s32.totalorder %s274, %s275
      %p284 = scmp.eq.s32.totalorder %s33, 0
      %p285 = por %p283, %p284
      %p286 = scmp.ne.s32.totalorder %s274, %s275
      %p287 = scmp.eq.s32.totalorder %s34, 1
      %p288 = por %p286, %p287
      %p290 = scmp.ne.s32.totalorder %s275, %s289
      %p291 = scmp.eq.s32.totalorder %s34, 0
      %p292 = por %p290, %p291
      %s294 = sadd.s32 %s293, 1
      %p297 = scmp.eq.s32.totalorder %s28, 1
      %p298 = scmp.ne.s32.totalorder %s293, %s295
      %p299 = scmp.eq.s32.totalorder %s28, 0
      %p300 = por %p298, %p299
      %p301 = scmp.ne.s32.totalorder %s293, %s295
      %p302 = scmp.eq.s32.totalorder %s33, 1
      %p303 = por %p301, %p302
      %p304 = scmp.ne.s32.totalorder %s295, %s296
      %p305 = scmp.eq.s32.totalorder %s33, 0
      %p306 = por %p304, %p305
      %p307 = scmp.ne.s32.totalorder %s295, %s296
      %p308 = scmp.eq.s32.totalorder %s34, 1
      %p309 = por %p307, %p308
      %p311 = scmp.ne.s32.totalorder %s296, %s310
      %p312 = scmp.eq.s32.totalorder %s34, 0
      %p313 = por %p311, %p312
      %s315 = sadd.s32 %s314, 1
      %p318 = scmp.eq.s32.totalorder %s28, 1
      %p319 = scmp.ne.s32.totalorder %s314, %s316
      %p320 = scmp.eq.s32.totalorder %s28, 0
      %p321 = por %p319, %p320
      %p322 = scmp.ne.s32.totalorder %s314, %s316
      %p323 = scmp.eq.s32.totalorder %s33, 1
      %p324 = por %p322, %p323
      %p325 = scmp.ne.s32.totalorder %s316, %s317
      %p326 = scmp.eq.s32.totalorder %s33, 0
      %p327 = por %p325, %p326
      %p328 = scmp.ne.s32.totalorder %s316, %s317
      %p329 = scmp.eq.s32.totalorder %s34, 1
      %p330 = por %p328, %p329
      %p332 = scmp.ne.s32.totalorder %s317, %s331
      %p333 = scmp.eq.s32.totalorder %s34, 0
      %p334 = por %p332, %p333
      %s336 = sadd.s32 %s335, 1
      %p339 = scmp.eq.s32.totalorder %s28, 1
      %p340 = scmp.ne.s32.totalorder %s335, %s337
      %p341 = scmp.eq.s32.totalorder %s28, 0
      %p342 = por %p340, %p341
      %p343 = scmp.ne.s32.totalorder %s335, %s337
      %p344 = scmp.eq.s32.totalorder %s33, 1
      %p345 = por %p343, %p344
      %p346 = scmp.ne.s32.totalorder %s337, %s338
      %p347 = scmp.eq.s32.totalorder %s33, 0
      %p348 = por %p346, %p347
      %p349 = scmp.ne.s32.totalorder %s337, %s338
      %p350 = scmp.eq.s32.totalorder %s34, 1
      %p351 = por %p349, %p350
      %p353 = scmp.ne.s32.totalorder %s338, %s352
      %p354 = scmp.eq.s32.totalorder %s34, 0
      %p355 = por %p353, %p354
      %s357 = sadd.s32 %s356, 1
      %p360 = scmp.eq.s32.totalorder %s28, 1
      %p361 = scmp.ne.s32.totalorder %s356, %s358
      %p362 = scmp.eq.s32.totalorder %s28, 0
      %p363 = por %p361, %p362
      %p364 = scmp.ne.s32.totalorder %s356, %s358
      %p365 = scmp.eq.s32.totalorder %s33, 1
      %p366 = por %p364, %p365
      %p367 = scmp.ne.s32.totalorder %s358, %s359
      %p368 = scmp.eq.s32.totalorder %s33, 0
      %p369 = por %p367, %p368
      %p370 = scmp.ne.s32.totalorder %s358, %s359
      %p371 = scmp.eq.s32.totalorder %s34, 1
      %p372 = por %p370, %p371
      %p374 = scmp.ne.s32.totalorder %s359, %s373
      %p375 = scmp.eq.s32.totalorder %s34, 0
      %p376 = por %p374, %p375
      %s378 = sadd.s32 %s377, 1
      %p381 = scmp.eq.s32.totalorder %s28, 1
      %p382 = scmp.ne.s32.totalorder %s377, %s379
      %p383 = scmp.eq.s32.totalorder %s28, 0
      %p384 = por %p382, %p383
      %p385 = scmp.ne.s32.totalorder %s377, %s379
      %p386 = scmp.eq.s32.totalorder %s33, 1
      %p387 = por %p385, %p386
      %p388 = scmp.ne.s32.totalorder %s379, %s380
      %p389 = scmp.eq.s32.totalorder %s33, 0
      %p390 = por %p388, %p389
      %p391 = scmp.ne.s32.totalorder %s379, %s380
      %p392 = scmp.eq.s32.totalorder %s34, 1
      %p393 = por %p391, %p392
      %p395 = scmp.ne.s32.totalorder %s380, %s394
      %p396 = scmp.eq.s32.totalorder %s34, 0
      %p397 = por %p395, %p396
      %s398 = ssub.s32 %s28, %s35
      %p399 = scmp.eq.s32.totalorder %s398, 0
      %s401 = sadd.s32 %s400, 1
      %s402 = scalar_select %p399, %s400, %s401
      %p405 = pneg %p399
      %p406 = scmp.eq.s32.totalorder %s28, 1
      %p407 = por %p405, %p406
      %p408 = scmp.ne.s32.totalorder %s400, %s403
      %p409 = scmp.eq.s32.totalorder %s28, 0
      %p410 = por %p408, %p409
      %p411 = scmp.ne.s32.totalorder %s400, %s403
      %p412 = scmp.eq.s32.totalorder %s33, 1
      %p413 = por %p411, %p412
      %p414 = scmp.ne.s32.totalorder %s403, %s404
      %p415 = scmp.eq.s32.totalorder %s33, 0
      %p416 = por %p414, %p415
      %p417 = scmp.ne.s32.totalorder %s403, %s404
      %p418 = scmp.eq.s32.totalorder %s34, 1
      %p419 = por %p417, %p418
      %p421 = scmp.ne.s32.totalorder %s404, %s420
      %p422 = scmp.eq.s32.totalorder %s34, 0
      %p423 = por %p421, %p422
      %p424 = scmp.le.s32.totalorder 1, %s28
      %p425 = scmp.lt.s32.totalorder %s28, 3
      %p426 = pnand %p424, %p425
      %p427 = pneg %p426
      // Predicated region
      $region9: #{_lambda_.1} parent=5 // pred_check
        _
      $region10: #{_lambda_.1} parent=5 // pred_check_branch
        %429 = sbr.rel (%p426) target = $region12
      $region11: #{_lambda_.1} parent=5 // pred_region
        %s430 = ssub.s32 %s28, 1
        // Predicated region
        $region13: #{_lambda_.1} parent=11 // pred_check
          %p431 = pneg %p75
        $region14: #{_lambda_.1} parent=11 // pred_check_branch
          %433 = sbr.rel (%p431) target = $region16
        $region15: #{_lambda_.1} parent=11 // pred_region
          _
        $region16: #{_lambda_.1} parent=11 // pred_fallthru
          _
        // Predicated region
        $region17: #{_lambda_.1} parent=11 // pred_check
          %p434 = pneg %p96
        $region18: #{_lambda_.1} parent=11 // pred_check_branch
          %436 = sbr.rel (%p434) target = $region20
        $region19: #{_lambda_.1} parent=11 // pred_region
          _
        $region20: #{_lambda_.1} parent=11 // pred_fallthru
          _
        // Predicated region
        $region21: #{_lambda_.1} parent=11 // pred_check
          %p437 = pneg %p117
        $region22: #{_lambda_.1} parent=11 // pred_check_branch
          %439 = sbr.rel (%p437) target = $region24
        $region23: #{_lambda_.1} parent=11 // pred_region
          _
        $region24: #{_lambda_.1} parent=11 // pred_fallthru
          _
        // Predicated region
        $region25: #{_lambda_.1} parent=11 // pred_check
          %p440 = pneg %p138
        $region26: #{_lambda_.1} parent=11 // pred_check_branch
          %442 = sbr.rel (%p440) target = $region28
        $region27: #{_lambda_.1} parent=11 // pred_region
          _
        $region28: #{_lambda_.1} parent=11 // pred_fallthru
          _
        // Predicated region
        $region29: #{_lambda_.1} parent=11 // pred_check
          %p443 = pneg %p159
        $region30: #{_lambda_.1} parent=11 // pred_check_branch
          %445 = sbr.rel (%p443) target = $region32
        $region31: #{_lambda_.1} parent=11 // pred_region
          _
        $region32: #{_lambda_.1} parent=11 // pred_fallthru
          _
        // Predicated region
        $region33: #{_lambda_.1} parent=11 // pred_check
          %p446 = pneg %p180
        $region34: #{_lambda_.1} parent=11 // pred_check_branch
          %448 = sbr.rel (%p446) target = $region36
        $region35: #{_lambda_.1} parent=11 // pred_region
          _
        $region36: #{_lambda_.1} parent=11 // pred_fallthru
          _
        // Predicated region
        $region37: #{_lambda_.1} parent=11 // pred_check
          %p449 = pneg %p201
        $region38: #{_lambda_.1} parent=11 // pred_check_branch
          %451 = sbr.rel (%p449) target = $region40
        $region39: #{_lambda_.1} parent=11 // pred_region
          _
        $region40: #{_lambda_.1} parent=11 // pred_fallthru
          _
        // Predicated region
        $region41: #{_lambda_.1} parent=11 // pred_check
          %p452 = pneg %p222
        $region42: #{_lambda_.1} parent=11 // pred_check_branch
          %454 = sbr.rel (%p452) target = $region44
        $region43: #{_lambda_.1} parent=11 // pred_region
          _
        $region44: #{_lambda_.1} parent=11 // pred_fallthru
          _
        // Predicated region
        $region45: #{_lambda_.1} parent=11 // pred_check
          %p455 = pneg %p243
        $region46: #{_lambda_.1} parent=11 // pred_check_branch
          %457 = sbr.rel (%p455) target = $region48
        $region47: #{_lambda_.1} parent=11 // pred_region
          _
        $region48: #{_lambda_.1} parent=11 // pred_fallthru
          _
        // Predicated region
        $region49: #{_lambda_.1} parent=11 // pred_check
          %p458 = pneg %p264
        $region50: #{_lambda_.1} parent=11 // pred_check_branch
          %460 = sbr.rel (%p458) target = $region52
        $region51: #{_lambda_.1} parent=11 // pred_region
          _
        $region52: #{_lambda_.1} parent=11 // pred_fallthru
          _
        // Predicated region
        $region53: #{_lambda_.1} parent=11 // pred_check
          %p461 = pneg %p285
        $region54: #{_lambda_.1} parent=11 // pred_check_branch
          %463 = sbr.rel (%p461) target = $region56
        $region55: #{_lambda_.1} parent=11 // pred_region
          _
        $region56: #{_lambda_.1} parent=11 // pred_fallthru
          _
        // Predicated region
        $region57: #{_lambda_.1} parent=11 // pred_check
          %p464 = pneg %p306
        $region58: #{_lambda_.1} parent=11 // pred_check_branch
          %466 = sbr.rel (%p464) target = $region60
        $region59: #{_lambda_.1} parent=11 // pred_region
          _
        $region60: #{_lambda_.1} parent=11 // pred_fallthru
          _
        // Predicated region
        $region61: #{_lambda_.1} parent=11 // pred_check
          %p467 = pneg %p327
        $region62: #{_lambda_.1} parent=11 // pred_check_branch
          %469 = sbr.rel (%p467) target = $region64
        $region63: #{_lambda_.1} parent=11 // pred_region
          _
        $region64: #{_lambda_.1} parent=11 // pred_fallthru
          _
        // Predicated region
        $region65: #{_lambda_.1} parent=11 // pred_check
          %p470 = pneg %p348
        $region66: #{_lambda_.1} parent=11 // pred_check_branch
          %472 = sbr.rel (%p470) target = $region68
        $region67: #{_lambda_.1} parent=11 // pred_region
          _
        $region68: #{_lambda_.1} parent=11 // pred_fallthru
          _
        // Predicated region
        $region69: #{_lambda_.1} parent=11 // pred_check
          %p473 = pneg %p369
        $region70: #{_lambda_.1} parent=11 // pred_check_branch
          %475 = sbr.rel (%p473) target = $region72
        $region71: #{_lambda_.1} parent=11 // pred_region
          _
        $region72: #{_lambda_.1} parent=11 // pred_fallthru
          _
        // Predicated region
        $region73: #{_lambda_.1} parent=11 // pred_check
          %p476 = pneg %p390
        $region74: #{_lambda_.1} parent=11 // pred_check_branch
          %478 = sbr.rel (%p476) target = $region76
        $region75: #{_lambda_.1} parent=11 // pred_region
          _
        $region76: #{_lambda_.1} parent=11 // pred_fallthru
          _
      $region12: #{_lambda_.1} parent=5 // pred_fallthru
        _
      %p479 = scmp.lt.s32.totalorder %s28, 2
      // Predicated region
      $region77: #{_lambda_.1} parent=5 // pred_check
        %p480 = pneg %p479
      $region78: #{_lambda_.1} parent=5 // pred_check_branch
        %482 = sbr.rel (%p480) target = $region80
      $region79: #{_lambda_.1} parent=5 // pred_region
        // Predicated region
        $region81: #{_lambda_.1} parent=79 // pred_check
          %p483 = pneg %p48
        $region82: #{_lambda_.1} parent=79 // pred_check_branch
          %485 = sbr.rel (%p483) target = $region84
        $region83: #{_lambda_.1} parent=79 // pred_region
          %p486 = scmp.lt.s32.totalorder %s28, 1
          %s487 = scalar_select %p486, %s28, 1
          %s488 = smul.addr %s487, 32
          %s489 = smul.addr %s488, 4
          %s490 = scalar_lea.vmem %s0, %s489
        $region84: #{_lambda_.1} parent=79 // pred_fallthru
          _
      $region80: #{_lambda_.1} parent=5 // pred_fallthru
        _
      %p491 = scmp.le.s32.totalorder 1, %s28
      %p492 = scmp.lt.s32.totalorder %s28, 3
      %p493 = pnand %p491, %p492
      %p494 = pneg %p493
      // Predicated region
      $region85: #{_lambda_.1} parent=5 // pred_check
        _
      $region86: #{_lambda_.1} parent=5 // pred_check_branch
        %496 = sbr.rel (%p493) target = $region88
      $region87: #{_lambda_.1} parent=5 // pred_region
        %s497 = ssub.s32 %s28, 1
        %p498 = scmp.lt.s32.totalorder %s33, 1
        %s499 = scalar_select %p498, %s33, 1
        %s500 = smul.addr %s499, 32
        %s501 = smul.addr %s500, 4
        %s502 = scalar_lea.vmem %s0, %s501
        %p503 = pneg %p54
        %p504 = pneg %p51
        %p505 = pneg %p75
        %p506 = pneg %p72
        %p507 = pneg %p96
        %p508 = pneg %p93
        %p509 = pneg %p117
        %p510 = pneg %p114
        %p511 = pneg %p138
        %p512 = pneg %p135
        %p513 = pneg %p159
        %p514 = pneg %p156
        %p515 = pneg %p180
        %p516 = pneg %p177
        %p517 = pneg %p201
        %p518 = pneg %p198
        %p519 = pneg %p222
        %p520 = pneg %p219
        %p521 = pneg %p243
        %p522 = pneg %p240
        %p523 = pneg %p264
        %p524 = pneg %p261
        %p525 = pneg %p285
        %p526 = pneg %p282
        %p527 = pneg %p306
        %p528 = pneg %p303
        %p529 = pneg %p327
        %p530 = pneg %p324
        %p531 = pneg %p348
        %p532 = pneg %p345
        %p533 = pneg %p369
        %p534 = pneg %p366
        %p535 = pneg %p390
        %p536 = pneg %p387
        %p537 = pneg %p416
        %p538 = pneg %p413
        %s539 = sand.u32 %s403, 1
        %s540 = scalar_lea.sflag [#allocation19], %s539
        %s541 = sand.u32 %s403, 1
        %s542 = scalar_lea.vmem [#allocation18], %s541
        %p543 = scmp.lt.s32.totalorder %s33, 1
        %s544 = scalar_select %p543, %s33, 1
        %s545 = smul.addr %s544, 32
        %s546 = smul.addr %s545, 4
        %s547 = scalar_lea.vmem %s0, %s546
        %v549 = vld [vmem:[%s547] sm:$0xf]
        %v550 = vld [vmem:[%s547 + $0x4] sm:$0xf]
        %v551 = vld [vmem:[%s547 + $0x8] sm:$0xf]
        %v552 = vld [vmem:[%s547 + $0xc] sm:$0xf]
        %v553 = vld [vmem:[%s547 + $0x10] sm:$0xf]
        %v554 = vld [vmem:[%s547 + $0x14] sm:$0xf]
        %v555 = vld [vmem:[%s547 + $0x18] sm:$0xf]
        %v556 = vld [vmem:[%s547 + $0x1c] sm:$0xf]
        %v557 = vld [vmem:[%s547 + $0x20] sm:$0xf]
        %v558 = vld [vmem:[%s547 + $0x24] sm:$0xf]
        %v559 = vld [vmem:[%s547 + $0x28] sm:$0xf]
        %v560 = vld [vmem:[%s547 + $0x2c] sm:$0xf]
        %v561 = vld [vmem:[%s547 + $0x30] sm:$0xf]
        %v562 = vld [vmem:[%s547 + $0x34] sm:$0xf]
        %v563 = vld [vmem:[%s547 + $0x38] sm:$0xf]
        %v564 = vld [vmem:[%s547 + $0x3c] sm:$0xf]
        %v565 = vld [vmem:[%s547 + $0x40] sm:$0xf]
        %v566 = vld [vmem:[%s547 + $0x44] sm:$0xf]
        %v567 = vld [vmem:[%s547 + $0x48] sm:$0xf]
        %v568 = vld [vmem:[%s547 + $0x4c] sm:$0xf]
        %v569 = vld [vmem:[%s547 + $0x50] sm:$0xf]
        %v570 = vld [vmem:[%s547 + $0x54] sm:$0xf]
        %v571 = vld [vmem:[%s547 + $0x58] sm:$0xf]
        %v572 = vld [vmem:[%s547 + $0x5c] sm:$0xf]
        %v573 = vld [vmem:[%s547 + $0x60] sm:$0xf]
        %v574 = vld [vmem:[%s547 + $0x64] sm:$0xf]
        %v575 = vld [vmem:[%s547 + $0x68] sm:$0xf]
        %v576 = vld [vmem:[%s547 + $0x6c] sm:$0xf]
        %v577 = vld [vmem:[%s547 + $0x70] sm:$0xf]
        %v578 = vld [vmem:[%s547 + $0x74] sm:$0xf]
        %v579 = vld [vmem:[%s547 + $0x78] sm:$0xf]
        %v580 = vld [vmem:[%s547 + $0x7c] sm:$0xf]
        %v581 = vld [vmem:[%s1] sm:$0xf]
        %v582 = vld [vmem:[%s1 + $0x4] sm:$0x1]
        %v583 = vld [vmem:[%s2] sm:$0x1]
        %v585 = vlaneseq
        %v586 = vshrl.u32 %v585, 7
        %v587 = vsub.s32 0, %v586
        %v588 = vrot.slane %v583, %v587
        %v622 = vunpack.c.l.b16 %v549
        %v623 = vunpack.c.l.b16 %v550
        %v624 = vunpack.c.l.b16 %v551
        %v625 = vunpack.c.l.b16 %v552
        %v626 = vunpack.c.l.b16 %v553
        %v627 = vunpack.c.l.b16 %v554
        %v628 = vunpack.c.l.b16 %v555
        %v629 = vunpack.c.l.b16 %v556
        %v630 = vunpack.c.l.b16 %v557
        %v631 = vunpack.c.l.b16 %v558
        %v632 = vunpack.c.l.b16 %v559
        %v633 = vunpack.c.l.b16 %v560
        %v634 = vunpack.c.l.b16 %v561
        %v635 = vunpack.c.l.b16 %v562
        %v636 = vunpack.c.l.b16 %v563
        %v637 = vunpack.c.l.b16 %v564
        %v638 = vunpack.c.l.b16 %v565
        %v639 = vunpack.c.l.b16 %v566
        %v640 = vunpack.c.l.b16 %v567
        %v641 = vunpack.c.l.b16 %v568
        %v642 = vunpack.c.l.b16 %v569
        %v643 = vunpack.c.l.b16 %v570
        %v644 = vunpack.c.l.b16 %v571
        %v645 = vunpack.c.l.b16 %v572
        %v646 = vunpack.c.l.b16 %v573
        %v647 = vunpack.c.l.b16 %v574
        %v648 = vunpack.c.l.b16 %v575
        %v649 = vunpack.c.l.b16 %v576
        %v650 = vunpack.c.l.b16 %v577
        %v651 = vunpack.c.l.b16 %v578
        %v652 = vunpack.c.l.b16 %v579
        %v653 = vunpack.c.l.b16 %v580
        %v654 = vpack.c.b16 %v623, %v622
        %v655 = vpack.c.b16 %v625, %v624
        %v656 = vpack.c.b16 %v627, %v626
        %v657 = vpack.c.b16 %v629, %v628
        %v658 = vpack.c.b16 %v631, %v630
        %v659 = vpack.c.b16 %v633, %v632
        %v660 = vpack.c.b16 %v635, %v634
        %v661 = vpack.c.b16 %v637, %v636
        %v662 = vpack.c.b16 %v639, %v638
        %v663 = vpack.c.b16 %v641, %v640
        %v664 = vpack.c.b16 %v643, %v642
        %v665 = vpack.c.b16 %v645, %v644
        %v666 = vpack.c.b16 %v647, %v646
        %v667 = vpack.c.b16 %v649, %v648
        %v668 = vpack.c.b16 %v651, %v650
        %v669 = vpack.c.b16 %v653, %v652
        %v672 = vunpack.c.l.b16 %v581
        %v673 = vunpack.c.l.b16 %v582
        %v674 = vpack.c.b16 %v673, %v672
        %vm675 = vcmask 72704
        %v677 = vsel %vm675, %v654, 0
        %v680 = vsel %vm675, %v655, 0
        %v683 = vsel %vm675, %v656, 0
        %v686 = vsel %vm675, %v657, 0
        %v689 = vsel %vm675, %v658, 0
        %v692 = vsel %vm675, %v659, 0
        %v695 = vsel %vm675, %v660, 0
        %v698 = vsel %vm675, %v661, 0
        %v701 = vsel %vm675, %v662, 0
        %v704 = vsel %vm675, %v663, 0
        %v707 = vsel %vm675, %v664, 0
        %v710 = vsel %vm675, %v665, 0
        %v713 = vsel %vm675, %v666, 0
        %v716 = vsel %vm675, %v667, 0
        %v719 = vsel %vm675, %v668, 0
        %v722 = vsel %vm675, %v669, 0
        %vm724 = vcmask 1043456
        %vm725 = vcmask 1044480
        %v726 = vsel %vm724, 4294967295, 65535
        %v727 = vsel %vm725, %v726, 0
        %v729 = vand.u32 %v674, %v727
        %731 = vmatprep.subr.bf16.mxu0 0
        %732 = vmatpush1.bf16.msra.mxu0 %v729
        %733 = vmatprep.subr.bf16.mxu0 0
        %734 = vmatpush1.bf16.msra.mxu0 0
        %735 = vmatprep.subr.bf16.mxu0 0
        %736 = vmatpush1.bf16.msra.mxu0 0
        %737 = vmatprep.subr.bf16.mxu0 0
        %738 = vmatpush1.bf16.msra.mxu0 0
        %739 = vmatprep.subr.bf16.mxu0 0
        %740 = vmatpush1.bf16.msra.mxu0 0
        %741 = vmatprep.subr.bf16.mxu0 0
        %742 = vmatpush1.bf16.msra.mxu0 0
        %743 = vmatprep.subr.bf16.mxu0 0
        %744 = vmatpush1.bf16.msra.mxu0 0
        %745 = vmatprep.subr.bf16.mxu0 0
        %746 = vmatpush1.bf16.msra.mxu0 0
        %747 = vmatprep.subr.bf16.mxu0 0
        %748 = vmatpush1.bf16.msra.mxu0 0
        %749 = vmatprep.subr.bf16.mxu0 0
        %750 = vmatpush1.bf16.msra.mxu0 0
        %751 = vmatprep.subr.bf16.mxu0 0
        %752 = vmatpush1.bf16.msra.mxu0 0
        %753 = vmatprep.subr.bf16.mxu0 0
        %754 = vmatpush1.bf16.msra.mxu0 0
        %755 = vmatprep.subr.bf16.mxu0 0
        %756 = vmatpush1.bf16.msra.mxu0 0
        %757 = vmatprep.subr.bf16.mxu0 0
        %758 = vmatpush1.bf16.msra.mxu0 0
        %759 = vmatprep.subr.bf16.mxu0 0
        %760 = vmatpush1.bf16.msra.mxu0 0
        %761 = vmatprep.subr.bf16.mxu0 0
        %762 = vmatpush1.bf16.msra.mxu0 0
        %763 = vmatprep.mubr.bf16.mxu0 0
        %764 = vmatmul.mubr.bf16.gmra.mrb[0].mxu0 %v677
        %v765 = vpop.f32.mrb[0].mxu0
        %v766 = vadd.f32 %v588, %v765
        %v767 = vpop.f32.mrb[0].mxu0
        %v768 = vpop.f32.mrb[0].mxu0
        %v769 = vadd.f32 %v588, %v768
        %v770 = vpop.f32.mrb[0].mxu0
        %771 = vmatprep.mubr.bf16.mxu0 0
        %772 = vmatmul.mubr.bf16.gmra.mrb[0].mxu0 %v680
        %v773 = vpop.f32.mrb[0].mxu0
        %v774 = vadd.f32 %v588, %v773
        %v775 = vpop.f32.mrb[0].mxu0
        %v776 = vpop.f32.mrb[0].mxu0
        %v777 = vadd.f32 %v588, %v776
        %v778 = vpop.f32.mrb[0].mxu0
        %779 = vmatprep.mubr.bf16.mxu0 0
        %780 = vmatmul.mubr.bf16.gmra.mrb[0].mxu0 %v683
        %v781 = vpop.f32.mrb[0].mxu0
        %v782 = vadd.f32 %v588, %v781
        %v783 = vpop.f32.mrb[0].mxu0
        %v784 = vpop.f32.mrb[0].mxu0
        %v785 = vadd.f32 %v588, %v784
        %v786 = vpop.f32.mrb[0].mxu0
        %787 = vmatprep.mubr.bf16.mxu0 0
        %788 = vmatmul.mubr.bf16.gmra.mrb[0].mxu0 %v686
        %v789 = vpop.f32.mrb[0].mxu0
        %v790 = vadd.f32 %v588, %v789
        %v791 = vpop.f32.mrb[0].mxu0
        %v792 = vpop.f32.mrb[0].mxu0
        %v793 = vadd.f32 %v588, %v792
        %v794 = vpop.f32.mrb[0].mxu0
        %795 = vmatprep.mubr.bf16.mxu0 0
        %796 = vmatmul.mubr.bf16.gmra.mrb[0].mxu0 %v689
        %v797 = vpop.f32.mrb[0].mxu0
        %v798 = vadd.f32 %v588, %v797
        %v799 = vpop.f32.mrb[0].mxu0
        %v800 = vpop.f32.mrb[0].mxu0
        %v801 = vadd.f32 %v588, %v800
        %v802 = vpop.f32.mrb[0].mxu0
        %803 = vmatprep.mubr.bf16.mxu0 0
        %804 = vmatmul.mubr.bf16.gmra.mrb[0].mxu0 %v692
        %v805 = vpop.f32.mrb[0].mxu0
        %v806 = vadd.f32 %v588, %v805
        %v807 = vpop.f32.mrb[0].mxu0
        %v808 = vpop.f32.mrb[0].mxu0
        %v809 = vadd.f32 %v588, %v808
        %v810 = vpop.f32.mrb[0].mxu0
        %811 = vmatprep.mubr.bf16.mxu0 0
        %812 = vmatmul.mubr.bf16.gmra.mrb[0].mxu0 %v695
        %v813 = vpop.f32.mrb[0].mxu0
        %v814 = vadd.f32 %v588, %v813
        %v815 = vpop.f32.mrb[0].mxu0
        %v816 = vpop.f32.mrb[0].mxu0
        %v817 = vadd.f32 %v588, %v816
        %v818 = vpop.f32.mrb[0].mxu0
        %819 = vmatprep.mubr.bf16.mxu0 0
        %820 = vmatmul.mubr.bf16.gmra.mrb[0].mxu0 %v698
        %v821 = vpop.f32.mrb[0].mxu0
        %v822 = vadd.f32 %v588, %v821
        %v823 = vpop.f32.mrb[0].mxu0
        %v824 = vpop.f32.mrb[0].mxu0
        %v825 = vadd.f32 %v588, %v824
        %v826 = vpop.f32.mrb[0].mxu0
        %827 = vmatprep.mubr.bf16.mxu0 0
        %828 = vmatmul.mubr.bf16.gmra.mrb[0].mxu0 %v701
        %v829 = vpop.f32.mrb[0].mxu0
        %v830 = vadd.f32 %v588, %v829
        %v831 = vpop.f32.mrb[0].mxu0
        %v832 = vpop.f32.mrb[0].mxu0
        %v833 = vadd.f32 %v588, %v832
        %v834 = vpop.f32.mrb[0].mxu0
        %835 = vmatprep.mubr.bf16.mxu0 0
        %836 = vmatmul.mubr.bf16.gmra.mrb[0].mxu0 %v704
        %v837 = vpop.f32.mrb[0].mxu0
        %v838 = vadd.f32 %v588, %v837
        %v839 = vpop.f32.mrb[0].mxu0
        %v840 = vpop.f32.mrb[0].mxu0
        %v841 = vadd.f32 %v588, %v840
        %v842 = vpop.f32.mrb[0].mxu0
        %843 = vmatprep.mubr.bf16.mxu0 0
        %844 = vmatmul.mubr.bf16.gmra.mrb[0].mxu0 %v707
        %v845 = vpop.f32.mrb[0].mxu0
        %v846 = vadd.f32 %v588, %v845
        %v847 = vpop.f32.mrb[0].mxu0
        %v848 = vpop.f32.mrb[0].mxu0
        %v849 = vadd.f32 %v588, %v848
        %v850 = vpop.f32.mrb[0].mxu0
        %851 = vmatprep.mubr.bf16.mxu0 0
        %852 = vmatmul.mubr.bf16.gmra.mrb[0].mxu0 %v710
        %v853 = vpop.f32.mrb[0].mxu0
        %v854 = vadd.f32 %v588, %v853
        %v855 = vpop.f32.mrb[0].mxu0
        %v856 = vpop.f32.mrb[0].mxu0
        %v857 = vadd.f32 %v588, %v856
        %v858 = vpop.f32.mrb[0].mxu0
        %859 = vmatprep.mubr.bf16.mxu0 0
        %860 = vmatmul.mubr.bf16.gmra.mrb[0].mxu0 %v713
        %v861 = vpop.f32.mrb[0].mxu0
        %v862 = vadd.f32 %v588, %v861
        %v863 = vpop.f32.mrb[0].mxu0
        %v864 = vpop.f32.mrb[0].mxu0
        %v865 = vadd.f32 %v588, %v864
        %v866 = vpop.f32.mrb[0].mxu0
        %867 = vmatprep.mubr.bf16.mxu0 0
        %868 = vmatmul.mubr.bf16.gmra.mrb[0].mxu0 %v716
        %v869 = vpop.f32.mrb[0].mxu0
        %v870 = vadd.f32 %v588, %v869
        %v871 = vpop.f32.mrb[0].mxu0
        %v872 = vpop.f32.mrb[0].mxu0
        %v873 = vadd.f32 %v588, %v872
        %v874 = vpop.f32.mrb[0].mxu0
        %875 = vmatprep.mubr.bf16.mxu0 0
        %876 = vmatmul.mubr.bf16.gmra.mrb[0].mxu0 %v719
        %v877 = vpop.f32.mrb[0].mxu0
        %v878 = vadd.f32 %v588, %v877
        %v879 = vpop.f32.mrb[0].mxu0
        %v880 = vpop.f32.mrb[0].mxu0
        %v881 = vadd.f32 %v588, %v880
        %v882 = vpop.f32.mrb[0].mxu0
        %883 = vmatprep.mubr.bf16.mxu0 0
        %884 = vmatmul.mubr.bf16.gmra.mrb[0].mxu0 %v722
        %v885 = vpop.f32.mrb[0].mxu0
        %v886 = vadd.f32 %v588, %v885
        %v887 = vpop.f32.mrb[0].mxu0
        %v888 = vpop.f32.mrb[0].mxu0
        %v889 = vadd.f32 %v588, %v888
        %v890 = vpop.f32.mrb[0].mxu0
        %891 = vdwg.mxu0
        %v892 = vmax.f32 %v766, 0.0
        %v893 = vmax.f32 %v769, 0.0
        %v894 = vmax.f32 %v774, 0.0
        %v895 = vmax.f32 %v777, 0.0
        %v896 = vmax.f32 %v782, 0.0
        %v897 = vmax.f32 %v785, 0.0
        %v898 = vmax.f32 %v790, 0.0
        %v899 = vmax.f32 %v793, 0.0
        %v900 = vmax.f32 %v798, 0.0
        %v901 = vmax.f32 %v801, 0.0
        %v902 = vmax.f32 %v806, 0.0
        %v903 = vmax.f32 %v809, 0.0
        %v904 = vmax.f32 %v814, 0.0
        %v905 = vmax.f32 %v817, 0.0
        %v906 = vmax.f32 %v822, 0.0
        %v907 = vmax.f32 %v825, 0.0
        %v908 = vmax.f32 %v830, 0.0
        %v909 = vmax.f32 %v833, 0.0
        %v910 = vmax.f32 %v838, 0.0
        %v911 = vmax.f32 %v841, 0.0
        %v912 = vmax.f32 %v846, 0.0
        %v913 = vmax.f32 %v849, 0.0
        %v914 = vmax.f32 %v854, 0.0
        %v915 = vmax.f32 %v857, 0.0
        %v916 = vmax.f32 %v862, 0.0
        %v917 = vmax.f32 %v865, 0.0
        %v918 = vmax.f32 %v870, 0.0
        %v919 = vmax.f32 %v873, 0.0
        %v920 = vmax.f32 %v878, 0.0
        %v921 = vmax.f32 %v881, 0.0
        %v922 = vmax.f32 %v886, 0.0
        %v923 = vmax.f32 %v889, 0.0
        %vm924 = vcmask 261120
        %925 = vst.msk [vmem:[#allocation4] sm:$0xff] %vm924, 0.0
        %vm926 = vcmask 253952
        %927 = vst.msk [vmem:[#allocation4 + $0x8] sm:$0x1] %vm926, 0.0
        %928 = vst.msk [vmem:[#allocation4 + $0x49] sm:$0xff] %vm924, 0.0
        %929 = vst.msk [vmem:[#allocation4 + $0x51] sm:$0x1] %vm926, 0.0
        %930 = vst.msk [vmem:[#allocation2] sm:$0xff] %vm924, %v892
        %931 = vst.msk [vmem:[#allocation2 + $0x8] sm:$0xff] %vm924, %v893
        %932 = vst.msk [vmem:[#allocation2 + $0x10] sm:$0xff] %vm924, %v894
        %933 = vst.msk [vmem:[#allocation2 + $0x18] sm:$0xff] %vm924, %v895
        %934 = vst.msk [vmem:[#allocation2 + $0x20] sm:$0xff] %vm924, %v896
        %935 = vst.msk [vmem:[#allocation2 + $0x28] sm:$0xff] %vm924, %v897
        %936 = vst.msk [vmem:[#allocation2 + $0x30] sm:$0xff] %vm924, %v898
        %937 = vst.msk [vmem:[#allocation2 + $0x38] sm:$0xff] %vm924, %v899
        %938 = vst.msk [vmem:[#allocation2 + $0x40] sm:$0xff] %vm924, %v900
        %939 = vst.msk [vmem:[#allocation2 + $0x48] sm:$0xff] %vm924, %v901
        %940 = vst.msk [vmem:[#allocation2 + $0x50] sm:$0xff] %vm924, %v902
        %941 = vst.msk [vmem:[#allocation2 + $0x58] sm:$0xff] %vm924, %v903
        %942 = vst.msk [vmem:[#allocation2 + $0x60] sm:$0xff] %vm924, %v904
        %943 = vst.msk [vmem:[#allocation2 + $0x68] sm:$0xff] %vm924, %v905
        %944 = vst.msk [vmem:[#allocation2 + $0x70] sm:$0xff] %vm924, %v906
        %945 = vst.msk [vmem:[#allocation2 + $0x78] sm:$0xff] %vm924, %v907
        %946 = vst.msk [vmem:[#allocation2 + $0x80] sm:$0xff] %vm924, %v908
        %947 = vst.msk [vmem:[#allocation2 + $0x88] sm:$0xff] %vm924, %v909
        %948 = vst.msk [vmem:[#allocation2 + $0x90] sm:$0xff] %vm924, %v910
        %949 = vst.msk [vmem:[#allocation2 + $0x98] sm:$0xff] %vm924, %v911
        %950 = vst.msk [vmem:[#allocation2 + $0xa0] sm:$0xff] %vm924, %v912
        %951 = vst.msk [vmem:[#allocation2 + $0xa8] sm:$0xff] %vm924, %v913
        %952 = vst.msk [vmem:[#allocation2 + $0xb0] sm:$0xff] %vm924, %v914
        %953 = vst.msk [vmem:[#allocation2 + $0xb8] sm:$0xff] %vm924, %v915
        %954 = vst.msk [vmem:[#allocation2 + $0xc0] sm:$0xff] %vm924, %v916
        %955 = vst.msk [vmem:[#allocation2 + $0xc8] sm:$0xff] %vm924, %v917
        %956 = vst.msk [vmem:[#allocation2 + $0xd0] sm:$0xff] %vm924, %v918
        %957 = vst.msk [vmem:[#allocation2 + $0xd8] sm:$0xff] %vm924, %v919
        %958 = vst.msk [vmem:[#allocation2 + $0xe0] sm:$0xff] %vm924, %v920
        %959 = vst.msk [vmem:[#allocation2 + $0xe8] sm:$0xff] %vm924, %v921
        %960 = vst.msk [vmem:[#allocation2 + $0xf0] sm:$0xff] %vm924, %v922
        %961 = vst.msk [vmem:[#allocation2 + $0xf8] sm:$0xff] %vm924, %v923
        %v962 = vld [vmem:[#allocation2] ss:$2 sm:$0xff]
        %s963 = scalar_lea.vmem [#allocation2], 16
        %v964 = vld [vmem:[%s963] ss:$2 sm:$0xff]
        %s965 = scalar_lea.vmem [#allocation2], 32
        %v966 = vld [vmem:[%s965] ss:$2 sm:$0xff]
        %s967 = scalar_lea.vmem [#allocation2], 48
        %v968 = vld [vmem:[%s967] ss:$2 sm:$0xff]
        %s969 = scalar_lea.vmem [#allocation2], 64
        %v970 = vld [vmem:[%s969] ss:$2 sm:$0xff]
        %s971 = scalar_lea.vmem [#allocation2], 80
        %v972 = vld [vmem:[%s971] ss:$2 sm:$0xff]
        %s973 = scalar_lea.vmem [#allocation2], 96
        %v974 = vld [vmem:[%s973] ss:$2 sm:$0xff]
        %s975 = scalar_lea.vmem [#allocation2], 112
        %v976 = vld [vmem:[%s975] ss:$2 sm:$0xff]
        %s977 = scalar_lea.vmem [#allocation2], 128
        %v978 = vld [vmem:[%s977] ss:$2 sm:$0xff]
        %s979 = scalar_lea.vmem [#allocation2], 144
        %v980 = vld [vmem:[%s979] ss:$2 sm:$0xff]
        %s981 = scalar_lea.vmem [#allocation2], 160
        %v982 = vld [vmem:[%s981] ss:$2 sm:$0xff]
        %s983 = scalar_lea.vmem [#allocation2], 176
        %v984 = vld [vmem:[%s983] ss:$2 sm:$0xff]
        %s985 = scalar_lea.vmem [#allocation2], 192
        %v986 = vld [vmem:[%s985] ss:$2 sm:$0xff]
        %s987 = scalar_lea.vmem [#allocation2], 208
        %v988 = vld [vmem:[%s987] ss:$2 sm:$0xff]
        %s989 = scalar_lea.vmem [#allocation2], 224
        %v990 = vld [vmem:[%s989] ss:$2 sm:$0xff]
        %s991 = scalar_lea.vmem [#allocation2], 240
        %v992 = vld [vmem:[%s991] ss:$2 sm:$0xff]
        %s993 = scalar_lea.vmem [#allocation2], 1
        %v994 = vld [vmem:[%s993] ss:$2 sm:$0xff]
        %s995 = scalar_lea.vmem [#allocation2], 17
        %v996 = vld [vmem:[%s995] ss:$2 sm:$0xff]
        %s997 = scalar_lea.vmem [#allocation2], 33
        %v998 = vld [vmem:[%s997] ss:$2 sm:$0xff]
        %s999 = scalar_lea.vmem [#allocation2], 49
        %v1000 = vld [vmem:[%s999] ss:$2 sm:$0xff]
        %s1001 = scalar_lea.vmem [#allocation2], 65
        %v1002 = vld [vmem:[%s1001] ss:$2 sm:$0xff]
        %s1003 = scalar_lea.vmem [#allocation2], 81
        %v1004 = vld [vmem:[%s1003] ss:$2 sm:$0xff]
        %s1005 = scalar_lea.vmem [#allocation2], 97
        %v1006 = vld [vmem:[%s1005] ss:$2 sm:$0xff]
        %s1007 = scalar_lea.vmem [#allocation2], 113
        %v1008 = vld [vmem:[%s1007] ss:$2 sm:$0xff]
        %s1009 = scalar_lea.vmem [#allocation2], 129
        %v1010 = vld [vmem:[%s1009] ss:$2 sm:$0xff]
        %s1011 = scalar_lea.vmem [#allocation2], 145
        %v1012 = vld [vmem:[%s1011] ss:$2 sm:$0xff]
        %s1013 = scalar_lea.vmem [#allocation2], 161
        %v1014 = vld [vmem:[%s1013] ss:$2 sm:$0xff]
        %s1015 = scalar_lea.vmem [#allocation2], 177
        %v1016 = vld [vmem:[%s1015] ss:$2 sm:$0xff]
        %s1017 = scalar_lea.vmem [#allocation2], 193
        %v1018 = vld [vmem:[%s1017] ss:$2 sm:$0xff]
        %s1019 = scalar_lea.vmem [#allocation2], 209
        %v1020 = vld [vmem:[%s1019] ss:$2 sm:$0xff]
        %s1021 = scalar_lea.vmem [#allocation2], 225
        %v1022 = vld [vmem:[%s1021] ss:$2 sm:$0xff]
        %s1023 = scalar_lea.vmem [#allocation2], 241
        %v1024 = vld [vmem:[%s1023] ss:$2 sm:$0xff]
        %v1025 = vmax.f32 %v962, %v994
        %v1026 = vmax.f32 %v964, %v996
        %v1027 = vmax.f32 %v966, %v998
        %v1028 = vmax.f32 %v968, %v1000
        %v1029 = vmax.f32 %v970, %v1002
        %v1030 = vmax.f32 %v972, %v1004
        %v1031 = vmax.f32 %v974, %v1006
        %v1032 = vmax.f32 %v976, %v1008
        %v1033 = vmax.f32 %v978, %v1010
        %v1034 = vmax.f32 %v980, %v1012
        %v1035 = vmax.f32 %v982, %v1014
        %v1036 = vmax.f32 %v984, %v1016
        %v1037 = vmax.f32 %v986, %v1018
        %v1038 = vmax.f32 %v988, %v1020
        %v1039 = vmax.f32 %v990, %v1022
        %v1040 = vmax.f32 %v992, %v1024
        %1041 = vst.msk [vmem:[#allocation3] sm:$0xff] %vm924, %v1025
        %1042 = vst.msk [vmem:[#allocation3 + $0x8] sm:$0xff] %vm924, %v1026
        %1043 = vst.msk [vmem:[#allocation3 + $0x10] sm:$0xff] %vm924, %v1027
        %1044 = vst.msk [vmem:[#allocation3 + $0x18] sm:$0xff] %vm924, %v1028
        %1045 = vst.msk [vmem:[#allocation3 + $0x20] sm:$0xff] %vm924, %v1029
        %1046 = vst.msk [vmem:[#allocation3 + $0x28] sm:$0xff] %vm924, %v1030
        %1047 = vst.msk [vmem:[#allocation3 + $0x30] sm:$0xff] %vm924, %v1031
        %1048 = vst.msk [vmem:[#allocation3 + $0x38] sm:$0xff] %vm924, %v1032
        %1049 = vst.msk [vmem:[#allocation3 + $0x40] sm:$0xff] %vm924, %v1033
        %1050 = vst.msk [vmem:[#allocation3 + $0x48] sm:$0xff] %vm924, %v1034
        %1051 = vst.msk [vmem:[#allocation3 + $0x50] sm:$0xff] %vm924, %v1035
        %1052 = vst.msk [vmem:[#allocation3 + $0x58] sm:$0xff] %vm924, %v1036
        %1053 = vst.msk [vmem:[#allocation3 + $0x60] sm:$0xff] %vm924, %v1037
        %1054 = vst.msk [vmem:[#allocation3 + $0x68] sm:$0xff] %vm924, %v1038
        %1055 = vst.msk [vmem:[#allocation3 + $0x70] sm:$0xff] %vm924, %v1039
        %1056 = vst.msk [vmem:[#allocation3 + $0x78] sm:$0xff] %vm924, %v1040
        %v1057 = vld [vmem:[#allocation3] sm:$0xff]
        %v1058 = vld [vmem:[#allocation3 + $0x8] sm:$0xff]
        %v1059 = vmax.f32 %v1057, %v1058
        %1060 = vst.msk [vmem:[#allocation4 + $0x9] sm:$0xff] %vm924, %v1059
        %v1061 = vld [vmem:[#allocation3 + $0x10] sm:$0xff]
        %v1062 = vld [vmem:[#allocation3 + $0x18] sm:$0xff]
        %v1063 = vmax.f32 %v1061, %v1062
        %1064 = vst.msk [vmem:[#allocation4 + $0x11] sm:$0xff] %vm924, %v1063
        %v1065 = vld [vmem:[#allocation3 + $0x20] sm:$0xff]
        %v1066 = vld [vmem:[#allocation3 + $0x28] sm:$0xff]
        %v1067 = vmax.f32 %v1065, %v1066
        %1068 = vst.msk [vmem:[#allocation4 + $0x19] sm:$0xff] %vm924, %v1067
        %v1069 = vld [vmem:[#allocation3 + $0x30] sm:$0xff]
        %v1070 = vld [vmem:[#allocation3 + $0x38] sm:$0xff]
        %v1071 = vmax.f32 %v1069, %v1070
        %1072 = vst.msk [vmem:[#allocation4 + $0x21] sm:$0xff] %vm924, %v1071
        %v1073 = vld [vmem:[#allocation3 + $0x40] sm:$0xff]
        %v1074 = vld [vmem:[#allocation3 + $0x48] sm:$0xff]
        %v1075 = vmax.f32 %v1073, %v1074
        %1076 = vst.msk [vmem:[#allocation4 + $0x29] sm:$0xff] %vm924, %v1075
        %v1077 = vld [vmem:[#allocation3 + $0x50] sm:$0xff]
        %v1078 = vld [vmem:[#allocation3 + $0x58] sm:$0xff]
        %v1079 = vmax.f32 %v1077, %v1078
        %1080 = vst.msk [vmem:[#allocation4 + $0x31] sm:$0xff] %vm924, %v1079
        %v1081 = vld [vmem:[#allocation3 + $0x60] sm:$0xff]
        %v1082 = vld [vmem:[#allocation3 + $0x68] sm:$0xff]
        %v1083 = vmax.f32 %v1081, %v1082
        %1084 = vst.msk [vmem:[#allocation4 + $0x39] sm:$0xff] %vm924, %v1083
        %v1085 = vld [vmem:[#allocation3 + $0x70] sm:$0xff]
        %v1086 = vld [vmem:[#allocation3 + $0x78] sm:$0xff]
        %v1087 = vmax.f32 %v1085, %v1086
        %1088 = vst.msk [vmem:[#allocation4 + $0x41] sm:$0xff] %vm924, %v1087
        %v1089 = vld [vmem:[#allocation4] sm:$0xff]
        %v1090 = vld [vmem:[#allocation4 + $0x8] sm:$0xff]
        %v1091 = vld [vmem:[#allocation4 + $0x10] sm:$0xff]
        %v1092 = vld [vmem:[#allocation4 + $0x18] sm:$0xff]
        %v1093 = vld [vmem:[#allocation4 + $0x20] sm:$0xff]
        %v1094 = vld [vmem:[#allocation4 + $0x28] sm:$0xff]
        %v1095 = vld [vmem:[#allocation4 + $0x30] sm:$0xff]
        %v1096 = vld [vmem:[#allocation4 + $0x38] sm:$0xff]
        %v1097 = vld [vmem:[%s3] sm:$0xff]
        %v1098 = vld [vmem:[%s3 + $0x8] sm:$0xff]
        %v1099 = vld [vmem:[%s3 + $0x10] sm:$0xff]
        %v1100 = vld [vmem:[%s3 + $0x18] sm:$0xff]
        %v1101 = vld [vmem:[%s3 + $0x20] sm:$0xff]
        %v1102 = vld [vmem:[%s3 + $0x28] sm:$0xff]
        %v1103 = vld [vmem:[%s3 + $0x30] sm:$0xff]
        %v1104 = vld [vmem:[%s3 + $0x38] sm:$0xff]
        %1106 = vset.pattern.permute.xlu0 0
        %1107 = vperm.xlu0 %1106, %v1097
        %v1108 = vpop.permute.xlu0 %1107
        %1111 = vset.pattern.permute.xlu0 0
        %1112 = vperm.xlu0 %1111, %v1098
        %v1113 = vpop.permute.xlu0 %1112
        %1116 = vset.pattern.permute.xlu0 0
        %1117 = vperm.xlu0 %1116, %v1099
        %v1118 = vpop.permute.xlu0 %1117
        %1121 = vset.pattern.permute.xlu0 0
        %1122 = vperm.xlu0 %1121, %v1100
        %v1123 = vpop.permute.xlu0 %1122
        %1126 = vset.pattern.permute.xlu0 0
        %1127 = vperm.xlu0 %1126, %v1101
        %v1128 = vpop.permute.xlu0 %1127
        %1131 = vset.pattern.permute.xlu0 0
        %1132 = vperm.xlu0 %1131, %v1102
        %v1133 = vpop.permute.xlu0 %1132
        %1136 = vset.pattern.permute.xlu0 0
        %1137 = vperm.xlu0 %1136, %v1103
        %v1138 = vpop.permute.xlu0 %1137
        %1141 = vset.pattern.permute.xlu0 0
        %1142 = vperm.xlu0 %1141, %v1104
        %v1143 = vpop.permute.xlu0 %1142
        %v1145 = vmul.f32 %v1089, %v1108
        %v1146 = vmul.f32 %v1090, %v1113
        %v1147 = vmul.f32 %v1091, %v1118
        %v1148 = vmul.f32 %v1092, %v1123
        %v1149 = vmul.f32 %v1093, %v1128
        %v1150 = vmul.f32 %v1094, %v1133
        %v1151 = vmul.f32 %v1095, %v1138
        %v1152 = vmul.f32 %v1096, %v1143
        %1153 = vst.msk [vmem:[#allocation5] sm:$0xff] %vm924, %v1145
        %1154 = vst.msk [vmem:[#allocation5 + $0x18] sm:$0xff] %vm924, %v1146
        %1155 = vst.msk [vmem:[#allocation5 + $0x30] sm:$0xff] %vm924, %v1147
        %1156 = vst.msk [vmem:[#allocation5 + $0x48] sm:$0xff] %vm924, %v1148
        %1157 = vst.msk [vmem:[#allocation5 + $0x60] sm:$0xff] %vm924, %v1149
        %1158 = vst.msk [vmem:[#allocation5 + $0x78] sm:$0xff] %vm924, %v1150
        %1159 = vst.msk [vmem:[#allocation5 + $0x90] sm:$0xff] %vm924, %v1151
        %1160 = vst.msk [vmem:[#allocation5 + $0xa8] sm:$0xff] %vm924, %v1152
        %v1161 = vld [vmem:[#allocation4 + $0x1] sm:$0xff]
        %v1162 = vld [vmem:[#allocation4 + $0x9] sm:$0xff]
        %v1163 = vld [vmem:[#allocation4 + $0x11] sm:$0xff]
        %v1164 = vld [vmem:[#allocation4 + $0x19] sm:$0xff]
        %v1165 = vld [vmem:[#allocation4 + $0x21] sm:$0xff]
        %v1166 = vld [vmem:[#allocation4 + $0x29] sm:$0xff]
        %v1167 = vld [vmem:[#allocation4 + $0x31] sm:$0xff]
        %v1168 = vld [vmem:[#allocation4 + $0x39] sm:$0xff]
        %s1169 = scalar_lea.vmem %s3, 64
        %v1170 = vld [vmem:[%s1169] sm:$0xff]
        %v1171 = vld [vmem:[%s1169 + $0x8] sm:$0xff]
        %v1172 = vld [vmem:[%s1169 + $0x10] sm:$0xff]
        %v1173 = vld [vmem:[%s1169 + $0x18] sm:$0xff]
        %v1174 = vld [vmem:[%s1169 + $0x20] sm:$0xff]
        %v1175 = vld [vmem:[%s1169 + $0x28] sm:$0xff]
        %v1176 = vld [vmem:[%s1169 + $0x30] sm:$0xff]
        %v1177 = vld [vmem:[%s1169 + $0x38] sm:$0xff]
        %1179 = vset.pattern.permute.xlu0 0
        %1180 = vperm.xlu0 %1179, %v1170
        %v1181 = vpop.permute.xlu0 %1180
        %1184 = vset.pattern.permute.xlu0 0
        %1185 = vperm.xlu0 %1184, %v1171
        %v1186 = vpop.permute.xlu0 %1185
        %1189 = vset.pattern.permute.xlu0 0
        %1190 = vperm.xlu0 %1189, %v1172
        %v1191 = vpop.permute.xlu0 %1190
        %1194 = vset.pattern.permute.xlu0 0
        %1195 = vperm.xlu0 %1194, %v1173
        %v1196 = vpop.permute.xlu0 %1195
        %1199 = vset.pattern.permute.xlu0 0
        %1200 = vperm.xlu0 %1199, %v1174
        %v1201 = vpop.permute.xlu0 %1200
        %1204 = vset.pattern.permute.xlu0 0
        %1205 = vperm.xlu0 %1204, %v1175
        %v1206 = vpop.permute.xlu0 %1205
        %1209 = vset.pattern.permute.xlu0 0
        %1210 = vperm.xlu0 %1209, %v1176
        %v1211 = vpop.permute.xlu0 %1210
        %1214 = vset.pattern.permute.xlu0 0
        %1215 = vperm.xlu0 %1214, %v1177
        %v1216 = vpop.permute.xlu0 %1215
        %v1218 = vmul.f32 %v1161, %v1181
        %v1219 = vmul.f32 %v1162, %v1186
        %v1220 = vmul.f32 %v1163, %v1191
        %v1221 = vmul.f32 %v1164, %v1196
        %v1222 = vmul.f32 %v1165, %v1201
        %v1223 = vmul.f32 %v1166, %v1206
        %v1224 = vmul.f32 %v1167, %v1211
        %v1225 = vmul.f32 %v1168, %v1216
        %1234 = vrot.lane.b32.xlu0 %v1218, 32
        %v1235 = vpop.permute.xlu0 %1234
        %1236 = vrot.lane.b32.xlu0 %v1219, 32
        %v1237 = vpop.permute.xlu0 %1236
        %1238 = vrot.lane.b32.xlu0 %v1220, 32
        %v1239 = vpop.permute.xlu0 %1238
        %1240 = vrot.lane.b32.xlu0 %v1221, 32
        %v1241 = vpop.permute.xlu0 %1240
        %1242 = vrot.lane.b32.xlu0 %v1222, 32
        %v1243 = vpop.permute.xlu0 %1242
        %1244 = vrot.lane.b32.xlu0 %v1223, 32
        %v1245 = vpop.permute.xlu0 %1244
        %1246 = vrot.lane.b32.xlu0 %v1224, 32
        %v1247 = vpop.permute.xlu0 %1246
        %1248 = vrot.lane.b32.xlu0 %v1225, 32
        %v1249 = vpop.permute.xlu0 %1248
        %vm1258 = vcmask 523520
        %1259 = vst.msk [vmem:[#allocation5] sm:$0xff] %vm1258, %v1235
        %1260 = vst.msk [vmem:[#allocation5 + $0x18] sm:$0xff] %vm1258, %v1237
        %1261 = vst.msk [vmem:[#allocation5 + $0x30] sm:$0xff] %vm1258, %v1239
        %1262 = vst.msk [vmem:[#allocation5 + $0x48] sm:$0xff] %vm1258, %v1241
        %1263 = vst.msk [vmem:[#allocation5 + $0x60] sm:$0xff] %vm1258, %v1243
        %1264 = vst.msk [vmem:[#allocation5 + $0x78] sm:$0xff] %vm1258, %v1245
        %1265 = vst.msk [vmem:[#allocation5 + $0x90] sm:$0xff] %vm1258, %v1247
        %1266 = vst.msk [vmem:[#allocation5 + $0xa8] sm:$0xff] %vm1258, %v1249
        %v1267 = vld [vmem:[#allocation4 + $0x2] sm:$0xff]
        %v1268 = vld [vmem:[#allocation4 + $0xa] sm:$0xff]
        %v1269 = vld [vmem:[#allocation4 + $0x12] sm:$0xff]
        %v1270 = vld [vmem:[#allocation4 + $0x1a] sm:$0xff]
        %v1271 = vld [vmem:[#allocation4 + $0x22] sm:$0xff]
        %v1272 = vld [vmem:[#allocation4 + $0x2a] sm:$0xff]
        %v1273 = vld [vmem:[#allocation4 + $0x32] sm:$0xff]
        %v1274 = vld [vmem:[#allocation4 + $0x3a] sm:$0xff]
        %s1275 = scalar_lea.vmem %s3, 128
        %v1276 = vld [vmem:[%s1275] sm:$0xff]
        %v1277 = vld [vmem:[%s1275 + $0x8] sm:$0xff]
        %v1278 = vld [vmem:[%s1275 + $0x10] sm:$0xff]
        %v1279 = vld [vmem:[%s1275 + $0x18] sm:$0xff]
        %v1280 = vld [vmem:[%s1275 + $0x20] sm:$0xff]
        %v1281 = vld [vmem:[%s1275 + $0x28] sm:$0xff]
        %v1282 = vld [vmem:[%s1275 + $0x30] sm:$0xff]
        %v1283 = vld [vmem:[%s1275 + $0x38] sm:$0xff]
        %1285 = vset.pattern.permute.xlu0 0
        %1286 = vperm.xlu0 %1285, %v1276
        %v1287 = vpop.permute.xlu0 %1286
        %1290 = vset.pattern.permute.xlu0 0
        %1291 = vperm.xlu0 %1290, %v1277
        %v1292 = vpop.permute.xlu0 %1291
        %1295 = vset.pattern.permute.xlu0 0
        %1296 = vperm.xlu0 %1295, %v1278
        %v1297 = vpop.permute.xlu0 %1296
        %1300 = vset.pattern.permute.xlu0 0
        %1301 = vperm.xlu0 %1300, %v1279
        %v1302 = vpop.permute.xlu0 %1301
        %1305 = vset.pattern.permute.xlu0 0
        %1306 = vperm.xlu0 %1305, %v1280
        %v1307 = vpop.permute.xlu0 %1306
        %1310 = vset.pattern.permute.xlu0 0
        %1311 = vperm.xlu0 %1310, %v1281
        %v1312 = vpop.permute.xlu0 %1311
        %1315 = vset.pattern.permute.xlu0 0
        %1316 = vperm.xlu0 %1315, %v1282
        %v1317 = vpop.permute.xlu0 %1316
        %1320 = vset.pattern.permute.xlu0 0
        %1321 = vperm.xlu0 %1320, %v1283
        %v1322 = vpop.permute.xlu0 %1321
        %v1324 = vmul.f32 %v1267, %v1287
        %v1325 = vmul.f32 %v1268, %v1292
        %v1326 = vmul.f32 %v1269, %v1297
        %v1327 = vmul.f32 %v1270, %v1302
        %v1328 = vmul.f32 %v1271, %v1307
        %v1329 = vmul.f32 %v1272, %v1312
        %v1330 = vmul.f32 %v1273, %v1317
        %v1331 = vmul.f32 %v1274, %v1322
        %1340 = vrot.lane.b32.xlu0 %v1324, 64
        %v1341 = vpop.permute.xlu0 %1340
        %1342 = vrot.lane.b32.xlu0 %v1325, 64
        %v1343 = vpop.permute.xlu0 %1342
        %1344 = vrot.lane.b32.xlu0 %v1326, 64
        %v1345 = vpop.permute.xlu0 %1344
        %1346 = vrot.lane.b32.xlu0 %v1327, 64
        %v1347 = vpop.permute.xlu0 %1346
        %1348 = vrot.lane.b32.xlu0 %v1328, 64
        %v1349 = vpop.permute.xlu0 %1348
        %1350 = vrot.lane.b32.xlu0 %v1329, 64
        %v1351 = vpop.permute.xlu0 %1350
        %1352 = vrot.lane.b32.xlu0 %v1330, 64
        %v1353 = vpop.permute.xlu0 %1352
        %1354 = vrot.lane.b32.xlu0 %v1331, 64
        %v1355 = vpop.permute.xlu0 %1354
        %vm1364 = vcmask 785920
        %1365 = vst.msk [vmem:[#allocation5] sm:$0xff] %vm1364, %v1341
        %1366 = vst.msk [vmem:[#allocation5 + $0x18] sm:$0xff] %vm1364, %v1343
        %1367 = vst.msk [vmem:[#allocation5 + $0x30] sm:$0xff] %vm1364, %v1345
        %1368 = vst.msk [vmem:[#allocation5 + $0x48] sm:$0xff] %vm1364, %v1347
        %1369 = vst.msk [vmem:[#allocation5 + $0x60] sm:$0xff] %vm1364, %v1349
        %1370 = vst.msk [vmem:[#allocation5 + $0x78] sm:$0xff] %vm1364, %v1351
        %1371 = vst.msk [vmem:[#allocation5 + $0x90] sm:$0xff] %vm1364, %v1353
        %1372 = vst.msk [vmem:[#allocation5 + $0xa8] sm:$0xff] %vm1364, %v1355
        %v1373 = vld [vmem:[#allocation4 + $0x8] sm:$0xff]
        %v1374 = vld [vmem:[#allocation4 + $0x10] sm:$0xff]
        %v1375 = vld [vmem:[#allocation4 + $0x18] sm:$0xff]
        %v1376 = vld [vmem:[#allocation4 + $0x20] sm:$0xff]
        %v1377 = vld [vmem:[#allocation4 + $0x28] sm:$0xff]
        %v1378 = vld [vmem:[#allocation4 + $0x30] sm:$0xff]
        %v1379 = vld [vmem:[#allocation4 + $0x38] sm:$0xff]
        %v1380 = vld [vmem:[#allocation4 + $0x40] sm:$0xff]
        %s1381 = scalar_lea.vmem %s3, 192
        %v1382 = vld [vmem:[%s1381] sm:$0xff]
        %v1383 = vld [vmem:[%s1381 + $0x8] sm:$0xff]
        %v1384 = vld [vmem:[%s1381 + $0x10] sm:$0xff]
        %v1385 = vld [vmem:[%s1381 + $0x18] sm:$0xff]
        %v1386 = vld [vmem:[%s1381 + $0x20] sm:$0xff]
        %v1387 = vld [vmem:[%s1381 + $0x28] sm:$0xff]
        %v1388 = vld [vmem:[%s1381 + $0x30] sm:$0xff]
        %v1389 = vld [vmem:[%s1381 + $0x38] sm:$0xff]
        %1391 = vset.pattern.permute.xlu0 0
        %1392 = vperm.xlu0 %1391, %v1382
        %v1393 = vpop.permute.xlu0 %1392
        %1396 = vset.pattern.permute.xlu0 0
        %1397 = vperm.xlu0 %1396, %v1383
        %v1398 = vpop.permute.xlu0 %1397
        %1401 = vset.pattern.permute.xlu0 0
        %1402 = vperm.xlu0 %1401, %v1384
        %v1403 = vpop.permute.xlu0 %1402
        %1406 = vset.pattern.permute.xlu0 0
        %1407 = vperm.xlu0 %1406, %v1385
        %v1408 = vpop.permute.xlu0 %1407
        %1411 = vset.pattern.permute.xlu0 0
        %1412 = vperm.xlu0 %1411, %v1386
        %v1413 = vpop.permute.xlu0 %1412
        %1416 = vset.pattern.permute.xlu0 0
        %1417 = vperm.xlu0 %1416, %v1387
        %v1418 = vpop.permute.xlu0 %1417
        %1421 = vset.pattern.permute.xlu0 0
        %1422 = vperm.xlu0 %1421, %v1388
        %v1423 = vpop.permute.xlu0 %1422
        %1426 = vset.pattern.permute.xlu0 0
        %1427 = vperm.xlu0 %1426, %v1389
        %v1428 = vpop.permute.xlu0 %1427
        %v1430 = vmul.f32 %v1373, %v1393
        %v1431 = vmul.f32 %v1374, %v1398
        %v1432 = vmul.f32 %v1375, %v1403
        %v1433 = vmul.f32 %v1376, %v1408
        %v1434 = vmul.f32 %v1377, %v1413
        %v1435 = vmul.f32 %v1378, %v1418
        %v1436 = vmul.f32 %v1379, %v1423
        %v1437 = vmul.f32 %v1380, %v1428
        %1446 = vrot.lane.b32.xlu0 %v1430, 96
        %v1447 = vpop.permute.xlu0 %1446
        %1448 = vrot.lane.b32.xlu0 %v1431, 96
        %v1449 = vpop.permute.xlu0 %1448
        %1450 = vrot.lane.b32.xlu0 %v1432, 96
        %v1451 = vpop.permute.xlu0 %1450
        %1452 = vrot.lane.b32.xlu0 %v1433, 96
        %v1453 = vpop.permute.xlu0 %1452
        %1454 = vrot.lane.b32.xlu0 %v1434, 96
        %v1455 = vpop.permute.xlu0 %1454
        %1456 = vrot.lane.b32.xlu0 %v1435, 96
        %v1457 = vpop.permute.xlu0 %1456
        %1458 = vrot.lane.b32.xlu0 %v1436, 96
        %v1459 = vpop.permute.xlu0 %1458
        %1460 = vrot.lane.b32.xlu0 %v1437, 96
        %v1461 = vpop.permute.xlu0 %1460
        %vm1470 = vcmask 1048320
        %1471 = vst.msk [vmem:[#allocation5] sm:$0xff] %vm1470, %v1447
        %1472 = vst.msk [vmem:[#allocation5 + $0x18] sm:$0xff] %vm1470, %v1449
        %1473 = vst.msk [vmem:[#allocation5 + $0x30] sm:$0xff] %vm1470, %v1451
        %1474 = vst.msk [vmem:[#allocation5 + $0x48] sm:$0xff] %vm1470, %v1453
        %1475 = vst.msk [vmem:[#allocation5 + $0x60] sm:$0xff] %vm1470, %v1455
        %1476 = vst.msk [vmem:[#allocation5 + $0x78] sm:$0xff] %vm1470, %v1457
        %1477 = vst.msk [vmem:[#allocation5 + $0x90] sm:$0xff] %vm1470, %v1459
        %1478 = vst.msk [vmem:[#allocation5 + $0xa8] sm:$0xff] %vm1470, %v1461
        %v1479 = vld [vmem:[#allocation4 + $0x9] sm:$0xff]
        %v1480 = vld [vmem:[#allocation4 + $0x11] sm:$0xff]
        %v1481 = vld [vmem:[#allocation4 + $0x19] sm:$0xff]
        %v1482 = vld [vmem:[#allocation4 + $0x21] sm:$0xff]
        %v1483 = vld [vmem:[#allocation4 + $0x29] sm:$0xff]
        %v1484 = vld [vmem:[#allocation4 + $0x31] sm:$0xff]
        %v1485 = vld [vmem:[#allocation4 + $0x39] sm:$0xff]
        %v1486 = vld [vmem:[#allocation4 + $0x41] sm:$0xff]
        %s1487 = scalar_lea.vmem %s3, 256
        %v1488 = vld [vmem:[%s1487] sm:$0xff]
        %v1489 = vld [vmem:[%s1487 + $0x8] sm:$0xff]
        %v1490 = vld [vmem:[%s1487 + $0x10] sm:$0xff]
        %v1491 = vld [vmem:[%s1487 + $0x18] sm:$0xff]
        %v1492 = vld [vmem:[%s1487 + $0x20] sm:$0xff]
        %v1493 = vld [vmem:[%s1487 + $0x28] sm:$0xff]
        %v1494 = vld [vmem:[%s1487 + $0x30] sm:$0xff]
        %v1495 = vld [vmem:[%s1487 + $0x38] sm:$0xff]
        %1497 = vset.pattern.permute.xlu0 0
        %1498 = vperm.xlu0 %1497, %v1488
        %v1499 = vpop.permute.xlu0 %1498
        %1502 = vset.pattern.permute.xlu0 0
        %1503 = vperm.xlu0 %1502, %v1489
        %v1504 = vpop.permute.xlu0 %1503
        %1507 = vset.pattern.permute.xlu0 0
        %1508 = vperm.xlu0 %1507, %v1490
        %v1509 = vpop.permute.xlu0 %1508
        %1512 = vset.pattern.permute.xlu0 0
        %1513 = vperm.xlu0 %1512, %v1491
        %v1514 = vpop.permute.xlu0 %1513
        %1517 = vset.pattern.permute.xlu0 0
        %1518 = vperm.xlu0 %1517, %v1492
        %v1519 = vpop.permute.xlu0 %1518
        %1522 = vset.pattern.permute.xlu0 0
        %1523 = vperm.xlu0 %1522, %v1493
        %v1524 = vpop.permute.xlu0 %1523
        %1527 = vset.pattern.permute.xlu0 0
        %1528 = vperm.xlu0 %1527, %v1494
        %v1529 = vpop.permute.xlu0 %1528
        %1532 = vset.pattern.permute.xlu0 0
        %1533 = vperm.xlu0 %1532, %v1495
        %v1534 = vpop.permute.xlu0 %1533
        %v1536 = vmul.f32 %v1479, %v1499
        %v1537 = vmul.f32 %v1480, %v1504
        %v1538 = vmul.f32 %v1481, %v1509
        %v1539 = vmul.f32 %v1482, %v1514
        %v1540 = vmul.f32 %v1483, %v1519
        %v1541 = vmul.f32 %v1484, %v1524
        %v1542 = vmul.f32 %v1485, %v1529
        %v1543 = vmul.f32 %v1486, %v1534
        %1544 = vst.msk [vmem:[#allocation5 + $0x8] sm:$0xff] %vm924, %v1536
        %1545 = vst.msk [vmem:[#allocation5 + $0x20] sm:$0xff] %vm924, %v1537
        %1546 = vst.msk [vmem:[#allocation5 + $0x38] sm:$0xff] %vm924, %v1538
        %1547 = vst.msk [vmem:[#allocation5 + $0x50] sm:$0xff] %vm924, %v1539
        %1548 = vst.msk [vmem:[#allocation5 + $0x68] sm:$0xff] %vm924, %v1540
        %1549 = vst.msk [vmem:[#allocation5 + $0x80] sm:$0xff] %vm924, %v1541
        %1550 = vst.msk [vmem:[#allocation5 + $0x98] sm:$0xff] %vm924, %v1542
        %1551 = vst.msk [vmem:[#allocation5 + $0xb0] sm:$0xff] %vm924, %v1543
        %v1552 = vld [vmem:[#allocation4 + $0xa] sm:$0xff]
        %v1553 = vld [vmem:[#allocation4 + $0x12] sm:$0xff]
        %v1554 = vld [vmem:[#allocation4 + $0x1a] sm:$0xff]
        %v1555 = vld [vmem:[#allocation4 + $0x22] sm:$0xff]
        %v1556 = vld [vmem:[#allocation4 + $0x2a] sm:$0xff]
        %v1557 = vld [vmem:[#allocation4 + $0x32] sm:$0xff]
        %v1558 = vld [vmem:[#allocation4 + $0x3a] sm:$0xff]
        %v1559 = vld [vmem:[#allocation4 + $0x42] sm:$0xff]
        %s1560 = scalar_lea.vmem %s3, 320
        %v1561 = vld [vmem:[%s1560] sm:$0xff]
        %v1562 = vld [vmem:[%s1560 + $0x8] sm:$0xff]
        %v1563 = vld [vmem:[%s1560 + $0x10] sm:$0xff]
        %v1564 = vld [vmem:[%s1560 + $0x18] sm:$0xff]
        %v1565 = vld [vmem:[%s1560 + $0x20] sm:$0xff]
        %v1566 = vld [vmem:[%s1560 + $0x28] sm:$0xff]
        %v1567 = vld [vmem:[%s1560 + $0x30] sm:$0xff]
        %v1568 = vld [vmem:[%s1560 + $0x38] sm:$0xff]
        %1570 = vset.pattern.permute.xlu0 0
        %1571 = vperm.xlu0 %1570, %v1561
        %v1572 = vpop.permute.xlu0 %1571
        %1575 = vset.pattern.permute.xlu0 0
        %1576 = vperm.xlu0 %1575, %v1562
        %v1577 = vpop.permute.xlu0 %1576
        %1580 = vset.pattern.permute.xlu0 0
        %1581 = vperm.xlu0 %1580, %v1563
        %v1582 = vpop.permute.xlu0 %1581
        %1585 = vset.pattern.permute.xlu0 0
        %1586 = vperm.xlu0 %1585, %v1564
        %v1587 = vpop.permute.xlu0 %1586
        %1590 = vset.pattern.permute.xlu0 0
        %1591 = vperm.xlu0 %1590, %v1565
        %v1592 = vpop.permute.xlu0 %1591
        %1595 = vset.pattern.permute.xlu0 0
        %1596 = vperm.xlu0 %1595, %v1566
        %v1597 = vpop.permute.xlu0 %1596
        %1600 = vset.pattern.permute.xlu0 0
        %1601 = vperm.xlu0 %1600, %v1567
        %v1602 = vpop.permute.xlu0 %1601
        %1605 = vset.pattern.permute.xlu0 0
        %1606 = vperm.xlu0 %1605, %v1568
        %v1607 = vpop.permute.xlu0 %1606
        %v1609 = vmul.f32 %v1552, %v1572
        %v1610 = vmul.f32 %v1553, %v1577
        %v1611 = vmul.f32 %v1554, %v1582
        %v1612 = vmul.f32 %v1555, %v1587
        %v1613 = vmul.f32 %v1556, %v1592
        %v1614 = vmul.f32 %v1557, %v1597
        %v1615 = vmul.f32 %v1558, %v1602
        %v1616 = vmul.f32 %v1559, %v1607
        %1625 = vrot.lane.b32.xlu0 %v1609, 32
        %v1626 = vpop.permute.xlu0 %1625
        %1627 = vrot.lane.b32.xlu0 %v1610, 32
        %v1628 = vpop.permute.xlu0 %1627
        %1629 = vrot.lane.b32.xlu0 %v1611, 32
        %v1630 = vpop.permute.xlu0 %1629
        %1631 = vrot.lane.b32.xlu0 %v1612, 32
        %v1632 = vpop.permute.xlu0 %1631
        %1633 = vrot.lane.b32.xlu0 %v1613, 32
        %v1634 = vpop.permute.xlu0 %1633
        %1635 = vrot.lane.b32.xlu0 %v1614, 32
        %v1636 = vpop.permute.xlu0 %1635
        %1637 = vrot.lane.b32.xlu0 %v1615, 32
        %v1638 = vpop.permute.xlu0 %1637
        %1639 = vrot.lane.b32.xlu0 %v1616, 32
        %v1640 = vpop.permute.xlu0 %1639
        %1649 = vst.msk [vmem:[#allocation5 + $0x8] sm:$0xff] %vm1258, %v1626
        %1650 = vst.msk [vmem:[#allocation5 + $0x20] sm:$0xff] %vm1258, %v1628
        %1651 = vst.msk [vmem:[#allocation5 + $0x38] sm:$0xff] %vm1258, %v1630
        %1652 = vst.msk [vmem:[#allocation5 + $0x50] sm:$0xff] %vm1258, %v1632
        %1653 = vst.msk [vmem:[#allocation5 + $0x68] sm:$0xff] %vm1258, %v1634
        %1654 = vst.msk [vmem:[#allocation5 + $0x80] sm:$0xff] %vm1258, %v1636
        %1655 = vst.msk [vmem:[#allocation5 + $0x98] sm:$0xff] %vm1258, %v1638
        %1656 = vst.msk [vmem:[#allocation5 + $0xb0] sm:$0xff] %vm1258, %v1640
        %v1657 = vld [vmem:[#allocation4 + $0x10] sm:$0xff]
        %v1658 = vld [vmem:[#allocation4 + $0x18] sm:$0xff]
        %v1659 = vld [vmem:[#allocation4 + $0x20] sm:$0xff]
        %v1660 = vld [vmem:[#allocation4 + $0x28] sm:$0xff]
        %v1661 = vld [vmem:[#allocation4 + $0x30] sm:$0xff]
        %v1662 = vld [vmem:[#allocation4 + $0x38] sm:$0xff]
        %v1663 = vld [vmem:[#allocation4 + $0x40] sm:$0xff]
        %v1664 = vld [vmem:[#allocation4 + $0x48] sm:$0xff]
        %s1665 = scalar_lea.vmem %s3, 384
        %v1666 = vld [vmem:[%s1665] sm:$0xff]
        %v1667 = vld [vmem:[%s1665 + $0x8] sm:$0xff]
        %v1668 = vld [vmem:[%s1665 + $0x10] sm:$0xff]
        %v1669 = vld [vmem:[%s1665 + $0x18] sm:$0xff]
        %v1670 = vld [vmem:[%s1665 + $0x20] sm:$0xff]
        %v1671 = vld [vmem:[%s1665 + $0x28] sm:$0xff]
        %v1672 = vld [vmem:[%s1665 + $0x30] sm:$0xff]
        %v1673 = vld [vmem:[%s1665 + $0x38] sm:$0xff]
        %1675 = vset.pattern.permute.xlu0 0
        %1676 = vperm.xlu0 %1675, %v1666
        %v1677 = vpop.permute.xlu0 %1676
        %1680 = vset.pattern.permute.xlu0 0
        %1681 = vperm.xlu0 %1680, %v1667
        %v1682 = vpop.permute.xlu0 %1681
        %1685 = vset.pattern.permute.xlu0 0
        %1686 = vperm.xlu0 %1685, %v1668
        %v1687 = vpop.permute.xlu0 %1686
        %1690 = vset.pattern.permute.xlu0 0
        %1691 = vperm.xlu0 %1690, %v1669
        %v1692 = vpop.permute.xlu0 %1691
        %1695 = vset.pattern.permute.xlu0 0
        %1696 = vperm.xlu0 %1695, %v1670
        %v1697 = vpop.permute.xlu0 %1696
        %1700 = vset.pattern.permute.xlu0 0
        %1701 = vperm.xlu0 %1700, %v1671
        %v1702 = vpop.permute.xlu0 %1701
        %1705 = vset.pattern.permute.xlu0 0
        %1706 = vperm.xlu0 %1705, %v1672
        %v1707 = vpop.permute.xlu0 %1706
        %1710 = vset.pattern.permute.xlu0 0
        %1711 = vperm.xlu0 %1710, %v1673
        %v1712 = vpop.permute.xlu0 %1711
        %v1714 = vmul.f32 %v1657, %v1677
        %v1715 = vmul.f32 %v1658, %v1682
        %v1716 = vmul.f32 %v1659, %v1687
        %v1717 = vmul.f32 %v1660, %v1692
        %v1718 = vmul.f32 %v1661, %v1697
        %v1719 = vmul.f32 %v1662, %v1702
        %v1720 = vmul.f32 %v1663, %v1707
        %v1721 = vmul.f32 %v1664, %v1712
        %1730 = vrot.lane.b32.xlu0 %v1714, 64
        %v1731 = vpop.permute.xlu0 %1730
        %1732 = vrot.lane.b32.xlu0 %v1715, 64
        %v1733 = vpop.permute.xlu0 %1732
        %1734 = vrot.lane.b32.xlu0 %v1716, 64
        %v1735 = vpop.permute.xlu0 %1734
        %1736 = vrot.lane.b32.xlu0 %v1717, 64
        %v1737 = vpop.permute.xlu0 %1736
        %1738 = vrot.lane.b32.xlu0 %v1718, 64
        %v1739 = vpop.permute.xlu0 %1738
        %1740 = vrot.lane.b32.xlu0 %v1719, 64
        %v1741 = vpop.permute.xlu0 %1740
        %1742 = vrot.lane.b32.xlu0 %v1720, 64
        %v1743 = vpop.permute.xlu0 %1742
        %1744 = vrot.lane.b32.xlu0 %v1721, 64
        %v1745 = vpop.permute.xlu0 %1744
        %1754 = vst.msk [vmem:[#allocation5 + $0x8] sm:$0xff] %vm1364, %v1731
        %1755 = vst.msk [vmem:[#allocation5 + $0x20] sm:$0xff] %vm1364, %v1733
        %1756 = vst.msk [vmem:[#allocation5 + $0x38] sm:$0xff] %vm1364, %v1735
        %1757 = vst.msk [vmem:[#allocation5 + $0x50] sm:$0xff] %vm1364, %v1737
        %1758 = vst.msk [vmem:[#allocation5 + $0x68] sm:$0xff] %vm1364, %v1739
        %1759 = vst.msk [vmem:[#allocation5 + $0x80] sm:$0xff] %vm1364, %v1741
        %1760 = vst.msk [vmem:[#allocation5 + $0x98] sm:$0xff] %vm1364, %v1743
        %1761 = vst.msk [vmem:[#allocation5 + $0xb0] sm:$0xff] %vm1364, %v1745
        %v1762 = vld [vmem:[#allocation4 + $0x11] sm:$0xff]
        %v1763 = vld [vmem:[#allocation4 + $0x19] sm:$0xff]
        %v1764 = vld [vmem:[#allocation4 + $0x21] sm:$0xff]
        %v1765 = vld [vmem:[#allocation4 + $0x29] sm:$0xff]
        %v1766 = vld [vmem:[#allocation4 + $0x31] sm:$0xff]
        %v1767 = vld [vmem:[#allocation4 + $0x39] sm:$0xff]
        %v1768 = vld [vmem:[#allocation4 + $0x41] sm:$0xff]
        %v1769 = vld [vmem:[#allocation4 + $0x49] sm:$0xff]
        %s1770 = scalar_lea.vmem %s3, 448
        %v1771 = vld [vmem:[%s1770] sm:$0xff]
        %v1772 = vld [vmem:[%s1770 + $0x8] sm:$0xff]
        %v1773 = vld [vmem:[%s1770 + $0x10] sm:$0xff]
        %v1774 = vld [vmem:[%s1770 + $0x18] sm:$0xff]
        %v1775 = vld [vmem:[%s1770 + $0x20] sm:$0xff]
        %v1776 = vld [vmem:[%s1770 + $0x28] sm:$0xff]
        %v1777 = vld [vmem:[%s1770 + $0x30] sm:$0xff]
        %v1778 = vld [vmem:[%s1770 + $0x38] sm:$0xff]
        %1780 = vset.pattern.permute.xlu0 0
        %1781 = vperm.xlu0 %1780, %v1771
        %v1782 = vpop.permute.xlu0 %1781
        %1785 = vset.pattern.permute.xlu0 0
        %1786 = vperm.xlu0 %1785, %v1772
        %v1787 = vpop.permute.xlu0 %1786
        %1790 = vset.pattern.permute.xlu0 0
        %1791 = vperm.xlu0 %1790, %v1773
        %v1792 = vpop.permute.xlu0 %1791
        %1795 = vset.pattern.permute.xlu0 0
        %1796 = vperm.xlu0 %1795, %v1774
        %v1797 = vpop.permute.xlu0 %1796
        %1800 = vset.pattern.permute.xlu0 0
        %1801 = vperm.xlu0 %1800, %v1775
        %v1802 = vpop.permute.xlu0 %1801
        %1805 = vset.pattern.permute.xlu0 0
        %1806 = vperm.xlu0 %1805, %v1776
        %v1807 = vpop.permute.xlu0 %1806
        %1810 = vset.pattern.permute.xlu0 0
        %1811 = vperm.xlu0 %1810, %v1777
        %v1812 = vpop.permute.xlu0 %1811
        %1815 = vset.pattern.permute.xlu0 0
        %1816 = vperm.xlu0 %1815, %v1778
        %v1817 = vpop.permute.xlu0 %1816
        %v1819 = vmul.f32 %v1762, %v1782
        %v1820 = vmul.f32 %v1763, %v1787
        %v1821 = vmul.f32 %v1764, %v1792
        %v1822 = vmul.f32 %v1765, %v1797
        %v1823 = vmul.f32 %v1766, %v1802
        %v1824 = vmul.f32 %v1767, %v1807
        %v1825 = vmul.f32 %v1768, %v1812
        %v1826 = vmul.f32 %v1769, %v1817
        %1835 = vrot.lane.b32.xlu0 %v1819, 96
        %v1836 = vpop.permute.xlu0 %1835
        %1837 = vrot.lane.b32.xlu0 %v1820, 96
        %v1838 = vpop.permute.xlu0 %1837
        %1839 = vrot.lane.b32.xlu0 %v1821, 96
        %v1840 = vpop.permute.xlu0 %1839
        %1841 = vrot.lane.b32.xlu0 %v1822, 96
        %v1842 = vpop.permute.xlu0 %1841
        %1843 = vrot.lane.b32.xlu0 %v1823, 96
        %v1844 = vpop.permute.xlu0 %1843
        %1845 = vrot.lane.b32.xlu0 %v1824, 96
        %v1846 = vpop.permute.xlu0 %1845
        %1847 = vrot.lane.b32.xlu0 %v1825, 96
        %v1848 = vpop.permute.xlu0 %1847
        %1849 = vrot.lane.b32.xlu0 %v1826, 96
        %v1850 = vpop.permute.xlu0 %1849
        %1859 = vst.msk [vmem:[#allocation5 + $0x8] sm:$0xff] %vm1470, %v1836
        %1860 = vst.msk [vmem:[#allocation5 + $0x20] sm:$0xff] %vm1470, %v1838
        %1861 = vst.msk [vmem:[#allocation5 + $0x38] sm:$0xff] %vm1470, %v1840
        %1862 = vst.msk [vmem:[#allocation5 + $0x50] sm:$0xff] %vm1470, %v1842
        %1863 = vst.msk [vmem:[#allocation5 + $0x68] sm:$0xff] %vm1470, %v1844
        %1864 = vst.msk [vmem:[#allocation5 + $0x80] sm:$0xff] %vm1470, %v1846
        %1865 = vst.msk [vmem:[#allocation5 + $0x98] sm:$0xff] %vm1470, %v1848
        %1866 = vst.msk [vmem:[#allocation5 + $0xb0] sm:$0xff] %vm1470, %v1850
        %v1867 = vld [vmem:[#allocation4 + $0x12] sm:$0xff]
        %v1868 = vld [vmem:[#allocation4 + $0x1a] sm:$0xff]
        %v1869 = vld [vmem:[#allocation4 + $0x22] sm:$0xff]
        %v1870 = vld [vmem:[#allocation4 + $0x2a] sm:$0xff]
        %v1871 = vld [vmem:[#allocation4 + $0x32] sm:$0xff]
        %v1872 = vld [vmem:[#allocation4 + $0x3a] sm:$0xff]
        %v1873 = vld [vmem:[#allocation4 + $0x42] sm:$0xff]
        %v1874 = vld [vmem:[#allocation4 + $0x4a] sm:$0xff]
        %s1875 = scalar_lea.vmem %s3, 512
        %v1876 = vld [vmem:[%s1875] sm:$0xff]
        %v1877 = vld [vmem:[%s1875 + $0x8] sm:$0xff]
        %v1878 = vld [vmem:[%s1875 + $0x10] sm:$0xff]
        %v1879 = vld [vmem:[%s1875 + $0x18] sm:$0xff]
        %v1880 = vld [vmem:[%s1875 + $0x20] sm:$0xff]
        %v1881 = vld [vmem:[%s1875 + $0x28] sm:$0xff]
        %v1882 = vld [vmem:[%s1875 + $0x30] sm:$0xff]
        %v1883 = vld [vmem:[%s1875 + $0x38] sm:$0xff]
        %1885 = vset.pattern.permute.xlu0 0
        %1886 = vperm.xlu0 %1885, %v1876
        %v1887 = vpop.permute.xlu0 %1886
        %1890 = vset.pattern.permute.xlu0 0
        %1891 = vperm.xlu0 %1890, %v1877
        %v1892 = vpop.permute.xlu0 %1891
        %1895 = vset.pattern.permute.xlu0 0
        %1896 = vperm.xlu0 %1895, %v1878
        %v1897 = vpop.permute.xlu0 %1896
        %1900 = vset.pattern.permute.xlu0 0
        %1901 = vperm.xlu0 %1900, %v1879
        %v1902 = vpop.permute.xlu0 %1901
        %1905 = vset.pattern.permute.xlu0 0
        %1906 = vperm.xlu0 %1905, %v1880
        %v1907 = vpop.permute.xlu0 %1906
        %1910 = vset.pattern.permute.xlu0 0
        %1911 = vperm.xlu0 %1910, %v1881
        %v1912 = vpop.permute.xlu0 %1911
        %1915 = vset.pattern.permute.xlu0 0
        %1916 = vperm.xlu0 %1915, %v1882
        %v1917 = vpop.permute.xlu0 %1916
        %1920 = vset.pattern.permute.xlu0 0
        %1921 = vperm.xlu0 %1920, %v1883
        %v1922 = vpop.permute.xlu0 %1921
        %v1924 = vmul.f32 %v1867, %v1887
        %v1925 = vmul.f32 %v1868, %v1892
        %v1926 = vmul.f32 %v1869, %v1897
        %v1927 = vmul.f32 %v1870, %v1902
        %v1928 = vmul.f32 %v1871, %v1907
        %v1929 = vmul.f32 %v1872, %v1912
        %v1930 = vmul.f32 %v1873, %v1917
        %v1931 = vmul.f32 %v1874, %v1922
        %1932 = vst.msk [vmem:[#allocation5 + $0x10] sm:$0xff] %vm924, %v1924
        %1933 = vst.msk [vmem:[#allocation5 + $0x28] sm:$0xff] %vm924, %v1925
        %1934 = vst.msk [vmem:[#allocation5 + $0x40] sm:$0xff] %vm924, %v1926
        %1935 = vst.msk [vmem:[#allocation5 + $0x58] sm:$0xff] %vm924, %v1927
        %1936 = vst.msk [vmem:[#allocation5 + $0x70] sm:$0xff] %vm924, %v1928
        %1937 = vst.msk [vmem:[#allocation5 + $0x88] sm:$0xff] %vm924, %v1929
        %1938 = vst.msk [vmem:[#allocation5 + $0xa0] sm:$0xff] %vm924, %v1930
        %1939 = vst.msk [vmem:[#allocation5 + $0xb8] sm:$0xff] %vm924, %v1931
        %v1940 = vld [vmem:[#allocation5] sm:$0xff]
        %v1941 = vld [vmem:[#allocation5 + $0x8] sm:$0xff]
        %v1942 = vld [vmem:[#allocation5 + $0x10] sm:$0xff]
        %v1943 = vld [vmem:[#allocation5 + $0x18] sm:$0xff]
        %v1944 = vld [vmem:[#allocation5 + $0x20] sm:$0xff]
        %v1945 = vld [vmem:[#allocation5 + $0x28] sm:$0xff]
        %v1946 = vld [vmem:[#allocation5 + $0x30] sm:$0xff]
        %v1947 = vld [vmem:[#allocation5 + $0x38] sm:$0xff]
        %v1948 = vld [vmem:[#allocation5 + $0x40] sm:$0xff]
        %v1949 = vld [vmem:[#allocation5 + $0x48] sm:$0xff]
        %v1950 = vld [vmem:[#allocation5 + $0x50] sm:$0xff]
        %v1951 = vld [vmem:[#allocation5 + $0x58] sm:$0xff]
        %v1952 = vld [vmem:[#allocation5 + $0x60] sm:$0xff]
        %v1953 = vld [vmem:[#allocation5 + $0x68] sm:$0xff]
        %v1954 = vld [vmem:[#allocation5 + $0x70] sm:$0xff]
        %v1955 = vld [vmem:[#allocation5 + $0x78] sm:$0xff]
        %v1956 = vld [vmem:[#allocation5 + $0x80] sm:$0xff]
        %v1957 = vld [vmem:[#allocation5 + $0x88] sm:$0xff]
        %v1958 = vld [vmem:[#allocation5 + $0x90] sm:$0xff]
        %v1959 = vld [vmem:[#allocation5 + $0x98] sm:$0xff]
        %v1960 = vld [vmem:[#allocation5 + $0xa0] sm:$0xff]
        %v1961 = vld [vmem:[#allocation5 + $0xa8] sm:$0xff]
        %v1962 = vld [vmem:[#allocation5 + $0xb0] sm:$0xff]
        %v1963 = vld [vmem:[#allocation5 + $0xb8] sm:$0xff]
        %v1964 = vpack.c.bf16 %v1943, %v1940
        %v1965 = vpack.c.bf16 %v1944, %v1941
        %v1966 = vpack.c.bf16 %v1945, %v1942
        %v1967 = vpack.c.bf16 %v1949, %v1946
        %v1968 = vpack.c.bf16 %v1950, %v1947
        %v1969 = vpack.c.bf16 %v1951, %v1948
        %v1970 = vpack.c.bf16 %v1955, %v1952
        %v1971 = vpack.c.bf16 %v1956, %v1953
        %v1972 = vpack.c.bf16 %v1957, %v1954
        %v1973 = vpack.c.bf16 %v1961, %v1958
        %v1974 = vpack.c.bf16 %v1962, %v1959
        %v1975 = vpack.c.bf16 %v1963, %v1960
        %v1976 = vld [vmem:[%s4] sm:$0xf]
        %v1977 = vld [vmem:[%s4 + $0x4] sm:$0xf]
        %v1978 = vld [vmem:[%s4 + $0x8] sm:$0xf]
        %v1979 = vld [vmem:[%s4 + $0xc] sm:$0xf]
        %v1980 = vld [vmem:[%s4 + $0x10] sm:$0xf]
        %v1981 = vld [vmem:[%s4 + $0x14] sm:$0xf]
        %v1982 = vld [vmem:[%s4 + $0x18] sm:$0xf]
        %v1983 = vld [vmem:[%s4 + $0x1c] sm:$0xf]
        %v1984 = vld [vmem:[%s4 + $0x20] sm:$0xf]
        %v1985 = vld [vmem:[%s4 + $0x24] sm:$0xf]
        %v1986 = vld [vmem:[%s4 + $0x28] sm:$0xf]
        %v1987 = vld [vmem:[%s4 + $0x2c] sm:$0xf]
        %v1988 = vld [vmem:[%s4 + $0x30] sm:$0xf]
        %v1989 = vld [vmem:[%s4 + $0x34] sm:$0xf]
        %v1990 = vld [vmem:[%s4 + $0x38] sm:$0xf]
        %v1991 = vld [vmem:[%s4 + $0x3c] sm:$0xf]
        %v1992 = vld [vmem:[%s4 + $0x40] sm:$0xf]
        %v1993 = vld [vmem:[%s4 + $0x44] sm:$0xf]
        %v1994 = vld [vmem:[%s4 + $0x48] sm:$0xf]
        %v1995 = vld [vmem:[%s4 + $0x4c] sm:$0xf]
        %v1996 = vld [vmem:[%s4 + $0x50] sm:$0xf]
        %v1997 = vld [vmem:[%s4 + $0x54] sm:$0xf]
        %v1998 = vld [vmem:[%s4 + $0x58] sm:$0xf]
        %v1999 = vld [vmem:[%s4 + $0x5c] sm:$0xf]
        %v2000 = vld [vmem:[%s4 + $0x60] sm:$0xf]
        %v2001 = vld [vmem:[%s4 + $0x64] sm:$0xf]
        %v2002 = vld [vmem:[%s4 + $0x68] sm:$0xf]
        %v2003 = vld [vmem:[%s4 + $0x6c] sm:$0xf]
        %v2004 = vld [vmem:[%s4 + $0x70] sm:$0xf]
        %v2005 = vld [vmem:[%s4 + $0x74] sm:$0xf]
        %v2006 = vld [vmem:[%s4 + $0x78] sm:$0xf]
        %v2007 = vld [vmem:[%s4 + $0x7c] sm:$0xf]
        %v2008 = vld [vmem:[%s4 + $0x80] sm:$0xf]
        %v2009 = vld [vmem:[%s4 + $0x84] sm:$0xf]
        %v2010 = vld [vmem:[%s4 + $0x88] sm:$0xf]
        %v2011 = vld [vmem:[%s4 + $0x8c] sm:$0xf]
        %v2012 = vld [vmem:[%s5] sm:$0x1]
        %v2014 = vlaneseq
        %v2015 = vshrl.u32 %v2014, 7
        %v2016 = vsub.s32 0, %v2015
        %v2017 = vrot.slane %v2012, %v2016
        %v2055 = vunpack.c.l.b16 %v1976
        %v2056 = vunpack.c.l.b16 %v1977
        %v2057 = vunpack.c.l.b16 %v1978
        %v2058 = vunpack.c.l.b16 %v1979
        %v2059 = vunpack.c.l.b16 %v1980
        %v2060 = vunpack.c.l.b16 %v1981
        %v2061 = vunpack.c.l.b16 %v1982
        %v2062 = vunpack.c.l.b16 %v1983
        %v2063 = vunpack.c.l.b16 %v1984
        %v2064 = vunpack.c.l.b16 %v1985
        %v2065 = vunpack.c.l.b16 %v1986
        %v2066 = vunpack.c.l.b16 %v1987
        %v2067 = vunpack.c.l.b16 %v1988
        %v2068 = vunpack.c.l.b16 %v1989
        %v2069 = vunpack.c.l.b16 %v1990
        %v2070 = vunpack.c.l.b16 %v1991
        %v2071 = vunpack.c.l.b16 %v1992
        %v2072 = vunpack.c.l.b16 %v1993
        %v2073 = vunpack.c.l.b16 %v1994
        %v2074 = vunpack.c.l.b16 %v1995
        %v2075 = vunpack.c.l.b16 %v1996
        %v2076 = vunpack.c.l.b16 %v1997
        %v2077 = vunpack.c.l.b16 %v1998
        %v2078 = vunpack.c.l.b16 %v1999
        %v2079 = vunpack.c.l.b16 %v2000
        %v2080 = vunpack.c.l.b16 %v2001
        %v2081 = vunpack.c.l.b16 %v2002
        %v2082 = vunpack.c.l.b16 %v2003
        %v2083 = vunpack.c.l.b16 %v2004
        %v2084 = vunpack.c.l.b16 %v2005
        %v2085 = vunpack.c.l.b16 %v2006
        %v2086 = vunpack.c.l.b16 %v2007
        %v2087 = vunpack.c.l.b16 %v2008
        %v2088 = vunpack.c.l.b16 %v2009
        %v2089 = vunpack.c.l.b16 %v2010
        %v2090 = vunpack.c.l.b16 %v2011
        %v2091 = vpack.c.b16 %v2056, %v2055
        %v2092 = vpack.c.b16 %v2058, %v2057
        %v2093 = vpack.c.b16 %v2060, %v2059
        %v2094 = vpack.c.b16 %v2062, %v2061
        %v2095 = vpack.c.b16 %v2064, %v2063
        %v2096 = vpack.c.b16 %v2066, %v2065
        %v2097 = vpack.c.b16 %v2068, %v2067
        %v2098 = vpack.c.b16 %v2070, %v2069
        %v2099 = vpack.c.b16 %v2072, %v2071
        %v2100 = vpack.c.b16 %v2074, %v2073
        %v2101 = vpack.c.b16 %v2076, %v2075
        %v2102 = vpack.c.b16 %v2078, %v2077
        %v2103 = vpack.c.b16 %v2080, %v2079
        %v2104 = vpack.c.b16 %v2082, %v2081
        %v2105 = vpack.c.b16 %v2084, %v2083
        %v2106 = vpack.c.b16 %v2086, %v2085
        %v2107 = vpack.c.b16 %v2088, %v2087
        %v2108 = vpack.c.b16 %v2090, %v2089
        %v2128 = vsel %vm924, %v1966, 0
        %v2131 = vsel %vm924, %v1969, 0
        %v2134 = vsel %vm924, %v1972, 0
        %v2137 = vsel %vm924, %v1975, 0
        %2139 = vmatprep.subr.bf16.mxu0 0
        %2140 = vmatpush1.bf16.msra.mxu0 %v2091
        %2141 = vmatprep.subr.bf16.mxu0 0
        %2142 = vmatpush1.bf16.msra.mxu0 %v2092
        %2143 = vmatprep.subr.bf16.mxu0 0
        %2144 = vmatpush1.bf16.msra.mxu0 %v2093
        %2145 = vmatprep.subr.bf16.mxu0 0
        %2146 = vmatpush1.bf16.msra.mxu0 %v2094
        %2147 = vmatprep.subr.bf16.mxu0 0
        %2148 = vmatpush1.bf16.msra.mxu0 %v2095
        %2149 = vmatprep.subr.bf16.mxu0 0
        %2150 = vmatpush1.bf16.msra.mxu0 %v2096
        %2151 = vmatprep.subr.bf16.mxu0 0
        %2152 = vmatpush1.bf16.msra.mxu0 %v2097
        %2153 = vmatprep.subr.bf16.mxu0 0
        %2154 = vmatpush1.bf16.msra.mxu0 %v2098
        %2155 = vmatprep.subr.bf16.mxu0 0
        %2156 = vmatpush1.bf16.msra.mxu0 %v2099
        %2157 = vmatprep.subr.bf16.mxu0 0
        %2158 = vmatpush1.bf16.msra.mxu0 %v2100
        %2159 = vmatprep.subr.bf16.mxu0 0
        %2160 = vmatpush1.bf16.msra.mxu0 %v2101
        %2161 = vmatprep.subr.bf16.mxu0 0
        %2162 = vmatpush1.bf16.msra.mxu0 %v2102
        %2163 = vmatprep.subr.bf16.mxu0 0
        %2164 = vmatpush1.bf16.msra.mxu0 %v2103
        %2165 = vmatprep.subr.bf16.mxu0 0
        %2166 = vmatpush1.bf16.msra.mxu0 %v2104
        %2167 = vmatprep.subr.bf16.mxu0 0
        %2168 = vmatpush1.bf16.msra.mxu0 %v2105
        %2169 = vmatprep.subr.bf16.mxu0 0
        %2170 = vmatpush1.bf16.msra.mxu0 %v2106
        %2171 = vmatprep.mubr.bf16.mxu0 %v1965
        %2172 = vmatmul.mubr.bf16.gmra.mrb[0].mxu0 %v1964
        %v2173 = vpop.f32.mrb[0].mxu0
        %v2174 = vadd.f32 %v2017, %v2173
        %v2175 = vpop.f32.mrb[0].mxu0
        %v2176 = vpop.f32.mrb[0].mxu0
        %v2177 = vadd.f32 %v2017, %v2176
        %v2178 = vpop.f32.mrb[0].mxu0
        %2179 = vmatprep.mubr.bf16.mxu0 %v1968
        %2180 = vmatmul.mubr.bf16.gmra.mrb[0].mxu0 %v1967
        %v2181 = vpop.f32.mrb[0].mxu0
        %v2182 = vadd.f32 %v2017, %v2181
        %v2183 = vpop.f32.mrb[0].mxu0
        %v2184 = vpop.f32.mrb[0].mxu0
        %v2185 = vadd.f32 %v2017, %v2184
        %v2186 = vpop.f32.mrb[0].mxu0
        %2187 = vmatprep.mubr.bf16.mxu0 %v1971
        %2188 = vmatmul.mubr.bf16.gmra.mrb[0].mxu0 %v1970
        %v2189 = vpop.f32.mrb[0].mxu0
        %v2190 = vadd.f32 %v2017, %v2189
        %v2191 = vpop.f32.mrb[0].mxu0
        %v2192 = vpop.f32.mrb[0].mxu0
        %v2193 = vadd.f32 %v2017, %v2192
        %v2194 = vpop.f32.mrb[0].mxu0
        %2195 = vmatprep.mubr.bf16.mxu0 %v1974
        %2196 = vmatmul.mubr.bf16.gmra.mrb[0].mxu0 %v1973
        %v2197 = vpop.f32.mrb[0].mxu0
        %v2198 = vadd.f32 %v2017, %v2197
        %v2199 = vpop.f32.mrb[0].mxu0
        %v2200 = vpop.f32.mrb[0].mxu0
        %v2201 = vadd.f32 %v2017, %v2200
        %v2202 = vpop.f32.mrb[0].mxu0
        %2203 = vdwg.mxu0
        %2204 = vmatprep.subr.bf16.mxu0 0
        %2205 = vmatpush1.bf16.msra.mxu0 %v2107
        %2206 = vmatprep.subr.bf16.mxu0 0
        %2207 = vmatpush1.bf16.msra.mxu0 %v2108
        %2208 = vmatprep.subr.bf16.mxu0 0
        %2209 = vmatpush1.bf16.msra.mxu0 0
        %2210 = vmatprep.subr.bf16.mxu0 0
        %2211 = vmatpush1.bf16.msra.mxu0 0
        %2212 = vmatprep.subr.bf16.mxu0 0
        %2213 = vmatpush1.bf16.msra.mxu0 0
        %2214 = vmatprep.subr.bf16.mxu0 0
        %2215 = vmatpush1.bf16.msra.mxu0 0
        %2216 = vmatprep.subr.bf16.mxu0 0
        %2217 = vmatpush1.bf16.msra.mxu0 0
        %2218 = vmatprep.subr.bf16.mxu0 0
        %2219 = vmatpush1.bf16.msra.mxu0 0
        %2220 = vmatprep.subr.bf16.mxu0 0
        %2221 = vmatpush1.bf16.msra.mxu0 0
        %2222 = vmatprep.subr.bf16.mxu0 0
        %2223 = vmatpush1.bf16.msra.mxu0 0
        %2224 = vmatprep.subr.bf16.mxu0 0
        %2225 = vmatpush1.bf16.msra.mxu0 0
        %2226 = vmatprep.subr.bf16.mxu0 0
        %2227 = vmatpush1.bf16.msra.mxu0 0
        %2228 = vmatprep.subr.bf16.mxu0 0
        %2229 = vmatpush1.bf16.msra.mxu0 0
        %2230 = vmatprep.subr.bf16.mxu0 0
        %2231 = vmatpush1.bf16.msra.mxu0 0
        %2232 = vmatprep.subr.bf16.mxu0 0
        %2233 = vmatpush1.bf16.msra.mxu0 0
        %2234 = vmatprep.subr.bf16.mxu0 0
        %2235 = vmatpush1.bf16.msra.mxu0 0
        %2236 = vmatprep.mubr.bf16.mxu0 0
        %2237 = vmatmul.mubr.bf16.gmra.mrb[0].mxu0 %v2128
        %v2238 = vpop.f32.mrb[0].mxu0
        %v2239 = vadd.f32 %v2174, %v2238
        %v2240 = vpop.f32.mrb[0].mxu0
        %v2241 = vpop.f32.mrb[0].mxu0
        %v2242 = vadd.f32 %v2177, %v2241
        %v2243 = vpop.f32.mrb[0].mxu0
        %2244 = vmatprep.mubr.bf16.mxu0 0
        %2245 = vmatmul.mubr.bf16.gmra.mrb[0].mxu0 %v2131
        %v2246 = vpop.f32.mrb[0].mxu0
        %v2247 = vadd.f32 %v2182, %v2246
        %v2248 = vpop.f32.mrb[0].mxu0
        %v2249 = vpop.f32.mrb[0].mxu0
        %v2250 = vadd.f32 %v2185, %v2249
        %v2251 = vpop.f32.mrb[0].mxu0
        %2252 = vmatprep.mubr.bf16.mxu0 0
        %2253 = vmatmul.mubr.bf16.gmra.mrb[0].mxu0 %v2134
        %v2254 = vpop.f32.mrb[0].mxu0
        %v2255 = vadd.f32 %v2190, %v2254
        %v2256 = vpop.f32.mrb[0].mxu0
        %v2257 = vpop.f32.mrb[0].mxu0
        %v2258 = vadd.f32 %v2193, %v2257
        %v2259 = vpop.f32.mrb[0].mxu0
        %2260 = vmatprep.mubr.bf16.mxu0 0
        %2261 = vmatmul.mubr.bf16.gmra.mrb[0].mxu0 %v2137
        %v2262 = vpop.f32.mrb[0].mxu0
        %v2263 = vadd.f32 %v2198, %v2262
        %v2264 = vpop.f32.mrb[0].mxu0
        %v2265 = vpop.f32.mrb[0].mxu0
        %v2266 = vadd.f32 %v2201, %v2265
        %v2267 = vpop.f32.mrb[0].mxu0
        %2268 = vdwg.mxu0
        %v2269 = vmax.f32 %v2239, 0.0
        %v2270 = vmax.f32 %v2242, 0.0
        %v2271 = vmax.f32 %v2247, 0.0
        %v2272 = vmax.f32 %v2250, 0.0
        %v2273 = vmax.f32 %v2255, 0.0
        %v2274 = vmax.f32 %v2258, 0.0
        %v2275 = vmax.f32 %v2263, 0.0
        %v2276 = vmax.f32 %v2266, 0.0
        %vm2277 = vcmask 520192
        %2278 = vst.msk [vmem:[#allocation8] sm:$0x1f] %vm2277, 0.0
        %2279 = vst.msk [vmem:[#allocation8 + $0x15] sm:$0x1f] %vm2277, 0.0
        %vm2280 = vcmask 523264
        %2281 = vst.msk [vmem:[#allocation6] sm:$0xff] %vm2280, %v2269
        %2282 = vst.msk [vmem:[#allocation6 + $0x8] sm:$0xff] %vm2280, %v2270
        %2283 = vst.msk [vmem:[#allocation6 + $0x10] sm:$0xff] %vm2280, %v2271
        %2284 = vst.msk [vmem:[#allocation6 + $0x18] sm:$0xff] %vm2280, %v2272
        %2285 = vst.msk [vmem:[#allocation6 + $0x20] sm:$0xff] %vm2280, %v2273
        %2286 = vst.msk [vmem:[#allocation6 + $0x28] sm:$0xff] %vm2280, %v2274
        %2287 = vst.msk [vmem:[#allocation6 + $0x30] sm:$0xff] %vm2280, %v2275
        %2288 = vst.msk [vmem:[#allocation6 + $0x38] sm:$0xff] %vm2280, %v2276
        %v2289 = vld [vmem:[#allocation6] ss:$2 sm:$0xff]
        %s2290 = scalar_lea.vmem [#allocation6], 16
        %v2291 = vld [vmem:[%s2290] ss:$2 sm:$0xff]
        %s2292 = scalar_lea.vmem [#allocation6], 32
        %v2293 = vld [vmem:[%s2292] ss:$2 sm:$0xff]
        %s2294 = scalar_lea.vmem [#allocation6], 48
        %v2295 = vld [vmem:[%s2294] ss:$2 sm:$0xff]
        %s2296 = scalar_lea.vmem [#allocation6], 1
        %v2297 = vld [vmem:[%s2296] ss:$2 sm:$0xff]
        %s2298 = scalar_lea.vmem [#allocation6], 17
        %v2299 = vld [vmem:[%s2298] ss:$2 sm:$0xff]
        %s2300 = scalar_lea.vmem [#allocation6], 33
        %v2301 = vld [vmem:[%s2300] ss:$2 sm:$0xff]
        %s2302 = scalar_lea.vmem [#allocation6], 49
        %v2303 = vld [vmem:[%s2302] ss:$2 sm:$0xff]
        %v2304 = vmax.f32 %v2289, %v2297
        %v2305 = vmax.f32 %v2291, %v2299
        %v2306 = vmax.f32 %v2293, %v2301
        %v2307 = vmax.f32 %v2295, %v2303
        %2308 = vst.msk [vmem:[#allocation7] sm:$0xff] %vm2280, %v2304
        %2309 = vst.msk [vmem:[#allocation7 + $0x8] sm:$0xff] %vm2280, %v2305
        %2310 = vst.msk [vmem:[#allocation7 + $0x10] sm:$0xff] %vm2280, %v2306
        %2311 = vst.msk [vmem:[#allocation7 + $0x18] sm:$0xff] %vm2280, %v2307
        %v2312 = vld [vmem:[#allocation7] sm:$0xf]
        %v2313 = vld [vmem:[#allocation7 + $0x4] sm:$0xf]
        %v2314 = vmax.f32 %v2312, %v2313
        %vm2315 = vcmask 519168
        %2316 = vst.msk [vmem:[#allocation8 + $0x5] sm:$0xf] %vm2315, %v2314
        %v2317 = vld [vmem:[#allocation7 + $0x8] sm:$0xf]
        %v2318 = vld [vmem:[#allocation7 + $0xc] sm:$0xf]
        %v2319 = vmax.f32 %v2317, %v2318
        %2320 = vst.msk [vmem:[#allocation8 + $0x9] sm:$0xf] %vm2315, %v2319
        %v2321 = vld [vmem:[#allocation7 + $0x10] sm:$0xf]
        %v2322 = vld [vmem:[#allocation7 + $0x14] sm:$0xf]
        %v2323 = vmax.f32 %v2321, %v2322
        %2324 = vst.msk [vmem:[#allocation8 + $0xd] sm:$0xf] %vm2315, %v2323
        %v2325 = vld [vmem:[#allocation7 + $0x18] sm:$0xf]
        %v2326 = vld [vmem:[#allocation7 + $0x1c] sm:$0xf]
        %v2327 = vmax.f32 %v2325, %v2326
        %2328 = vst.msk [vmem:[#allocation8 + $0x11] sm:$0xf] %vm2315, %v2327
        %v2329 = vld [vmem:[#allocation8] sm:$0xff]
        %v2330 = vld [vmem:[#allocation8 + $0x8] sm:$0xff]
        %v2331 = vld [vmem:[%s6] sm:$0xff]
        %v2332 = vld [vmem:[%s6 + $0x8] sm:$0xff]
        %2334 = vset.pattern.permute.xlu0 0
        %2335 = vperm.xlu0 %2334, %v2331
        %v2336 = vpop.permute.xlu0 %2335
        %2339 = vset.pattern.permute.xlu0 0
        %2340 = vperm.xlu0 %2339, %v2332
        %v2341 = vpop.permute.xlu0 %2340
        %v2343 = vmul.f32 %v2329, %v2336
        %v2344 = vmul.f32 %v2330, %v2341
        %2345 = vst.msk [vmem:[#allocation9] sm:$0xff] %vm2280, %v2343
        %2346 = vst.msk [vmem:[#allocation9 + $0x28] sm:$0xff] %vm2280, %v2344
        %v2347 = vld [vmem:[#allocation8 + $0x1] sm:$0xff]
        %v2348 = vld [vmem:[#allocation8 + $0x9] sm:$0xff]
        %s2349 = scalar_lea.vmem %s6, 16
        %v2350 = vld [vmem:[%s2349] sm:$0xff]
        %v2351 = vld [vmem:[%s2349 + $0x8] sm:$0xff]
        %2353 = vset.pattern.permute.xlu0 0
        %2354 = vperm.xlu0 %2353, %v2350
        %v2355 = vpop.permute.xlu0 %2354
        %2358 = vset.pattern.permute.xlu0 0
        %2359 = vperm.xlu0 %2358, %v2351
        %v2360 = vpop.permute.xlu0 %2359
        %v2362 = vmul.f32 %v2347, %v2355
        %v2363 = vmul.f32 %v2348, %v2360
        %2366 = vrot.lane.b32.xlu0 %v2362, 64
        %v2367 = vpop.permute.xlu0 %2366
        %2368 = vrot.lane.b32.xlu0 %v2363, 64
        %v2369 = vpop.permute.xlu0 %2368
        %vm2372 = vcmask 1048064
        %2373 = vst.msk [vmem:[#allocation9] sm:$0xff] %vm2372, %v2367
        %2374 = vst.msk [vmem:[#allocation9 + $0x28] sm:$0xff] %vm2372, %v2369
        %v2375 = vld [vmem:[#allocation8 + $0x2] sm:$0xff]
        %v2376 = vld [vmem:[#allocation8 + $0xa] sm:$0xff]
        %s2377 = scalar_lea.vmem %s6, 32
        %v2378 = vld [vmem:[%s2377] sm:$0xff]
        %v2379 = vld [vmem:[%s2377 + $0x8] sm:$0xff]
        %2381 = vset.pattern.permute.xlu0 0
        %2382 = vperm.xlu0 %2381, %v2378
        %v2383 = vpop.permute.xlu0 %2382
        %2386 = vset.pattern.permute.xlu0 0
        %2387 = vperm.xlu0 %2386, %v2379
        %v2388 = vpop.permute.xlu0 %2387
        %v2390 = vmul.f32 %v2375, %v2383
        %v2391 = vmul.f32 %v2376, %v2388
        %2392 = vst.msk [vmem:[#allocation9 + $0x8] sm:$0xff] %vm2280, %v2390
        %2393 = vst.msk [vmem:[#allocation9 + $0x30] sm:$0xff] %vm2280, %v2391
        %v2394 = vld [vmem:[#allocation8 + $0x4] sm:$0xff]
        %v2395 = vld [vmem:[#allocation8 + $0xc] sm:$0xff]
        %s2396 = scalar_lea.vmem %s6, 48
        %v2397 = vld [vmem:[%s2396] sm:$0xff]
        %v2398 = vld [vmem:[%s2396 + $0x8] sm:$0xff]
        %2400 = vset.pattern.permute.xlu0 0
        %2401 = vperm.xlu0 %2400, %v2397
        %v2402 = vpop.permute.xlu0 %2401
        %2405 = vset.pattern.permute.xlu0 0
        %2406 = vperm.xlu0 %2405, %v2398
        %v2407 = vpop.permute.xlu0 %2406
        %v2409 = vmul.f32 %v2394, %v2402
        %v2410 = vmul.f32 %v2395, %v2407
        %2413 = vrot.lane.b32.xlu0 %v2409, 64
        %v2414 = vpop.permute.xlu0 %2413
        %2415 = vrot.lane.b32.xlu0 %v2410, 64
        %v2416 = vpop.permute.xlu0 %2415
        %2419 = vst.msk [vmem:[#allocation9 + $0x8] sm:$0xff] %vm2372, %v2414
        %2420 = vst.msk [vmem:[#allocation9 + $0x30] sm:$0xff] %vm2372, %v2416
        %v2421 = vld [vmem:[#allocation8 + $0x5] sm:$0xff]
        %v2422 = vld [vmem:[#allocation8 + $0xd] sm:$0xff]
        %s2423 = scalar_lea.vmem %s6, 64
        %v2424 = vld [vmem:[%s2423] sm:$0xff]
        %v2425 = vld [vmem:[%s2423 + $0x8] sm:$0xff]
        %2427 = vset.pattern.permute.xlu0 0
        %2428 = vperm.xlu0 %2427, %v2424
        %v2429 = vpop.permute.xlu0 %2428
        %2432 = vset.pattern.permute.xlu0 0
        %2433 = vperm.xlu0 %2432, %v2425
        %v2434 = vpop.permute.xlu0 %2433
        %v2436 = vmul.f32 %v2421, %v2429
        %v2437 = vmul.f32 %v2422, %v2434
        %2438 = vst.msk [vmem:[#allocation9 + $0x10] sm:$0xff] %vm2280, %v2436
        %2439 = vst.msk [vmem:[#allocation9 + $0x38] sm:$0xff] %vm2280, %v2437
        %v2440 = vld [vmem:[#allocation8 + $0x6] sm:$0xff]
        %v2441 = vld [vmem:[#allocation8 + $0xe] sm:$0xff]
        %s2442 = scalar_lea.vmem %s6, 80
        %v2443 = vld [vmem:[%s2442] sm:$0xff]
        %v2444 = vld [vmem:[%s2442 + $0x8] sm:$0xff]
        %2446 = vset.pattern.permute.xlu0 0
        %2447 = vperm.xlu0 %2446, %v2443
        %v2448 = vpop.permute.xlu0 %2447
        %2451 = vset.pattern.permute.xlu0 0
        %2452 = vperm.xlu0 %2451, %v2444
        %v2453 = vpop.permute.xlu0 %2452
        %v2455 = vmul.f32 %v2440, %v2448
        %v2456 = vmul.f32 %v2441, %v2453
        %2459 = vrot.lane.b32.xlu0 %v2455, 64
        %v2460 = vpop.permute.xlu0 %2459
        %2461 = vrot.lane.b32.xlu0 %v2456, 64
        %v2462 = vpop.permute.xlu0 %2461
        %2465 = vst.msk [vmem:[#allocation9 + $0x10] sm:$0xff] %vm2372, %v2460
        %2466 = vst.msk [vmem:[#allocation9 + $0x38] sm:$0xff] %vm2372, %v2462
        %v2467 = vld [vmem:[#allocation8 + $0x8] sm:$0xff]
        %v2468 = vld [vmem:[#allocation8 + $0x10] sm:$0xff]
        %s2469 = scalar_lea.vmem %s6, 96
        %v2470 = vld [vmem:[%s2469] sm:$0xff]
        %v2471 = vld [vmem:[%s2469 + $0x8] sm:$0xff]
        %2473 = vset.pattern.permute.xlu0 0
        %2474 = vperm.xlu0 %2473, %v2470
        %v2475 = vpop.permute.xlu0 %2474
        %2478 = vset.pattern.permute.xlu0 0
        %2479 = vperm.xlu0 %2478, %v2471
        %v2480 = vpop.permute.xlu0 %2479
        %v2482 = vmul.f32 %v2467, %v2475
        %v2483 = vmul.f32 %v2468, %v2480
        %2484 = vst.msk [vmem:[#allocation9 + $0x18] sm:$0xff] %vm2280, %v2482
        %2485 = vst.msk [vmem:[#allocation9 + $0x40] sm:$0xff] %vm2280, %v2483
        %v2486 = vld [vmem:[#allocation8 + $0x9] sm:$0xff]
        %v2487 = vld [vmem:[#allocation8 + $0x11] sm:$0xff]
        %s2488 = scalar_lea.vmem %s6, 112
        %v2489 = vld [vmem:[%s2488] sm:$0xff]
        %v2490 = vld [vmem:[%s2488 + $0x8] sm:$0xff]
        %2492 = vset.pattern.permute.xlu0 0
        %2493 = vperm.xlu0 %2492, %v2489
        %v2494 = vpop.permute.xlu0 %2493
        %2497 = vset.pattern.permute.xlu0 0
        %2498 = vperm.xlu0 %2497, %v2490
        %v2499 = vpop.permute.xlu0 %2498
        %v2501 = vmul.f32 %v2486, %v2494
        %v2502 = vmul.f32 %v2487, %v2499
        %2505 = vrot.lane.b32.xlu0 %v2501, 64
        %v2506 = vpop.permute.xlu0 %2505
        %2507 = vrot.lane.b32.xlu0 %v2502, 64
        %v2508 = vpop.permute.xlu0 %2507
        %2511 = vst.msk [vmem:[#allocation9 + $0x18] sm:$0xff] %vm2372, %v2506
        %2512 = vst.msk [vmem:[#allocation9 + $0x40] sm:$0xff] %vm2372, %v2508
        %v2513 = vld [vmem:[#allocation8 + $0xa] sm:$0xff]
        %v2514 = vld [vmem:[#allocation8 + $0x12] sm:$0xff]
        %s2515 = scalar_lea.vmem %s6, 128
        %v2516 = vld [vmem:[%s2515] sm:$0xff]
        %v2517 = vld [vmem:[%s2515 + $0x8] sm:$0xff]
        %2519 = vset.pattern.permute.xlu0 0
        %2520 = vperm.xlu0 %2519, %v2516
        %v2521 = vpop.permute.xlu0 %2520
        %2524 = vset.pattern.permute.xlu0 0
        %2525 = vperm.xlu0 %2524, %v2517
        %v2526 = vpop.permute.xlu0 %2525
        %v2528 = vmul.f32 %v2513, %v2521
        %v2529 = vmul.f32 %v2514, %v2526
        %2530 = vst.msk [vmem:[#allocation9 + $0x20] sm:$0xff] %vm2280, %v2528
        %2531 = vst.msk [vmem:[#allocation9 + $0x48] sm:$0xff] %vm2280, %v2529
        %v2532 = vld [vmem:[#allocation9] sm:$0xff]
        %v2533 = vld [vmem:[#allocation9 + $0x8] sm:$0xff]
        %v2534 = vld [vmem:[#allocation9 + $0x10] sm:$0xff]
        %v2535 = vld [vmem:[#allocation9 + $0x18] sm:$0xff]
        %v2536 = vld [vmem:[#allocation9 + $0x20] sm:$0xff]
        %v2537 = vld [vmem:[#allocation9 + $0x28] sm:$0xff]
        %v2538 = vld [vmem:[#allocation9 + $0x30] sm:$0xff]
        %v2539 = vld [vmem:[#allocation9 + $0x38] sm:$0xff]
        %v2540 = vld [vmem:[#allocation9 + $0x40] sm:$0xff]
        %v2541 = vld [vmem:[#allocation9 + $0x48] sm:$0xff]
        %v2542 = vpack.c.bf16 %v2537, %v2532
        %v2543 = vpack.c.bf16 %v2538, %v2533
        %v2544 = vpack.c.bf16 %v2539, %v2534
        %v2545 = vpack.c.bf16 %v2540, %v2535
        %v2546 = vpack.c.bf16 %v2541, %v2536
        %v2547 = vld [vmem:[%s7] sm:$0xf]
        %v2548 = vld [vmem:[%s7 + $0x4] sm:$0xf]
        %v2549 = vld [vmem:[%s7 + $0x8] sm:$0xf]
        %v2550 = vld [vmem:[%s7 + $0xc] sm:$0xf]
        %v2551 = vld [vmem:[%s7 + $0x10] sm:$0xf]
        %v2552 = vld [vmem:[%s7 + $0x14] sm:$0xf]
        %v2553 = vld [vmem:[%s7 + $0x18] sm:$0xf]
        %v2554 = vld [vmem:[%s7 + $0x1c] sm:$0xf]
        %v2555 = vld [vmem:[%s7 + $0x20] sm:$0xf]
        %v2556 = vld [vmem:[%s7 + $0x24] sm:$0xf]
        %v2557 = vld [vmem:[%s7 + $0x28] sm:$0xf]
        %v2558 = vld [vmem:[%s7 + $0x2c] sm:$0xf]
        %v2559 = vld [vmem:[%s7 + $0x30] sm:$0xf]
        %v2560 = vld [vmem:[%s7 + $0x34] sm:$0xf]
        %v2561 = vld [vmem:[%s7 + $0x38] sm:$0xf]
        %v2562 = vld [vmem:[%s7 + $0x3c] sm:$0xf]
        %v2563 = vld [vmem:[%s7 + $0x40] sm:$0xf]
        %v2564 = vld [vmem:[%s7 + $0x44] sm:$0xf]
        %v2565 = vld [vmem:[%s7 + $0x48] sm:$0xf]
        %v2566 = vld [vmem:[%s7 + $0x4c] sm:$0xf]
        %v2567 = vld [vmem:[%s7 + $0x50] sm:$0xf]
        %v2568 = vld [vmem:[%s7 + $0x54] sm:$0xf]
        %v2569 = vld [vmem:[%s7 + $0x58] sm:$0xf]
        %v2570 = vld [vmem:[%s7 + $0x5c] sm:$0xf]
        %v2571 = vld [vmem:[%s7 + $0x60] sm:$0xf]
        %v2572 = vld [vmem:[%s7 + $0x64] sm:$0xf]
        %v2573 = vld [vmem:[%s7 + $0x68] sm:$0xf]
        %v2574 = vld [vmem:[%s7 + $0x6c] sm:$0xf]
        %v2575 = vld [vmem:[%s7 + $0x70] sm:$0xf]
        %v2576 = vld [vmem:[%s7 + $0x74] sm:$0xf]
        %v2577 = vld [vmem:[%s7 + $0x78] sm:$0xf]
        %v2578 = vld [vmem:[%s7 + $0x7c] sm:$0xf]
        %v2579 = vld [vmem:[%s7 + $0x80] sm:$0xf]
        %v2580 = vld [vmem:[%s7 + $0x84] sm:$0xf]
        %v2581 = vld [vmem:[%s7 + $0x88] sm:$0xf]
        %v2582 = vld [vmem:[%s7 + $0x8c] sm:$0xf]
        %v2583 = vld [vmem:[%s7 + $0x90] sm:$0xf]
        %v2584 = vld [vmem:[%s7 + $0x94] sm:$0xf]
        %v2585 = vld [vmem:[%s7 + $0x98] sm:$0xf]
        %v2586 = vld [vmem:[%s7 + $0x9c] sm:$0xf]
        %v2587 = vld [vmem:[%s7 + $0xa0] sm:$0xf]
        %v2588 = vld [vmem:[%s7 + $0xa4] sm:$0xf]
        %v2589 = vld [vmem:[%s7 + $0xa8] sm:$0xf]
        %v2590 = vld [vmem:[%s7 + $0xac] sm:$0xf]
        %v2591 = vld [vmem:[%s7 + $0xb0] sm:$0xf]
        %v2592 = vld [vmem:[%s7 + $0xb4] sm:$0xf]
        %v2593 = vld [vmem:[%s7 + $0xb8] sm:$0xf]
        %v2594 = vld [vmem:[%s7 + $0xbc] sm:$0xf]
        %v2595 = vld [vmem:[%s7 + $0xc0] sm:$0xf]
        %v2596 = vld [vmem:[%s7 + $0xc4] sm:$0xf]
        %v2597 = vld [vmem:[%s7 + $0xc8] sm:$0xf]
        %v2598 = vld [vmem:[%s7 + $0xcc] sm:$0xf]
        %v2599 = vld [vmem:[%s7 + $0xd0] sm:$0xf]
        %v2600 = vld [vmem:[%s7 + $0xd4] sm:$0xf]
        %v2601 = vld [vmem:[%s7 + $0xd8] sm:$0xf]
        %v2602 = vld [vmem:[%s7 + $0xdc] sm:$0xf]
        %v2603 = vld [vmem:[%s7 + $0xe0] sm:$0xf]
        %v2604 = vld [vmem:[%s7 + $0xe4] sm:$0xf]
        %v2605 = vld [vmem:[%s7 + $0xe8] sm:$0xf]
        %v2606 = vld [vmem:[%s7 + $0xec] sm:$0xf]
        %v2607 = vld [vmem:[%s7 + $0xf0] sm:$0xf]
        %v2608 = vld [vmem:[%s7 + $0xf4] sm:$0xf]
        %v2609 = vld [vmem:[%s7 + $0xf8] sm:$0xf]
        %v2610 = vld [vmem:[%s7 + $0xfc] sm:$0xf]
        %v2611 = vld [vmem:[%s7 + $0x100] sm:$0xf]
        %v2612 = vld [vmem:[%s7 + $0x104] sm:$0xf]
        %v2613 = vld [vmem:[%s7 + $0x108] sm:$0xf]
        %v2614 = vld [vmem:[%s7 + $0x10c] sm:$0xf]
        %v2615 = vld [vmem:[%s7 + $0x110] sm:$0xf]
        %v2616 = vld [vmem:[%s7 + $0x114] sm:$0xf]
        %v2617 = vld [vmem:[%s7 + $0x118] sm:$0xf]
        %v2618 = vld [vmem:[%s7 + $0x11c] sm:$0xf]
        %v2619 = vld [vmem:[%s8] sm:$0x1]
        %v2621 = vlaneseq
        %v2622 = vshrl.u32 %v2621, 7
        %v2623 = vsub.s32 0, %v2622
        %v2624 = vrot.slane %v2619, %v2623
        %v2698 = vunpack.c.l.b16 %v2547
        %v2699 = vunpack.c.l.b16 %v2548
        %v2700 = vunpack.c.l.b16 %v2549
        %v2701 = vunpack.c.l.b16 %v2550
        %v2702 = vunpack.c.l.b16 %v2551
        %v2703 = vunpack.c.l.b16 %v2552
        %v2704 = vunpack.c.l.b16 %v2553
        %v2705 = vunpack.c.l.b16 %v2554
        %v2706 = vunpack.c.l.b16 %v2555
        %v2707 = vunpack.c.l.b16 %v2556
        %v2708 = vunpack.c.l.b16 %v2557
        %v2709 = vunpack.c.l.b16 %v2558
        %v2710 = vunpack.c.l.b16 %v2559
        %v2711 = vunpack.c.l.b16 %v2560
        %v2712 = vunpack.c.l.b16 %v2561
        %v2713 = vunpack.c.l.b16 %v2562
        %v2714 = vunpack.c.l.b16 %v2563
        %v2715 = vunpack.c.l.b16 %v2564
        %v2716 = vunpack.c.l.b16 %v2565
        %v2717 = vunpack.c.l.b16 %v2566
        %v2718 = vunpack.c.l.b16 %v2567
        %v2719 = vunpack.c.l.b16 %v2568
        %v2720 = vunpack.c.l.b16 %v2569
        %v2721 = vunpack.c.l.b16 %v2570
        %v2722 = vunpack.c.l.b16 %v2571
        %v2723 = vunpack.c.l.b16 %v2572
        %v2724 = vunpack.c.l.b16 %v2573
        %v2725 = vunpack.c.l.b16 %v2574
        %v2726 = vunpack.c.l.b16 %v2575
        %v2727 = vunpack.c.l.b16 %v2576
        %v2728 = vunpack.c.l.b16 %v2577
        %v2729 = vunpack.c.l.b16 %v2578
        %v2730 = vunpack.c.l.b16 %v2579
        %v2731 = vunpack.c.l.b16 %v2580
        %v2732 = vunpack.c.l.b16 %v2581
        %v2733 = vunpack.c.l.b16 %v2582
        %v2734 = vunpack.c.l.b16 %v2583
        %v2735 = vunpack.c.l.b16 %v2584
        %v2736 = vunpack.c.l.b16 %v2585
        %v2737 = vunpack.c.l.b16 %v2586
        %v2738 = vunpack.c.l.b16 %v2587
        %v2739 = vunpack.c.l.b16 %v2588
        %v2740 = vunpack.c.l.b16 %v2589
        %v2741 = vunpack.c.l.b16 %v2590
        %v2742 = vunpack.c.l.b16 %v2591
        %v2743 = vunpack.c.l.b16 %v2592
        %v2744 = vunpack.c.l.b16 %v2593
        %v2745 = vunpack.c.l.b16 %v2594
        %v2746 = vunpack.c.l.b16 %v2595
        %v2747 = vunpack.c.l.b16 %v2596
        %v2748 = vunpack.c.l.b16 %v2597
        %v2749 = vunpack.c.l.b16 %v2598
        %v2750 = vunpack.c.l.b16 %v2599
        %v2751 = vunpack.c.l.b16 %v2600
        %v2752 = vunpack.c.l.b16 %v2601
        %v2753 = vunpack.c.l.b16 %v2602
        %v2754 = vunpack.c.l.b16 %v2603
        %v2755 = vunpack.c.l.b16 %v2604
        %v2756 = vunpack.c.l.b16 %v2605
        %v2757 = vunpack.c.l.b16 %v2606
        %v2758 = vunpack.c.l.b16 %v2607
        %v2759 = vunpack.c.l.b16 %v2608
        %v2760 = vunpack.c.l.b16 %v2609
        %v2761 = vunpack.c.l.b16 %v2610
        %v2762 = vunpack.c.l.b16 %v2611
        %v2763 = vunpack.c.l.b16 %v2612
        %v2764 = vunpack.c.l.b16 %v2613
        %v2765 = vunpack.c.l.b16 %v2614
        %v2766 = vunpack.c.l.b16 %v2615
        %v2767 = vunpack.c.l.b16 %v2616
        %v2768 = vunpack.c.l.b16 %v2617
        %v2769 = vunpack.c.l.b16 %v2618
        %v2770 = vpack.c.b16 %v2699, %v2698
        %v2771 = vpack.c.b16 %v2701, %v2700
        %v2772 = vpack.c.b16 %v2703, %v2702
        %v2773 = vpack.c.b16 %v2705, %v2704
        %v2774 = vpack.c.b16 %v2707, %v2706
        %v2775 = vpack.c.b16 %v2709, %v2708
        %v2776 = vpack.c.b16 %v2711, %v2710
        %v2777 = vpack.c.b16 %v2713, %v2712
        %v2778 = vpack.c.b16 %v2715, %v2714
        %v2779 = vpack.c.b16 %v2717, %v2716
        %v2780 = vpack.c.b16 %v2719, %v2718
        %v2781 = vpack.c.b16 %v2721, %v2720
        %v2782 = vpack.c.b16 %v2723, %v2722
        %v2783 = vpack.c.b16 %v2725, %v2724
        %v2784 = vpack.c.b16 %v2727, %v2726
        %v2785 = vpack.c.b16 %v2729, %v2728
        %v2786 = vpack.c.b16 %v2731, %v2730
        %v2787 = vpack.c.b16 %v2733, %v2732
        %v2788 = vpack.c.b16 %v2735, %v2734
        %v2789 = vpack.c.b16 %v2737, %v2736
        %v2790 = vpack.c.b16 %v2739, %v2738
        %v2791 = vpack.c.b16 %v2741, %v2740
        %v2792 = vpack.c.b16 %v2743, %v2742
        %v2793 = vpack.c.b16 %v2745, %v2744
        %v2794 = vpack.c.b16 %v2747, %v2746
        %v2795 = vpack.c.b16 %v2749, %v2748
        %v2796 = vpack.c.b16 %v2751, %v2750
        %v2797 = vpack.c.b16 %v2753, %v2752
        %v2798 = vpack.c.b16 %v2755, %v2754
        %v2799 = vpack.c.b16 %v2757, %v2756
        %v2800 = vpack.c.b16 %v2759, %v2758
        %v2801 = vpack.c.b16 %v2761, %v2760
        %v2802 = vpack.c.b16 %v2763, %v2762
        %v2803 = vpack.c.b16 %v2765, %v2764
        %v2804 = vpack.c.b16 %v2767, %v2766
        %v2805 = vpack.c.b16 %v2769, %v2768
        %v2843 = vsel %vm2280, %v2546, 0
        %2845 = vmatprep.subr.bf16.mxu0 0
        %2846 = vmatpush1.bf16.msra.mxu0 %v2770
        %2847 = vmatprep.subr.bf16.mxu0 0
        %2848 = vmatpush1.bf16.msra.mxu0 %v2771
        %2849 = vmatprep.subr.bf16.mxu0 0
        %2850 = vmatpush1.bf16.msra.mxu0 %v2772
        %2851 = vmatprep.subr.bf16.mxu0 0
        %2852 = vmatpush1.bf16.msra.mxu0 %v2773
        %2853 = vmatprep.subr.bf16.mxu0 0
        %2854 = vmatpush1.bf16.msra.mxu0 %v2774
        %2855 = vmatprep.subr.bf16.mxu0 0
        %2856 = vmatpush1.bf16.msra.mxu0 %v2775
        %2857 = vmatprep.subr.bf16.mxu0 0
        %2858 = vmatpush1.bf16.msra.mxu0 %v2776
        %2859 = vmatprep.subr.bf16.mxu0 0
        %2860 = vmatpush1.bf16.msra.mxu0 %v2777
        %2861 = vmatprep.subr.bf16.mxu0 0
        %2862 = vmatpush1.bf16.msra.mxu0 %v2778
        %2863 = vmatprep.subr.bf16.mxu0 0
        %2864 = vmatpush1.bf16.msra.mxu0 %v2779
        %2865 = vmatprep.subr.bf16.mxu0 0
        %2866 = vmatpush1.bf16.msra.mxu0 %v2780
        %2867 = vmatprep.subr.bf16.mxu0 0
        %2868 = vmatpush1.bf16.msra.mxu0 %v2781
        %2869 = vmatprep.subr.bf16.mxu0 0
        %2870 = vmatpush1.bf16.msra.mxu0 %v2782
        %2871 = vmatprep.subr.bf16.mxu0 0
        %2872 = vmatpush1.bf16.msra.mxu0 %v2783
        %2873 = vmatprep.subr.bf16.mxu0 0
        %2874 = vmatpush1.bf16.msra.mxu0 %v2784
        %2875 = vmatprep.subr.bf16.mxu0 0
        %2876 = vmatpush1.bf16.msra.mxu0 %v2785
        %2877 = vmatprep.mubr.bf16.mxu0 %v2543
        %2878 = vmatmul.mubr.bf16.gmra.mrb[0].mxu0 %v2542
        %v2879 = vpop.f32.mrb[0].mxu0
        %v2880 = vadd.f32 %v2624, %v2879
        %v2881 = vpop.f32.mrb[0].mxu0
        %v2882 = vpop.f32.mrb[0].mxu0
        %v2883 = vadd.f32 %v2624, %v2882
        %v2884 = vpop.f32.mrb[0].mxu0
        %2885 = vdwg.mxu0
        %2886 = vmatprep.subr.bf16.mxu0 0
        %2887 = vmatpush1.bf16.msra.mxu0 %v2786
        %2888 = vmatprep.subr.bf16.mxu0 0
        %2889 = vmatpush1.bf16.msra.mxu0 %v2787
        %2890 = vmatprep.subr.bf16.mxu0 0
        %2891 = vmatpush1.bf16.msra.mxu0 %v2788
        %2892 = vmatprep.subr.bf16.mxu0 0
        %2893 = vmatpush1.bf16.msra.mxu0 %v2789
        %2894 = vmatprep.subr.bf16.mxu0 0
        %2895 = vmatpush1.bf16.msra.mxu0 %v2790
        %2896 = vmatprep.subr.bf16.mxu0 0
        %2897 = vmatpush1.bf16.msra.mxu0 %v2791
        %2898 = vmatprep.subr.bf16.mxu0 0
        %2899 = vmatpush1.bf16.msra.mxu0 %v2792
        %2900 = vmatprep.subr.bf16.mxu0 0
        %2901 = vmatpush1.bf16.msra.mxu0 %v2793
        %2902 = vmatprep.subr.bf16.mxu0 0
        %2903 = vmatpush1.bf16.msra.mxu0 %v2794
        %2904 = vmatprep.subr.bf16.mxu0 0
        %2905 = vmatpush1.bf16.msra.mxu0 %v2795
        %2906 = vmatprep.subr.bf16.mxu0 0
        %2907 = vmatpush1.bf16.msra.mxu0 %v2796
        %2908 = vmatprep.subr.bf16.mxu0 0
        %2909 = vmatpush1.bf16.msra.mxu0 %v2797
        %2910 = vmatprep.subr.bf16.mxu0 0
        %2911 = vmatpush1.bf16.msra.mxu0 %v2798
        %2912 = vmatprep.subr.bf16.mxu0 0
        %2913 = vmatpush1.bf16.msra.mxu0 %v2799
        %2914 = vmatprep.subr.bf16.mxu0 0
        %2915 = vmatpush1.bf16.msra.mxu0 %v2800
        %2916 = vmatprep.subr.bf16.mxu0 0
        %2917 = vmatpush1.bf16.msra.mxu0 %v2801
        %2918 = vmatprep.mubr.bf16.mxu0 %v2545
        %2919 = vmatmul.mubr.bf16.gmra.mrb[0].mxu0 %v2544
        %v2920 = vpop.f32.mrb[0].mxu0
        %v2921 = vadd.f32 %v2880, %v2920
        %v2922 = vpop.f32.mrb[0].mxu0
        %v2923 = vpop.f32.mrb[0].mxu0
        %v2924 = vadd.f32 %v2883, %v2923
        %v2925 = vpop.f32.mrb[0].mxu0
        %2926 = vdwg.mxu0
        %2927 = vmatprep.subr.bf16.mxu0 0
        %2928 = vmatpush1.bf16.msra.mxu0 %v2802
        %2929 = vmatprep.subr.bf16.mxu0 0
        %2930 = vmatpush1.bf16.msra.mxu0 %v2803
        %2931 = vmatprep.subr.bf16.mxu0 0
        %2932 = vmatpush1.bf16.msra.mxu0 %v2804
        %2933 = vmatprep.subr.bf16.mxu0 0
        %2934 = vmatpush1.bf16.msra.mxu0 %v2805
        %2935 = vmatprep.subr.bf16.mxu0 0
        %2936 = vmatpush1.bf16.msra.mxu0 0
        %2937 = vmatprep.subr.bf16.mxu0 0
        %2938 = vmatpush1.bf16.msra.mxu0 0
        %2939 = vmatprep.subr.bf16.mxu0 0
        %2940 = vmatpush1.bf16.msra.mxu0 0
        %2941 = vmatprep.subr.bf16.mxu0 0
        %2942 = vmatpush1.bf16.msra.mxu0 0
        %2943 = vmatprep.subr.bf16.mxu0 0
        %2944 = vmatpush1.bf16.msra.mxu0 0
        %2945 = vmatprep.subr.bf16.mxu0 0
        %2946 = vmatpush1.bf16.msra.mxu0 0
        %2947 = vmatprep.subr.bf16.mxu0 0
        %2948 = vmatpush1.bf16.msra.mxu0 0
        %2949 = vmatprep.subr.bf16.mxu0 0
        %2950 = vmatpush1.bf16.msra.mxu0 0
        %2951 = vmatprep.subr.bf16.mxu0 0
        %2952 = vmatpush1.bf16.msra.mxu0 0
        %2953 = vmatprep.subr.bf16.mxu0 0
        %2954 = vmatpush1.bf16.msra.mxu0 0
        %2955 = vmatprep.subr.bf16.mxu0 0
        %2956 = vmatpush1.bf16.msra.mxu0 0
        %2957 = vmatprep.subr.bf16.mxu0 0
        %2958 = vmatpush1.bf16.msra.mxu0 0
        %2959 = vmatprep.mubr.bf16.mxu0 0
        %2960 = vmatmul.mubr.bf16.gmra.mrb[0].mxu0 %v2843
        %v2961 = vpop.f32.mrb[0].mxu0
        %v2962 = vadd.f32 %v2921, %v2961
        %v2963 = vpop.f32.mrb[0].mxu0
        %v2964 = vpop.f32.mrb[0].mxu0
        %v2965 = vadd.f32 %v2924, %v2964
        %v2966 = vpop.f32.mrb[0].mxu0
        %2967 = vdwg.mxu0
        %v2968 = vmax.f32 %v2962, 0.0
        %v2969 = vmax.f32 %v2965, 0.0
        %2970 = vst [vmem:[#allocation10] sm:$0xff] %v2968
        %2971 = vst [vmem:[#allocation10 + $0x8] sm:$0xff] %v2969
        %v2972 = vld [vmem:[#allocation10] ss:$2 sm:$0xff]
        %s2973 = scalar_lea.vmem [#allocation10], 1
        %v2974 = vld [vmem:[%s2973] ss:$2 sm:$0xff]
        %v2975 = vmax.f32 %v2972, %v2974
        %2976 = vst [vmem:[#allocation11] sm:$0xff] %v2975
        %v2977 = vld [vmem:[#allocation11] sm:$0x3]
        %v2978 = vld [vmem:[#allocation11 + $0x2] sm:$0x3]
        %v2979 = vmax.f32 %v2977, %v2978
        %2980 = vst [vmem:[#allocation12] sm:$0x3] %v2979
        %v2981 = vld [vmem:[#allocation11 + $0x4] sm:$0x3]
        %v2982 = vld [vmem:[#allocation11 + $0x6] sm:$0x3]
        %v2983 = vmax.f32 %v2981, %v2982
        %2984 = vst [vmem:[#allocation12 + $0x2] sm:$0x3] %v2983
        %v2985 = vld [vmem:[#allocation12] sm:$0xf]
        %v2986 = vpack.c.bf16 %v2985, %v2985
        %v2987 = vld [vmem:[%s9] sm:$0xf]
        %v2988 = vld [vmem:[%s9 + $0x4] sm:$0xf]
        %v2989 = vld [vmem:[%s9 + $0x8] sm:$0xf]
        %v2990 = vld [vmem:[%s9 + $0xc] sm:$0xf]
        %v2991 = vld [vmem:[%s9 + $0x10] sm:$0xf]
        %v2992 = vld [vmem:[%s9 + $0x14] sm:$0xf]
        %v2993 = vld [vmem:[%s9 + $0x18] sm:$0xf]
        %v2994 = vld [vmem:[%s9 + $0x1c] sm:$0xf]
        %v2995 = vld [vmem:[%s9 + $0x20] sm:$0xf]
        %v2996 = vld [vmem:[%s9 + $0x24] sm:$0xf]
        %v2997 = vld [vmem:[%s9 + $0x28] sm:$0xf]
        %v2998 = vld [vmem:[%s9 + $0x2c] sm:$0xf]
        %v2999 = vld [vmem:[%s9 + $0x30] sm:$0xf]
        %v3000 = vld [vmem:[%s9 + $0x34] sm:$0xf]
        %v3001 = vld [vmem:[%s9 + $0x38] sm:$0xf]
        %v3002 = vld [vmem:[%s9 + $0x3c] sm:$0xf]
        %v3003 = vld [vmem:[%s10] sm:$0x1]
        %v3005 = vlaneseq
        %v3006 = vshrl.u32 %v3005, 7
        %v3007 = vsub.s32 0, %v3006
        %v3008 = vrot.slane %v3003, %v3007
        %v3026 = vunpack.c.l.b16 %v2987
        %v3027 = vunpack.c.l.b16 %v2988
        %v3028 = vunpack.c.l.b16 %v2989
        %v3029 = vunpack.c.l.b16 %v2990
        %v3030 = vunpack.c.l.b16 %v2991
        %v3031 = vunpack.c.l.b16 %v2992
        %v3032 = vunpack.c.l.b16 %v2993
        %v3033 = vunpack.c.l.b16 %v2994
        %v3034 = vunpack.c.l.b16 %v2995
        %v3035 = vunpack.c.l.b16 %v2996
        %v3036 = vunpack.c.l.b16 %v2997
        %v3037 = vunpack.c.l.b16 %v2998
        %v3038 = vunpack.c.l.b16 %v2999
        %v3039 = vunpack.c.l.b16 %v3000
        %v3040 = vunpack.c.l.b16 %v3001
        %v3041 = vunpack.c.l.b16 %v3002
        %v3042 = vpack.c.b16 %v3027, %v3026
        %v3043 = vpack.c.b16 %v3029, %v3028
        %v3044 = vpack.c.b16 %v3031, %v3030
        %v3045 = vpack.c.b16 %v3033, %v3032
        %v3046 = vpack.c.b16 %v3035, %v3034
        %v3047 = vpack.c.b16 %v3037, %v3036
        %v3048 = vpack.c.b16 %v3039, %v3038
        %v3049 = vpack.c.b16 %v3041, %v3040
        %3058 = vmatprep.subr.bf16.mxu0 0
        %3059 = vmatpush1.bf16.msra.mxu0 %v3042
        %3060 = vmatprep.subr.bf16.mxu0 0
        %3061 = vmatpush1.bf16.msra.mxu0 %v3043
        %3062 = vmatprep.subr.bf16.mxu0 0
        %3063 = vmatpush1.bf16.msra.mxu0 %v3044
        %3064 = vmatprep.subr.bf16.mxu0 0
        %3065 = vmatpush1.bf16.msra.mxu0 %v3045
        %3066 = vmatprep.subr.bf16.mxu0 0
        %3067 = vmatpush1.bf16.msra.mxu0 %v3046
        %3068 = vmatprep.subr.bf16.mxu0 0
        %3069 = vmatpush1.bf16.msra.mxu0 %v3047
        %3070 = vmatprep.subr.bf16.mxu0 0
        %3071 = vmatpush1.bf16.msra.mxu0 %v3048
        %3072 = vmatprep.subr.bf16.mxu0 0
        %3073 = vmatpush1.bf16.msra.mxu0 %v3049
        %3074 = vmatprep.subr.bf16.mxu0 0
        %3075 = vmatpush1.bf16.msra.mxu0 0
        %3076 = vmatprep.subr.bf16.mxu0 0
        %3077 = vmatpush1.bf16.msra.mxu0 0
        %3078 = vmatprep.subr.bf16.mxu0 0
        %3079 = vmatpush1.bf16.msra.mxu0 0
        %3080 = vmatprep.subr.bf16.mxu0 0
        %3081 = vmatpush1.bf16.msra.mxu0 0
        %3082 = vmatprep.subr.bf16.mxu0 0
        %3083 = vmatpush1.bf16.msra.mxu0 0
        %3084 = vmatprep.subr.bf16.mxu0 0
        %3085 = vmatpush1.bf16.msra.mxu0 0
        %3086 = vmatprep.subr.bf16.mxu0 0
        %3087 = vmatpush1.bf16.msra.mxu0 0
        %3088 = vmatprep.subr.bf16.mxu0 0
        %3089 = vmatpush1.bf16.msra.mxu0 0
        %3090 = vmatprep.mubr.bf16.mxu0 0
        %3091 = vmatmul.mubr.bf16.gmra.mrb[0].mxu0 %v2986
        %v3092 = vpop.f32.mrb[0].mxu0
        %v3093 = vadd.f32 %v3008, %v3092
        %v3094 = vpop.f32.mrb[0].mxu0
        %v3095 = vpop.f32.mrb[0].mxu0
        %v3096 = vpop.f32.mrb[0].mxu0
        %3097 = vdwg.mxu0
        %v3098 = vmax.f32 %v3093, 0.0
        %v3099 = vld [vmem:[%s11] sm:$0x1]
        %v3101 = vlaneseq
        %v3102 = vshrl.u32 %v3101, 7
        %v3103 = vsub.s32 0, %v3102
        %v3104 = vrot.slane %v3099, %v3103
        %v3106 = vmul.f32 %v3098, %v3104
        %v3107 = vsel %vm2315, %v3106, 0.0
        %3108 = vadd.xlane.f32.xlu0 %v3107
        %v3109 = vpop.xlane.xlu0 %3108
        %v3110 = vld [vmem:[#allocation17] sm:$0x1]
        %v3112 = vlaneseq
        %v3113 = vshrl.u32 %v3112, 7
        %v3114 = vsub.s32 0, %v3113
        %v3115 = vrot.slane %v3110, %v3114
        %v3117 = vadd.f32 %v3109, %v3115
        %vm3118 = vcmask 3072
        %3119 = vst.msk [vmem:[#allocation13] sm:$0xf] %vm3118, %v3117
        %v3120 = vld [vmem:[#allocation13] ss:$2 sm:$0x3]
        %s3121 = scalar_lea.vmem [#allocation13], 1
        %v3122 = vld [vmem:[%s3121] ss:$2 sm:$0x3]
        %v3123 = vmax.f32 %v3120, %v3122
        %v3124 = vsub.f32 %v3120, %v3123
        %v3125 = vmul.f32 %v3124, 1.442695
        %v3126 = vpow.pop %v3125
        %v3127 = vadd.f32 %v3126, 0.0
        %v3128 = vsub.f32 %v3122, %v3123
        %v3129 = vmul.f32 %v3128, 1.442695
        %v3130 = vpow.pop %v3129
        %v3131 = vadd.f32 %v3127, %v3130
        %v3132 = vlog2.pop %v3131
        %v3133 = vmul.f32 %v3132, 0.6931472
        %v3134 = vadd.f32 %v3123, %v3133
        %vm3135 = vcmask 1024
        %3136 = vst.msk [vmem:[#allocation14] sm:$0x3] %vm3135, %v3134
        %v3137 = vld [vmem:[#allocation13] sm:$0x3]
        %v3138 = vld [vmem:[#allocation14] sm:$0x1]
        %v3139 = vlaneseq
        %v3140 = vshrl.u32 %v3139, 7
        %v3141 = vsub.s32 0, %v3140
        %v3142 = vrot.slane %v3138, %v3141
        %v3143 = vsub.f32 %v3137, %v3142
        %v3144 = vmul.f32 %v3143, 1.442695
        %v3145 = vpow.pop %v3144
        %v3146 = vld [vmem:[#allocation12] sm:$0x3]
        %3148 = vset.pattern.permute.xlu0 0
        %3149 = vperm.xlu0 %3148, %v3145
        %v3150 = vpop.permute.xlu0 %3149
        %v3152 = vmul.f32 %v3146, %v3150
        %3153 = vst [vmem:[#allocation15] sm:$0x3] %v3152
        %v3154 = vld [vmem:[#allocation13 + $0x2] sm:$0x3]
        %v3155 = vld [vmem:[#allocation14 + $0x1] sm:$0x1]
        %v3156 = vlaneseq
        %v3157 = vshrl.u32 %v3156, 7
        %v3158 = vsub.s32 0, %v3157
        %v3159 = vrot.slane %v3155, %v3158
        %v3160 = vsub.f32 %v3154, %v3159
        %v3161 = vmul.f32 %v3160, 1.442695
        %v3162 = vpow.pop %v3161
        %v3163 = vld [vmem:[#allocation12 + $0x2] sm:$0x3]
        %3165 = vset.pattern.permute.xlu0 0
        %3166 = vperm.xlu0 %3165, %v3162
        %v3167 = vpop.permute.xlu0 %3166
        %v3169 = vmul.f32 %v3163, %v3167
        %3170 = vst [vmem:[#allocation15 + $0x2] sm:$0x3] %v3169
        %v3171 = vld [vmem:[#allocation15] sm:$0x1]
        %v3172 = vlaneseq
        %vm3173 = vcmp.ge.s32.totalorder %v3172, 0
        %vm3174 = vcmp.lt.s32.totalorder %v3172, 128
        %vm3175 = vmand %vm3173, %vm3174
        %3176 = vst.msk [vmem:[#allocation16] sm:$0x1] %vm3175, %v3171
        %v3177 = vld [vmem:[#allocation15 + $0x1] sm:$0x1]
        %3178 = vst.msk [vmem:[#allocation16 + $0x1] sm:$0x1] %vm3175, %v3177
        %v3179 = vld [vmem:[#allocation15 + $0x2] sm:$0x1]
        %3180 = vst.msk [vmem:[#allocation16 + $0x2] sm:$0x1] %vm3175, %v3179
        %v3181 = vld [vmem:[#allocation15 + $0x3] sm:$0x1]
        %3182 = vst.msk [vmem:[#allocation16 + $0x3] sm:$0x1] %vm3175, %v3181
        %v3183 = vld [vmem:[#allocation16] sm:$0xf]
        %v3185 = vlaneseq
        %v3186 = vshrl.u32 %v3185, 7
        %v3187 = vsub.s32 0, %v3186
        %v3188 = vrot.slane %v3183, %v3187
        %v3189 = vlaneseq
        %v3190 = vshrl.u32 %v3189, 7
        %v3191 = vsub.s32 1, %v3190
        %v3192 = vrot.slane %v3183, %v3191
        %v3193 = vlaneseq
        %v3194 = vshrl.u32 %v3193, 7
        %v3195 = vsub.s32 2, %v3194
        %v3196 = vrot.slane %v3183, %v3195
        %v3197 = vlaneseq
        %v3198 = vshrl.u32 %v3197, 7
        %v3199 = vsub.s32 3, %v3198
        %v3200 = vrot.slane %v3183, %v3199
        %v3205 = vpack.c.bf16 %v3188, %v3188
        %v3206 = vpack.c.bf16 %v3192, %v3192
        %v3207 = vpack.c.bf16 %v3196, %v3196
        %v3208 = vpack.c.bf16 %v3200, %v3200
        %v3209 = vld [vmem:[%s13] sm:$0xff]
        %v3210 = vld [vmem:[%s13 + $0x8] sm:$0xff]
        %v3211 = vld [vmem:[%s13 + $0x10] sm:$0xff]
        %v3212 = vld [vmem:[%s13 + $0x18] sm:$0xff]
        %v3213 = vld [vmem:[%s13 + $0x20] sm:$0xff]
        %v3214 = vld [vmem:[%s13 + $0x28] sm:$0xff]
        %v3215 = vld [vmem:[%s13 + $0x30] sm:$0xff]
        %v3216 = vld [vmem:[%s13 + $0x38] sm:$0xff]
        %v3217 = vld [vmem:[%s13 + $0x40] sm:$0xff]
        %v3218 = vld [vmem:[%s13 + $0x48] sm:$0xff]
        %v3219 = vld [vmem:[%s13 + $0x50] sm:$0xff]
        %v3220 = vld [vmem:[%s13 + $0x58] sm:$0xff]
        %v3221 = vld [vmem:[%s13 + $0x60] sm:$0xff]
        %v3222 = vld [vmem:[%s13 + $0x68] sm:$0xff]
        %v3223 = vld [vmem:[%s13 + $0x70] sm:$0xff]
        %v3224 = vld [vmem:[%s13 + $0x78] sm:$0xff]
        %v3225 = vld [vmem:[%s13 + $0x80] sm:$0xff]
        %v3226 = vld [vmem:[%s13 + $0x88] sm:$0xff]
        %v3227 = vld [vmem:[%s13 + $0x90] sm:$0xff]
        %v3228 = vld [vmem:[%s13 + $0x98] sm:$0xff]
        %v3229 = vld [vmem:[%s13 + $0xa0] sm:$0xff]
        %v3230 = vld [vmem:[%s13 + $0xa8] sm:$0xff]
        %v3231 = vld [vmem:[%s13 + $0xb0] sm:$0xff]
        %v3232 = vld [vmem:[%s13 + $0xb8] sm:$0xff]
        %v3233 = vld [vmem:[%s13 + $0xc0] sm:$0xff]
        %v3234 = vld [vmem:[%s13 + $0xc8] sm:$0xff]
        %v3235 = vld [vmem:[%s13 + $0xd0] sm:$0xff]
        %v3236 = vld [vmem:[%s13 + $0xd8] sm:$0xff]
        %v3237 = vld [vmem:[%s13 + $0xe0] sm:$0xff]
        %v3238 = vld [vmem:[%s13 + $0xe8] sm:$0xff]
        %v3239 = vld [vmem:[%s13 + $0xf0] sm:$0xff]
        %v3240 = vld [vmem:[%s13 + $0xf8] sm:$0xff]
        %v3241 = vld [vmem:[%s13 + $0x100] sm:$0xff]
        %v3242 = vld [vmem:[%s13 + $0x108] sm:$0xff]
        %v3243 = vld [vmem:[%s13 + $0x110] sm:$0xff]
        %v3244 = vld [vmem:[%s13 + $0x118] sm:$0xff]
        %v3245 = vld [vmem:[%s13 + $0x120] sm:$0xff]
        %v3246 = vld [vmem:[%s13 + $0x128] sm:$0xff]
        %v3247 = vld [vmem:[%s13 + $0x130] sm:$0xff]
        %v3248 = vld [vmem:[%s13 + $0x138] sm:$0xff]
        %v3249 = vld [vmem:[%s13 + $0x140] sm:$0xff]
        %v3250 = vld [vmem:[%s13 + $0x148] sm:$0xff]
        %v3251 = vld [vmem:[%s13 + $0x150] sm:$0xff]
        %v3252 = vld [vmem:[%s13 + $0x158] sm:$0xff]
        %v3253 = vld [vmem:[%s13 + $0x160] sm:$0xff]
        %v3254 = vld [vmem:[%s13 + $0x168] sm:$0xff]
        %v3255 = vld [vmem:[%s13 + $0x170] sm:$0xff]
        %v3256 = vld [vmem:[%s13 + $0x178] sm:$0xff]
        %v3257 = vld [vmem:[%s13 + $0x180] sm:$0xff]
        %v3258 = vld [vmem:[%s13 + $0x188] sm:$0xff]
        %v3259 = vld [vmem:[%s13 + $0x190] sm:$0xff]
        %v3260 = vld [vmem:[%s13 + $0x198] sm:$0xff]
        %v3261 = vld [vmem:[%s13 + $0x1a0] sm:$0xff]
        %v3262 = vld [vmem:[%s13 + $0x1a8] sm:$0xff]
        %v3263 = vld [vmem:[%s13 + $0x1b0] sm:$0xff]
        %v3264 = vld [vmem:[%s13 + $0x1b8] sm:$0xff]
        %v3265 = vld [vmem:[%s13 + $0x1c0] sm:$0xff]
        %v3266 = vld [vmem:[%s13 + $0x1c8] sm:$0xff]
        %v3267 = vld [vmem:[%s13 + $0x1d0] sm:$0xff]
        %v3268 = vld [vmem:[%s13 + $0x1d8] sm:$0xff]
        %v3269 = vld [vmem:[%s13 + $0x1e0] sm:$0xff]
        %v3270 = vld [vmem:[%s13 + $0x1e8] sm:$0xff]
        %v3271 = vld [vmem:[%s13 + $0x1f0] sm:$0xff]
        %v3272 = vld [vmem:[%s13 + $0x1f8] sm:$0xff]
        %v3273 = vld [vmem:[%s14] sm:$0x3]
        %v3338 = vunpack.c.l.b16 %v3209
        %v3339 = vunpack.c.h.b16 %v3209
        %v3340 = vunpack.c.l.b16 %v3210
        %v3341 = vunpack.c.h.b16 %v3210
        %v3342 = vunpack.c.l.b16 %v3211
        %v3343 = vunpack.c.h.b16 %v3211
        %v3344 = vunpack.c.l.b16 %v3212
        %v3345 = vunpack.c.h.b16 %v3212
        %v3346 = vunpack.c.l.b16 %v3213
        %v3347 = vunpack.c.h.b16 %v3213
        %v3348 = vunpack.c.l.b16 %v3214
        %v3349 = vunpack.c.h.b16 %v3214
        %v3350 = vunpack.c.l.b16 %v3215
        %v3351 = vunpack.c.h.b16 %v3215
        %v3352 = vunpack.c.l.b16 %v3216
        %v3353 = vunpack.c.h.b16 %v3216
        %v3354 = vunpack.c.l.b16 %v3217
        %v3355 = vunpack.c.h.b16 %v3217
        %v3356 = vunpack.c.l.b16 %v3218
        %v3357 = vunpack.c.h.b16 %v3218
        %v3358 = vunpack.c.l.b16 %v3219
        %v3359 = vunpack.c.h.b16 %v3219
        %v3360 = vunpack.c.l.b16 %v3220
        %v3361 = vunpack.c.h.b16 %v3220
        %v3362 = vunpack.c.l.b16 %v3221
        %v3363 = vunpack.c.h.b16 %v3221
        %v3364 = vunpack.c.l.b16 %v3222
        %v3365 = vunpack.c.h.b16 %v3222
        %v3366 = vunpack.c.l.b16 %v3223
        %v3367 = vunpack.c.h.b16 %v3223
        %v3368 = vunpack.c.l.b16 %v3224
        %v3369 = vunpack.c.h.b16 %v3224
        %v3370 = vunpack.c.l.b16 %v3225
        %v3371 = vunpack.c.h.b16 %v3225
        %v3372 = vunpack.c.l.b16 %v3226
        %v3373 = vunpack.c.h.b16 %v3226
        %v3374 = vunpack.c.l.b16 %v3227
        %v3375 = vunpack.c.h.b16 %v3227
        %v3376 = vunpack.c.l.b16 %v3228
        %v3377 = vunpack.c.h.b16 %v3228
        %v3378 = vunpack.c.l.b16 %v3229
        %v3379 = vunpack.c.h.b16 %v3229
        %v3380 = vunpack.c.l.b16 %v3230
        %v3381 = vunpack.c.h.b16 %v3230
        %v3382 = vunpack.c.l.b16 %v3231
        %v3383 = vunpack.c.h.b16 %v3231
        %v3384 = vunpack.c.l.b16 %v3232
        %v3385 = vunpack.c.h.b16 %v3232
        %v3386 = vunpack.c.l.b16 %v3233
        %v3387 = vunpack.c.h.b16 %v3233
        %v3388 = vunpack.c.l.b16 %v3234
        %v3389 = vunpack.c.h.b16 %v3234
        %v3390 = vunpack.c.l.b16 %v3235
        %v3391 = vunpack.c.h.b16 %v3235
        %v3392 = vunpack.c.l.b16 %v3236
        %v3393 = vunpack.c.h.b16 %v3236
        %v3394 = vunpack.c.l.b16 %v3237
        %v3395 = vunpack.c.h.b16 %v3237
        %v3396 = vunpack.c.l.b16 %v3238
        %v3397 = vunpack.c.h.b16 %v3238
        %v3398 = vunpack.c.l.b16 %v3239
        %v3399 = vunpack.c.h.b16 %v3239
        %v3400 = vunpack.c.l.b16 %v3240
        %v3401 = vunpack.c.h.b16 %v3240
        %v3402 = vunpack.c.l.b16 %v3241
        %v3403 = vunpack.c.h.b16 %v3241
        %v3404 = vunpack.c.l.b16 %v3242
        %v3405 = vunpack.c.h.b16 %v3242
        %v3406 = vunpack.c.l.b16 %v3243
        %v3407 = vunpack.c.h.b16 %v3243
        %v3408 = vunpack.c.l.b16 %v3244
        %v3409 = vunpack.c.h.b16 %v3244
        %v3410 = vunpack.c.l.b16 %v3245
        %v3411 = vunpack.c.h.b16 %v3245
        %v3412 = vunpack.c.l.b16 %v3246
        %v3413 = vunpack.c.h.b16 %v3246
        %v3414 = vunpack.c.l.b16 %v3247
        %v3415 = vunpack.c.h.b16 %v3247
        %v3416 = vunpack.c.l.b16 %v3248
        %v3417 = vunpack.c.h.b16 %v3248
        %v3418 = vunpack.c.l.b16 %v3249
        %v3419 = vunpack.c.h.b16 %v3249
        %v3420 = vunpack.c.l.b16 %v3250
        %v3421 = vunpack.c.h.b16 %v3250
        %v3422 = vunpack.c.l.b16 %v3251
        %v3423 = vunpack.c.h.b16 %v3251
        %v3424 = vunpack.c.l.b16 %v3252
        %v3425 = vunpack.c.h.b16 %v3252
        %v3426 = vunpack.c.l.b16 %v3253
        %v3427 = vunpack.c.h.b16 %v3253
        %v3428 = vunpack.c.l.b16 %v3254
        %v3429 = vunpack.c.h.b16 %v3254
        %v3430 = vunpack.c.l.b16 %v3255
        %v3431 = vunpack.c.h.b16 %v3255
        %v3432 = vunpack.c.l.b16 %v3256
        %v3433 = vunpack.c.h.b16 %v3256
        %v3434 = vunpack.c.l.b16 %v3257
        %v3435 = vunpack.c.h.b16 %v3257
        %v3436 = vunpack.c.l.b16 %v3258
        %v3437 = vunpack.c.h.b16 %v3258
        %v3438 = vunpack.c.l.b16 %v3259
        %v3439 = vunpack.c.h.b16 %v3259
        %v3440 = vunpack.c.l.b16 %v3260
        %v3441 = vunpack.c.h.b16 %v3260
        %v3442 = vunpack.c.l.b16 %v3261
        %v3443 = vunpack.c.h.b16 %v3261
        %v3444 = vunpack.c.l.b16 %v3262
        %v3445 = vunpack.c.h.b16 %v3262
        %v3446 = vunpack.c.l.b16 %v3263
        %v3447 = vunpack.c.h.b16 %v3263
        %v3448 = vunpack.c.l.b16 %v3264
        %v3449 = vunpack.c.h.b16 %v3264
        %v3450 = vunpack.c.l.b16 %v3265
        %v3451 = vunpack.c.h.b16 %v3265
        %v3452 = vunpack.c.l.b16 %v3266
        %v3453 = vunpack.c.h.b16 %v3266
        %v3454 = vunpack.c.l.b16 %v3267
        %v3455 = vunpack.c.h.b16 %v3267
        %v3456 = vunpack.c.l.b16 %v3268
        %v3457 = vunpack.c.h.b16 %v3268
        %v3458 = vunpack.c.l.b16 %v3269
        %v3459 = vunpack.c.h.b16 %v3269
        %v3460 = vunpack.c.l.b16 %v3270
        %v3461 = vunpack.c.h.b16 %v3270
        %v3462 = vunpack.c.l.b16 %v3271
        %v3463 = vunpack.c.h.b16 %v3271
        %v3464 = vunpack.c.l.b16 %v3272
        %v3465 = vunpack.c.h.b16 %v3272
        %v3466 = vpack.c.b16 %v3340, %v3338
        %v3467 = vpack.c.b16 %v3341, %v3339
        %v3468 = vpack.c.b16 %v3344, %v3342
        %v3469 = vpack.c.b16 %v3345, %v3343
        %v3470 = vpack.c.b16 %v3348, %v3346
        %v3471 = vpack.c.b16 %v3349, %v3347
        %v3472 = vpack.c.b16 %v3352, %v3350
        %v3473 = vpack.c.b16 %v3353, %v3351
        %v3474 = vpack.c.b16 %v3356, %v3354
        %v3475 = vpack.c.b16 %v3357, %v3355
        %v3476 = vpack.c.b16 %v3360, %v3358
        %v3477 = vpack.c.b16 %v3361, %v3359
        %v3478 = vpack.c.b16 %v3364, %v3362
        %v3479 = vpack.c.b16 %v3365, %v3363
        %v3480 = vpack.c.b16 %v3368, %v3366
        %v3481 = vpack.c.b16 %v3369, %v3367
        %v3482 = vpack.c.b16 %v3372, %v3370
        %v3483 = vpack.c.b16 %v3373, %v3371
        %v3484 = vpack.c.b16 %v3376, %v3374
        %v3485 = vpack.c.b16 %v3377, %v3375
        %v3486 = vpack.c.b16 %v3380, %v3378
        %v3487 = vpack.c.b16 %v3381, %v3379
        %v3488 = vpack.c.b16 %v3384, %v3382
        %v3489 = vpack.c.b16 %v3385, %v3383
        %v3490 = vpack.c.b16 %v3388, %v3386
        %v3491 = vpack.c.b16 %v3389, %v3387
        %v3492 = vpack.c.b16 %v3392, %v3390
        %v3493 = vpack.c.b16 %v3393, %v3391
        %v3494 = vpack.c.b16 %v3396, %v3394
        %v3495 = vpack.c.b16 %v3397, %v3395
        %v3496 = vpack.c.b16 %v3400, %v3398
        %v3497 = vpack.c.b16 %v3401, %v3399
        %v3498 = vpack.c.b16 %v3404, %v3402
        %v3499 = vpack.c.b16 %v3405, %v3403
        %v3500 = vpack.c.b16 %v3408, %v3406
        %v3501 = vpack.c.b16 %v3409, %v3407
        %v3502 = vpack.c.b16 %v3412, %v3410
        %v3503 = vpack.c.b16 %v3413, %v3411
        %v3504 = vpack.c.b16 %v3416, %v3414
        %v3505 = vpack.c.b16 %v3417, %v3415
        %v3506 = vpack.c.b16 %v3420, %v3418
        %v3507 = vpack.c.b16 %v3421, %v3419
        %v3508 = vpack.c.b16 %v3424, %v3422
        %v3509 = vpack.c.b16 %v3425, %v3423
        %v3510 = vpack.c.b16 %v3428, %v3426
        %v3511 = vpack.c.b16 %v3429, %v3427
        %v3512 = vpack.c.b16 %v3432, %v3430
        %v3513 = vpack.c.b16 %v3433, %v3431
        %v3514 = vpack.c.b16 %v3436, %v3434
        %v3515 = vpack.c.b16 %v3437, %v3435
        %v3516 = vpack.c.b16 %v3440, %v3438
        %v3517 = vpack.c.b16 %v3441, %v3439
        %v3518 = vpack.c.b16 %v3444, %v3442
        %v3519 = vpack.c.b16 %v3445, %v3443
        %v3520 = vpack.c.b16 %v3448, %v3446
        %v3521 = vpack.c.b16 %v3449, %v3447
        %v3522 = vpack.c.b16 %v3452, %v3450
        %v3523 = vpack.c.b16 %v3453, %v3451
        %v3524 = vpack.c.b16 %v3456, %v3454
        %v3525 = vpack.c.b16 %v3457, %v3455
        %v3526 = vpack.c.b16 %v3460, %v3458
        %v3527 = vpack.c.b16 %v3461, %v3459
        %v3528 = vpack.c.b16 %v3464, %v3462
        %v3529 = vpack.c.b16 %v3465, %v3463
        %v3595 = vlaneseq
        %v3596 = vshrl.u32 %v3595, 7
        %v3597 = vsub.s32 0, %v3596
        %v3598 = vrot.slane %v3273, %v3597
        %v3599 = vlaneseq
        %v3600 = vshrl.u32 %v3599, 7
        %v3601 = vsub.s32 1, %v3600
        %v3602 = vrot.slane %v3273, %v3601
        %3605 = vmatprep.subr.bf16.mxu0 %v3467
        %3606 = vmatpush1.bf16.msra.mxu0 %v3466
        %3607 = vmatprep.subr.bf16.mxu0 %v3469
        %3608 = vmatpush1.bf16.msra.mxu0 %v3468
        %3609 = vmatprep.subr.bf16.mxu0 %v3471
        %3610 = vmatpush1.bf16.msra.mxu0 %v3470
        %3611 = vmatprep.subr.bf16.mxu0 %v3473
        %3612 = vmatpush1.bf16.msra.mxu0 %v3472
        %3613 = vmatprep.subr.bf16.mxu0 %v3475
        %3614 = vmatpush1.bf16.msra.mxu0 %v3474
        %3615 = vmatprep.subr.bf16.mxu0 %v3477
        %3616 = vmatpush1.bf16.msra.mxu0 %v3476
        %3617 = vmatprep.subr.bf16.mxu0 %v3479
        %3618 = vmatpush1.bf16.msra.mxu0 %v3478
        %3619 = vmatprep.subr.bf16.mxu0 %v3481
        %3620 = vmatpush1.bf16.msra.mxu0 %v3480
        %3621 = vmatprep.subr.bf16.mxu0 %v3483
        %3622 = vmatpush1.bf16.msra.mxu0 %v3482
        %3623 = vmatprep.subr.bf16.mxu0 %v3485
        %3624 = vmatpush1.bf16.msra.mxu0 %v3484
        %3625 = vmatprep.subr.bf16.mxu0 %v3487
        %3626 = vmatpush1.bf16.msra.mxu0 %v3486
        %3627 = vmatprep.subr.bf16.mxu0 %v3489
        %3628 = vmatpush1.bf16.msra.mxu0 %v3488
        %3629 = vmatprep.subr.bf16.mxu0 %v3491
        %3630 = vmatpush1.bf16.msra.mxu0 %v3490
        %3631 = vmatprep.subr.bf16.mxu0 %v3493
        %3632 = vmatpush1.bf16.msra.mxu0 %v3492
        %3633 = vmatprep.subr.bf16.mxu0 %v3495
        %3634 = vmatpush1.bf16.msra.mxu0 %v3494
        %3635 = vmatprep.subr.bf16.mxu0 %v3497
        %3636 = vmatpush1.bf16.msra.mxu0 %v3496
        %3637 = vmatprep.mubr.bf16.mxu0 %v3206
        %3638 = vmatmul.mubr.bf16.gmra.mrb[0].mxu0 %v3205
        %v3639 = vpop.f32.mrb[0].mxu0
        %v3640 = vadd.f32 %v3598, %v3639
        %v3641 = vpop.f32.mrb[0].mxu0
        %v3642 = vadd.f32 %v3602, %v3641
        %v3643 = vpop.f32.mrb[0].mxu0
        %v3644 = vpop.f32.mrb[0].mxu0
        %3645 = vdwg.mxu0
        %3646 = vmatprep.subr.bf16.mxu0 %v3499
        %3647 = vmatpush1.bf16.msra.mxu0 %v3498
        %3648 = vmatprep.subr.bf16.mxu0 %v3501
        %3649 = vmatpush1.bf16.msra.mxu0 %v3500
        %3650 = vmatprep.subr.bf16.mxu0 %v3503
        %3651 = vmatpush1.bf16.msra.mxu0 %v3502
        %3652 = vmatprep.subr.bf16.mxu0 %v3505
        %3653 = vmatpush1.bf16.msra.mxu0 %v3504
        %3654 = vmatprep.subr.bf16.mxu0 %v3507
        %3655 = vmatpush1.bf16.msra.mxu0 %v3506
        %3656 = vmatprep.subr.bf16.mxu0 %v3509
        %3657 = vmatpush1.bf16.msra.mxu0 %v3508
        %3658 = vmatprep.subr.bf16.mxu0 %v3511
        %3659 = vmatpush1.bf16.msra.mxu0 %v3510
        %3660 = vmatprep.subr.bf16.mxu0 %v3513
        %3661 = vmatpush1.bf16.msra.mxu0 %v3512
        %3662 = vmatprep.subr.bf16.mxu0 %v3515
        %3663 = vmatpush1.bf16.msra.mxu0 %v3514
        %3664 = vmatprep.subr.bf16.mxu0 %v3517
        %3665 = vmatpush1.bf16.msra.mxu0 %v3516
        %3666 = vmatprep.subr.bf16.mxu0 %v3519
        %3667 = vmatpush1.bf16.msra.mxu0 %v3518
        %3668 = vmatprep.subr.bf16.mxu0 %v3521
        %3669 = vmatpush1.bf16.msra.mxu0 %v3520
        %3670 = vmatprep.subr.bf16.mxu0 %v3523
        %3671 = vmatpush1.bf16.msra.mxu0 %v3522
        %3672 = vmatprep.subr.bf16.mxu0 %v3525
        %3673 = vmatpush1.bf16.msra.mxu0 %v3524
        %3674 = vmatprep.subr.bf16.mxu0 %v3527
        %3675 = vmatpush1.bf16.msra.mxu0 %v3526
        %3676 = vmatprep.subr.bf16.mxu0 %v3529
        %3677 = vmatpush1.bf16.msra.mxu0 %v3528
        %3678 = vmatprep.mubr.bf16.mxu0 %v3208
        %3679 = vmatmul.mubr.bf16.gmra.mrb[0].mxu0 %v3207
        %v3680 = vpop.f32.mrb[0].mxu0
        %v3681 = vadd.f32 %v3640, %v3680
        %v3682 = vpop.f32.mrb[0].mxu0
        %v3683 = vadd.f32 %v3642, %v3682
        %v3684 = vpop.f32.mrb[0].mxu0
        %v3685 = vpop.f32.mrb[0].mxu0
        %3686 = vdwg.mxu0
        %v3687 = vmax.f32 %v3681, 0.0
        %v3688 = vmax.f32 %v3683, 0.0
        %v3689 = vpack.c.bf16 %v3687, %v3687
        %v3690 = vpack.c.bf16 %v3688, %v3688
        %v3691 = vld [vmem:[%s15] sm:$0xf]
        %v3692 = vld [vmem:[%s15 + $0x4] sm:$0xf]
        %v3693 = vld [vmem:[%s15 + $0x8] sm:$0xf]
        %v3694 = vld [vmem:[%s15 + $0xc] sm:$0xf]
        %v3695 = vld [vmem:[%s15 + $0x10] sm:$0xf]
        %v3696 = vld [vmem:[%s15 + $0x14] sm:$0xf]
        %v3697 = vld [vmem:[%s15 + $0x18] sm:$0xf]
        %v3698 = vld [vmem:[%s15 + $0x1c] sm:$0xf]
        %v3699 = vld [vmem:[%s15 + $0x20] sm:$0xf]
        %v3700 = vld [vmem:[%s15 + $0x24] sm:$0xf]
        %v3701 = vld [vmem:[%s15 + $0x28] sm:$0xf]
        %v3702 = vld [vmem:[%s15 + $0x2c] sm:$0xf]
        %v3703 = vld [vmem:[%s15 + $0x30] sm:$0xf]
        %v3704 = vld [vmem:[%s15 + $0x34] sm:$0xf]
        %v3705 = vld [vmem:[%s15 + $0x38] sm:$0xf]
        %v3706 = vld [vmem:[%s15 + $0x3c] sm:$0xf]
        %v3707 = vld [vmem:[%s15 + $0x40] sm:$0xf]
        %v3708 = vld [vmem:[%s15 + $0x44] sm:$0xf]
        %v3709 = vld [vmem:[%s15 + $0x48] sm:$0xf]
        %v3710 = vld [vmem:[%s15 + $0x4c] sm:$0xf]
        %v3711 = vld [vmem:[%s15 + $0x50] sm:$0xf]
        %v3712 = vld [vmem:[%s15 + $0x54] sm:$0xf]
        %v3713 = vld [vmem:[%s15 + $0x58] sm:$0xf]
        %v3714 = vld [vmem:[%s15 + $0x5c] sm:$0xf]
        %v3715 = vld [vmem:[%s15 + $0x60] sm:$0xf]
        %v3716 = vld [vmem:[%s15 + $0x64] sm:$0xf]
        %v3717 = vld [vmem:[%s15 + $0x68] sm:$0xf]
        %v3718 = vld [vmem:[%s15 + $0x6c] sm:$0xf]
        %v3719 = vld [vmem:[%s15 + $0x70] sm:$0xf]
        %v3720 = vld [vmem:[%s15 + $0x74] sm:$0xf]
        %v3721 = vld [vmem:[%s15 + $0x78] sm:$0xf]
        %v3722 = vld [vmem:[%s15 + $0x7c] sm:$0xf]
        %v3723 = vld [vmem:[%s16] sm:$0x1]
        %v3756 = vunpack.c.l.b16 %v3691
        %v3757 = vunpack.c.l.b16 %v3692
        %v3758 = vunpack.c.l.b16 %v3693
        %v3759 = vunpack.c.l.b16 %v3694
        %v3760 = vunpack.c.l.b16 %v3695
        %v3761 = vunpack.c.l.b16 %v3696
        %v3762 = vunpack.c.l.b16 %v3697
        %v3763 = vunpack.c.l.b16 %v3698
        %v3764 = vunpack.c.l.b16 %v3699
        %v3765 = vunpack.c.l.b16 %v3700
        %v3766 = vunpack.c.l.b16 %v3701
        %v3767 = vunpack.c.l.b16 %v3702
        %v3768 = vunpack.c.l.b16 %v3703
        %v3769 = vunpack.c.l.b16 %v3704
        %v3770 = vunpack.c.l.b16 %v3705
        %v3771 = vunpack.c.l.b16 %v3706
        %v3772 = vunpack.c.l.b16 %v3707
        %v3773 = vunpack.c.l.b16 %v3708
        %v3774 = vunpack.c.l.b16 %v3709
        %v3775 = vunpack.c.l.b16 %v3710
        %v3776 = vunpack.c.l.b16 %v3711
        %v3777 = vunpack.c.l.b16 %v3712
        %v3778 = vunpack.c.l.b16 %v3713
        %v3779 = vunpack.c.l.b16 %v3714
        %v3780 = vunpack.c.l.b16 %v3715
        %v3781 = vunpack.c.l.b16 %v3716
        %v3782 = vunpack.c.l.b16 %v3717
        %v3783 = vunpack.c.l.b16 %v3718
        %v3784 = vunpack.c.l.b16 %v3719
        %v3785 = vunpack.c.l.b16 %v3720
        %v3786 = vunpack.c.l.b16 %v3721
        %v3787 = vunpack.c.l.b16 %v3722
        %v3788 = vpack.c.b16 %v3757, %v3756
        %v3789 = vpack.c.b16 %v3759, %v3758
        %v3790 = vpack.c.b16 %v3761, %v3760
        %v3791 = vpack.c.b16 %v3763, %v3762
        %v3792 = vpack.c.b16 %v3765, %v3764
        %v3793 = vpack.c.b16 %v3767, %v3766
        %v3794 = vpack.c.b16 %v3769, %v3768
        %v3795 = vpack.c.b16 %v3771, %v3770
        %v3796 = vpack.c.b16 %v3773, %v3772
        %v3797 = vpack.c.b16 %v3775, %v3774
        %v3798 = vpack.c.b16 %v3777, %v3776
        %v3799 = vpack.c.b16 %v3779, %v3778
        %v3800 = vpack.c.b16 %v3781, %v3780
        %v3801 = vpack.c.b16 %v3783, %v3782
        %v3802 = vpack.c.b16 %v3785, %v3784
        %v3803 = vpack.c.b16 %v3787, %v3786
        %3820 = vmatprep.subr.bf16.mxu0 0
        %3821 = vmatpush1.bf16.msra.mxu0 %v3788
        %3822 = vmatprep.subr.bf16.mxu0 0
        %3823 = vmatpush1.bf16.msra.mxu0 %v3789
        %3824 = vmatprep.subr.bf16.mxu0 0
        %3825 = vmatpush1.bf16.msra.mxu0 %v3790
        %3826 = vmatprep.subr.bf16.mxu0 0
        %3827 = vmatpush1.bf16.msra.mxu0 %v3791
        %3828 = vmatprep.subr.bf16.mxu0 0
        %3829 = vmatpush1.bf16.msra.mxu0 %v3792
        %3830 = vmatprep.subr.bf16.mxu0 0
        %3831 = vmatpush1.bf16.msra.mxu0 %v3793
        %3832 = vmatprep.subr.bf16.mxu0 0
        %3833 = vmatpush1.bf16.msra.mxu0 %v3794
        %3834 = vmatprep.subr.bf16.mxu0 0
        %3835 = vmatpush1.bf16.msra.mxu0 %v3795
        %3836 = vmatprep.subr.bf16.mxu0 0
        %3837 = vmatpush1.bf16.msra.mxu0 %v3796
        %3838 = vmatprep.subr.bf16.mxu0 0
        %3839 = vmatpush1.bf16.msra.mxu0 %v3797
        %3840 = vmatprep.subr.bf16.mxu0 0
        %3841 = vmatpush1.bf16.msra.mxu0 %v3798
        %3842 = vmatprep.subr.bf16.mxu0 0
        %3843 = vmatpush1.bf16.msra.mxu0 %v3799
        %3844 = vmatprep.subr.bf16.mxu0 0
        %3845 = vmatpush1.bf16.msra.mxu0 %v3800
        %3846 = vmatprep.subr.bf16.mxu0 0
        %3847 = vmatpush1.bf16.msra.mxu0 %v3801
        %3848 = vmatprep.subr.bf16.mxu0 0
        %3849 = vmatpush1.bf16.msra.mxu0 %v3802
        %3850 = vmatprep.subr.bf16.mxu0 0
        %3851 = vmatpush1.bf16.msra.mxu0 %v3803
        %3852 = vmatprep.mubr.bf16.mxu0 %v3690
        %3853 = vmatmul.mubr.bf16.gmra.mrb[0].mxu0 %v3689
        %v3854 = vpop.f32.mrb[0].mxu0
        %v3855 = vadd.f32 %v3723, %v3854
        %v3856 = vpop.f32.mrb[0].mxu0
        %v3857 = vpop.f32.mrb[0].mxu0
        %v3858 = vpop.f32.mrb[0].mxu0
        %3859 = vdwg.mxu0
        %v3860 = vsub.f32 0.0, %v3855
        %v3861 = vmul.f32 %v3860, 1.442695
        %v3862 = vpow.pop %v3861
        %v3863 = vadd.f32 %v3862, 1.0
        %v3864 = vrcp.pop %v3863
        %v3865 = vmul.f32 1.0, %v3864
        %vm3866 = vcmask 90112
        %3867 = vst.msk [vmem:[%s542] sm:$0x1] %vm3866, %v3865
        %s3868 = sand.u32 %s403, 1
        %s3869 = scalar_lea.sflag [#allocation19], %s3868
        %s3870 = sand.u32 %s403, 1
        %s3871 = scalar_lea.vmem [#allocation18], %s3870
        // Predicated region
        $region89: #{_lambda_.1} parent=87 // pred_check
          %p3872 = pneg %p413
        $region90: #{_lambda_.1} parent=87 // pred_check_branch
          %3874 = sbr.rel (%p3872) target = $region92
        $region91: #{_lambda_.1} parent=87 // pred_region
          %s3876 = ssub.s32 16, 16
          %3877 = vsyncadd %s3869, %s3876
          %s3878 = smul.addr %s33, 16
          %s3879 = scalar_lea.hbm %s17, %s3878
          %s3881 = sshll.u32 %s3871, 4
          %s3882 = int_to_ptr.vmem [resolvable:$true] %s3881
          %3884 = dma.vmem_to_hbm [thread:$0]  %s3882, 16, %s3879, %s3869
        $region92: #{_lambda_.1} parent=87 // pred_fallthru
          _
      $region88: #{_lambda_.1} parent=5 // pred_fallthru
        _
      %p3885 = scmp.le.s32.totalorder 2, %s28
      // Predicated region
      $region93: #{_lambda_.1} parent=5 // pred_check
        %p3886 = pneg %p3885
      $region94: #{_lambda_.1} parent=5 // pred_check_branch
        %3888 = sbr.rel (%p3886) target = $region96
      $region95: #{_lambda_.1} parent=5 // pred_region
        %s3889 = ssub.s32 %s28, 2
        // Predicated region
        $region97: #{_lambda_.1} parent=95 // pred_check
          %p3890 = pneg %p419
        $region98: #{_lambda_.1} parent=95 // pred_check_branch
          %3892 = sbr.rel (%p3890) target = $region100
        $region99: #{_lambda_.1} parent=95 // pred_region
          %s3893 = sand.u32 %s404, 1
          %s3894 = scalar_lea.sflag [#allocation19], %s3893
          %s3895 = sand.u32 %s404, 1
          %s3896 = scalar_lea.vmem [#allocation18], %s3895
          %3897 = dma.done %s3894, 16
        $region100: #{_lambda_.1} parent=95 // pred_fallthru
          _
      $region96: #{_lambda_.1} parent=5 // pred_fallthru
        _
    $region6: #{_lambda_.1} parent=1 // loop_footer
      %s32 = sadd.s32 1, %s28
    $region7: #{_lambda_.1} parent=1 // loop_footer_branch
      %27 = sbr.rel target = $region3
    $region8: #{_lambda_.1} parent=1 // loop_exit
      _
    %3898 = vsyncpa [#allocation19], 1
    %s3899 = scalar_lea.sflag [#allocation19], 1
    %3900 = vsyncpa %s3899, 1

</llo_original>
